<compile_context>
chip_gen: v5e
topology: v5e:2x2
jax: 0.10.0
libtpu: 0.0.40
codegen_flags: <defaults>
</compile_context>

<pallas_src>
import jax
import jax.numpy as jnp
from jax import lax
from jax.experimental import pallas as pl
from jax.experimental.pallas import tpu as pltpu

CHAR_DIM_EMBEDDING = 30
CHAR_LSTM_HIDDEN = 50
DIM_EMBEDDING = 100
LSTM_HIDDEN = 200

CHAR_HP = 128   # CHAR_LSTM_HIDDEN padded up to a lane multiple
WORD_HP = 256   # LSTM_HIDDEN padded up to a lane multiple


def _round_up(x, m):
    return (x + m - 1) // m * m


# ----------------------------------------------------------------------------
# In-kernel LSTM cell. gx = x @ W_ih + (b_ih + b_hh) is precomputed outside.
# Gate hidden size hp is a multiple of 128 so the i/f/g/o slices are
# lane-aligned; padded channels provably stay exactly 0 (also in bf16).
# MXU operands are bf16, accumulation f32; element-wise math stays f32.
# ----------------------------------------------------------------------------
def _lstm_cell(gx, h, c, whh_ref, hp):
    gates = gx + jnp.dot(h.astype(jnp.bfloat16), whh_ref[...],
                         preferred_element_type=jnp.float32)
    i = jax.nn.sigmoid(gates[:, 0 * hp:1 * hp])
    f = jax.nn.sigmoid(gates[:, 1 * hp:2 * hp])
    g = jnp.tanh(gates[:, 2 * hp:3 * hp])
    o = jax.nn.sigmoid(gates[:, 3 * hp:4 * hp])
    c_new = f * c + i * g
    h_new = o * jnp.tanh(c_new)
    return h_new, c_new


# ----------------------------------------------------------------------------
# Char LSTM: grid tiles the independent word-rows (Np); the time loop over TC
# chars runs in-kernel; only the final hidden state hn is written out.
# ----------------------------------------------------------------------------
def char_lstm_kernel(gx_ref, whh_ref, hn_ref, h_sc, c_sc):
    tc = gx_ref.shape[0]
    hp = h_sc.shape[-1]
    h_sc[...] = jnp.zeros(h_sc.shape, h_sc.dtype)
    c_sc[...] = jnp.zeros(c_sc.shape, c_sc.dtype)

    unroll = True if tc <= 16 else 8

    def step(t, carry):
        h_new, c_new = _lstm_cell(gx_ref[t], h_sc[...], c_sc[...], whh_ref, hp)
        h_sc[...] = h_new
        c_sc[...] = c_new
        return carry

    lax.fori_loop(0, tc, step, 0, unroll=unroll)
    hn_ref[...] = h_sc[...]


def char_lstm_call(gx, whh, np_tile):
    TC, Np, G = gx.shape
    HP = whh.shape[0]
    n_tiles = Np // np_tile

    need = (2 * TC * np_tile * G * 4      # gx tile, double-buffered, f32
            + 2 * HP * G * 2              # whh bf16
            + 2 * np_tile * HP * 4        # hn out
            + 2 * np_tile * HP * 4)       # h/c scratch
    vmem_bytes = int(min(max(2 * need, 16 << 20), 64 << 20))

    return pl.pallas_call(
        char_lstm_kernel,
        out_shape=jax.ShapeDtypeStruct((Np, HP), jnp.float32),
        grid=(n_tiles,),
        in_specs=[pl.BlockSpec((TC, np_tile, G), lambda i: (0, i, 0)),
                  pl.BlockSpec((HP, G), lambda i: (0, 0))],
        out_specs=pl.BlockSpec((np_tile, HP), lambda i: (i, 0)),
        scratch_shapes=[pltpu.VMEM((np_tile, HP), jnp.float32),
                        pltpu.VMEM((np_tile, HP), jnp.float32)],
        compiler_params=pltpu.CompilerParams(
            dimension_semantics=("parallel",),
            vmem_limit_bytes=vmem_bytes),
    )(gx, whh)


# ----------------------------------------------------------------------------
# Fused word bi-LSTM + classifier head. Grid runs over time; each step streams
# one (Bp, 4*Hp) gate slice per direction (backward reads time T-1-t through
# its BlockSpec index_map). h/c carries and the full (T*Bp, 2*Hp) hidden
# tensor live in VMEM scratch. The head (linear + CE(sum, ignore_index=0) +
# argmax) runs at the last grid step in row chunks.
# ----------------------------------------------------------------------------
def word_lstm_head_call(gx, whh_f, whh_b, lens, wo, bo, labels):
    T, Bp, _ = gx.shape            # gx last dim is 8*HP (fwd gates | bwd gates)
    HP = whh_f.shape[0]
    NTp = wo.shape[1]
    NBT = T * Bp

    # Row-chunk size for the fused head: multiple of Bp, divides NBT, <= 512.
    head_chunk = Bp
    for k in range(2, T + 1):
        c = Bp * k
        if c > 512:
            break
        if NBT % c == 0:
            head_chunk = c

    def kernel(gxf_ref, gxb_ref, whhf_ref, whhb_ref, lens_ref,
               wo_ref, bo_ref, lab_ref, loss_ref, pred_ref,
               h_all, hf_sc, cf_sc, hb_sc, cb_sc):
        t = pl.program_id(0)

        @pl.when(t == 0)
        def _():
            for r in (hf_sc, cf_sc, hb_sc, cb_sc):
                r[...] = jnp.zeros(r.shape, r.dtype)

        lens_v = lens_ref[...]                               # (Bp, 1) int32

        # ---- forward direction at time t ----
        m = (t < lens_v).astype(jnp.float32)                 # (Bp, 1)
        h, c = hf_sc[...], cf_sc[...]
        h_new, c_new = _lstm_cell(gxf_ref[0], h, c, whhf_ref, HP)
        hf_sc[...] = m * h_new + (1.0 - m) * h
        cf_sc[...] = m * c_new + (1.0 - m) * c
        row = pl.multiple_of(t * Bp, Bp)
        h_all[pl.ds(row, Bp), pl.ds(0, HP)] = m * h_new      # 0 at padded steps

        # ---- backward direction at time T-1-t (slice DMA'd by index_map) ----
        tb = T - 1 - t
        mb = (tb < lens_v).astype(jnp.float32)
        hb, cb = hb_sc[...], cb_sc[...]
        hb_new, cb_new = _lstm_cell(gxb_ref[0], hb, cb, whhb_ref, HP)
        hb_sc[...] = mb * hb_new + (1.0 - mb) * hb
        cb_sc[...] = mb * cb_new + (1.0 - mb) * cb
        rowb = pl.multiple_of(tb * Bp, Bp)
        h_all[pl.ds(rowb, Bp), pl.ds(HP, HP)] = mb * hb_new

        # ---- fused head on the last grid step, processed in row chunks ----
        @pl.when(t == T - 1)
        def _():
            def head_step(ci, loss_acc):
                r0 = pl.multiple_of(ci * head_chunk, head_chunk)
                hcat = h_all[pl.ds(r0, head_chunk), :]       # (chunk, 2*HP)
                scores = (jnp.dot(hcat, wo_ref[...],
                                  preferred_element_type=jnp.float32)
                          + bo_ref[...])                     # (chunk, NTp)
                mx = jnp.max(scores, axis=1, keepdims=True)
                lse = mx + jnp.log(jnp.sum(jnp.exp(scores - mx),
                                           axis=1, keepdims=True))
                lab = lab_ref[pl.ds(r0, head_chunk), :]      # (chunk, 1) int32
                tag_ids = lax.broadcasted_iota(jnp.int32, scores.shape, 1)
                true_score = jnp.sum(jnp.where(tag_ids == lab, scores, 0.0),
                                     axis=1, keepdims=True)
                valid = (lab != 0).astype(jnp.float32)       # ignore_index=0
                cand = jnp.where(scores >= mx, tag_ids, NTp)  # first max index
                pred_ref[pl.ds(r0, head_chunk), :] = jnp.min(
                    cand, axis=1, keepdims=True).astype(jnp.int32)
                return loss_acc + jnp.sum(valid * (lse - true_score))

            loss = lax.fori_loop(0, NBT // head_chunk, head_step,
                                 jnp.zeros((), jnp.float32))
            loss_ref[...] = jnp.reshape(loss, (1, 1))

    # Rough VMEM budget so larger shapes don't trip the default scoped limit.
    need = (2 * 2 * Bp * 4 * HP * 4          # fwd+bwd gx slices, double-buffered
            + 2 * 2 * HP * 4 * HP * 2        # whh f/b, bf16
            + Bp * 128 * 4                   # lens (lane-padded)
            + 2 * 2 * HP * NTp * 4 + 2 * NTp * 4   # wo, bo
            + 2 * NBT * 128 * 4              # labels (lane-padded)
            + NBT * 2 * HP * 4               # h_all scratch
            + 4 * Bp * HP * 4                # h/c scratch
            + 2 * NBT * 128 * 4 + 2 * 128 * 4)     # outputs
    vmem_bytes = int(min(max(2 * need, 16 << 20), 64 << 20))

    return pl.pallas_call(
        kernel,
        out_shape=(jax.ShapeDtypeStruct((1, 1), jnp.float32),
                   jax.ShapeDtypeStruct((NBT, 1), jnp.int32)),
        grid=(T,),
        in_specs=[
            # forward gate slice at time t (first half of last dim)
            pl.BlockSpec((1, Bp, 4 * HP), lambda t: (t, 0, 0)),
            # backward gate slice at time T-1-t (second half of last dim)
            pl.BlockSpec((1, Bp, 4 * HP), lambda t: (T - 1 - t, 0, 1)),
            pl.BlockSpec((HP, 4 * HP), lambda t: (0, 0)),
            pl.BlockSpec((HP, 4 * HP), lambda t: (0, 0)),
            pl.BlockSpec((Bp, 1), lambda t: (0, 0)),
            pl.BlockSpec((2 * HP, NTp), lambda t: (0, 0)),
            pl.BlockSpec((1, NTp), lambda t: (0, 0)),
            pl.BlockSpec((NBT, 1), lambda t: (0, 0)),
        ],
        out_specs=(pl.BlockSpec((1, 1), lambda t: (0, 0)),
                   pl.BlockSpec((NBT, 1), lambda t: (0, 0))),
        scratch_shapes=[pltpu.VMEM((NBT, 2 * HP), jnp.float32),
                        pltpu.VMEM((Bp, HP), jnp.float32),
                        pltpu.VMEM((Bp, HP), jnp.float32),
                        pltpu.VMEM((Bp, HP), jnp.float32),
                        pltpu.VMEM((Bp, HP), jnp.float32)],
        compiler_params=pltpu.CompilerParams(
            dimension_semantics=("arbitrary",),
            vmem_limit_bytes=vmem_bytes),
    )(gx, gx, whh_f, whh_b, lens, wo, bo, labels)


# ----------------------------------------------------------------------------
# Parameter packing / initialization (deterministic, synthetic).
# ----------------------------------------------------------------------------
def pack_lstm_params(w_ih, w_hh, b_ih, b_hh, H, Hp):
    """PyTorch LSTM params (gate order i,f,g,o) -> padded, pre-transposed.
    W_hh is stored bf16 (MXU operand); padded channels are exactly zero."""
    D = w_ih.shape[1]
    wih_p = jnp.zeros((D, 4 * Hp), jnp.float32)
    whh_p = jnp.zeros((Hp, 4 * Hp), jnp.float32)
    b_p = jnp.zeros((1, 4 * Hp), jnp.float32)
    b = b_ih + b_hh
    for k in range(4):
        wih_p = wih_p.at[:, k * Hp:k * Hp + H].set(w_ih[k * H:(k + 1) * H, :].T)
        whh_p = whh_p.at[:H, k * Hp:k * Hp + H].set(w_hh[k * H:(k + 1) * H, :].T)
        b_p = b_p.at[0, k * Hp:k * Hp + H].set(b[k * H:(k + 1) * H])
    return wih_p, whh_p.astype(jnp.bfloat16), b_p


def init_params(key, nwords, nchars, ntags):
    ks = jax.random.split(key, 16)

    def nrm(k, shape, scale=0.1):
        return (jax.random.normal(k, shape) * scale).astype(jnp.float32)

    params = {}
    params['word_emb'] = nrm(ks[0], (nwords, DIM_EMBEDDING))
    params['char_emb'] = nrm(ks[1], (nchars, CHAR_DIM_EMBEDDING))

    Hc = CHAR_LSTM_HIDDEN
    params['char_lstm'] = pack_lstm_params(
        nrm(ks[2], (4 * Hc, CHAR_DIM_EMBEDDING)),
        nrm(ks[3], (4 * Hc, Hc)),
        nrm(ks[4], (4 * Hc,)),
        nrm(ks[5], (4 * Hc,)), Hc, CHAR_HP)

    Hw = LSTM_HIDDEN
    Din = DIM_EMBEDDING + CHAR_LSTM_HIDDEN
    wih_f, whh_f, b_f = pack_lstm_params(
        nrm(ks[6], (4 * Hw, Din)), nrm(ks[7], (4 * Hw, Hw)),
        nrm(ks[8], (4 * Hw,)), nrm(ks[9], (4 * Hw,)), Hw, WORD_HP)
    wih_b, whh_b, b_b = pack_lstm_params(
        nrm(ks[10], (4 * Hw, Din)), nrm(ks[11], (4 * Hw, Hw)),
        nrm(ks[12], (4 * Hw,)), nrm(ks[13], (4 * Hw,)), Hw, WORD_HP)
    # Fused input-gate precompute weight: one big XLA matmul for both dirs.
    params['word_wih'] = jnp.concatenate([wih_f, wih_b], axis=1)   # (Din, 8*HP)
    params['word_bias'] = jnp.concatenate([b_f, b_b], axis=1)      # (1, 8*HP)
    params['word_whh_f'] = whh_f
    params['word_whh_b'] = whh_b

    # Classifier head: stacked [fwd; bwd] weight, padded lane-dense tag dim.
    ntp = _round_up(ntags, 128)
    w = nrm(ks[14], (ntags, 2 * LSTM_HIDDEN))
    b = nrm(ks[15], (ntags,))
    wo = jnp.zeros((2 * WORD_HP, ntp), jnp.float32)
    wo = wo.at[:Hw, :ntags].set(w[:, :Hw].T)
    wo = wo.at[WORD_HP:WORD_HP + Hw, :ntags].set(w[:, Hw:].T)
    bo = jnp.full((1, ntp), -1e30, jnp.float32).at[0, :ntags].set(b)
    params['out_w'] = wo
    params['out_b'] = bo
    return params


# ----------------------------------------------------------------------------
# Full forward pass (mirrors TaggerModel.forward).
# ----------------------------------------------------------------------------
@jax.jit
def tagger_forward(params, sentences, sent_tokens, labels, lengths):
    B, T = sentences.shape
    TC = sent_tokens.shape[-1]
    Bp = _round_up(B, 8)   # NOTE: keep Bp near 128/256 when B is large (MXU M)
    N = B * T
    Hc = CHAR_LSTM_HIDDEN

    # ---- char path (words ordered time-major: row = t*B + b) ----
    tok_tm = jnp.transpose(sent_tokens, (1, 0, 2)).reshape(N, TC)   # int32, tiny
    char_idx = jnp.transpose(tok_tm)                                # (TC, N)
    char_vec = jnp.take(params['char_emb'], char_idx, axis=0)       # (TC, N, 30)
    np_tile = min(256, _round_up(N, 8))
    Np = _round_up(N, np_tile)
    char_vec = jnp.pad(char_vec, ((0, 0), (0, Np - N), (0, 0)))
    wih_c, whh_c, b_c = params['char_lstm']
    gx_c = (char_vec.reshape(TC * Np, CHAR_DIM_EMBEDDING) @ wih_c
            + b_c).reshape(TC, Np, 4 * CHAR_HP)                     # one matmul
    hn = char_lstm_call(gx_c, whh_c, np_tile)                       # (Np, 128)
    char_out = hn[:N, :Hc].reshape(T, B, Hc)                        # hn[-1]

    # ---- word path (time-major (T,B,150); dropout = identity / eval) ----
    word_vec = jnp.take(params['word_emb'], jnp.transpose(sentences), axis=0)
    x = jnp.concatenate([word_vec, char_out], axis=2)               # (T, B, 150)
    x = jnp.pad(x, ((0, 0), (0, Bp - B), (0, 0)))                   # (T, Bp, 150)
    Din = x.shape[-1]
    x2 = x.reshape(T * Bp, Din)
    # Single fused input-gate matmul for both directions (fwd cols | bwd cols).
    gx = (x2 @ params['word_wih'] + params['word_bias']).reshape(T, Bp,
                                                                 8 * WORD_HP)

    lens_p = jnp.pad(lengths.astype(jnp.int32), (0, Bp - B)).reshape(Bp, 1)
    lab_tm = jnp.pad(jnp.transpose(labels).astype(jnp.int32),
                     ((0, 0), (0, Bp - B))).reshape(T * Bp, 1)

    loss, preds = word_lstm_head_call(gx, params['word_whh_f'],
                                      params['word_whh_b'], lens_p,
                                      params['out_w'], params['out_b'], lab_tm)
    preds = jnp.transpose(preds.reshape(T, Bp)[:, :B])              # (B, T)
    return loss[0, 0], preds


if __name__ == "__main__":
    B, T, TC = 2, 8, 6
    nwords, nchars, ntags = 20, 15, 5

    key = jax.random.PRNGKey(0)
    kp, ks1, ks2, ks3 = jax.random.split(key, 4)
    params = init_params(kp, nwords, nchars, ntags)

    sentences = jax.random.randint(ks1, (B, T), 0, nwords, dtype=jnp.int32)
    sent_tokens = jax.random.randint(ks2, (B, T, TC), 0, nchars, dtype=jnp.int32)
    lengths = jnp.array([8, 5], dtype=jnp.int32)   # sorted desc (pack_padded)
    labels = jax.random.randint(ks3, (B, T), 1, ntags, dtype=jnp.int32)
    pad_mask = jnp.arange(T)[None, :] < lengths[:, None]
    labels = jnp.where(pad_mask, labels, 0)        # padding -> ignore_index=0

    loss, preds = tagger_forward(params, sentences, sent_tokens, labels, lengths)
    jax.block_until_ready((loss, preds))
    print("KERNEL_OK")
</pallas_src>

<mosaic_0001>
module attributes {stable_mosaic.version = 11 : i64} {
  func.func @char_lstm_kernel(%arg0: i32, %arg1: memref<6x16x512xf32, #tpu.memory_space<vmem>>, %arg2: memref<128x512xbf16, #tpu.memory_space<vmem>>, %arg3: memref<16x128xf32, #tpu.memory_space<vmem>>, %arg4: memref<16x128xf32, #tpu.memory_space<vmem>>, %arg5: memref<16x128xf32, #tpu.memory_space<vmem>>) attributes {dimension_semantics = [#tpu.dimension_semantics<parallel>], iteration_bounds = array<i64: 1>, scalar_prefetch = 0 : i64, scratch_operands = 2 : i64, tpu.core_type = #tpu.core_type<tc>, window_params = [{transform_indices = @transform_0, window_bounds = array<i64: 6, 16, 512>}, {pipeline_mode = #tpu.pipeline_mode<synchronous>, transform_indices = @transform_1, window_bounds = array<i64: 128, 512>}, {transform_indices = @transform_2, window_bounds = array<i64: 16, 128>}]} {
    %cst = arith.constant 0.000000e+00 : f32
    %0 = vector.broadcast %cst : f32 to vector<16x128xf32>
    %c0 = arith.constant 0 : index
    %c0_0 = arith.constant 0 : index
    %1 = vector.load %arg4[%c0, %c0_0] : memref<16x128xf32, #tpu.memory_space<vmem>>, vector<16x128xf32>
    tpu.vector_store %arg4[%c0, %c0_0], %0 {strides = array<i32>} : memref<16x128xf32, #tpu.memory_space<vmem>>, vector<16x128xf32>,
    %cst_1 = arith.constant 0.000000e+00 : f32
    %2 = vector.broadcast %cst_1 : f32 to vector<16x128xf32>
    %c0_2 = arith.constant 0 : index
    %c0_3 = arith.constant 0 : index
    %3 = vector.load %arg5[%c0_2, %c0_3] : memref<16x128xf32, #tpu.memory_space<vmem>>, vector<16x128xf32>
    tpu.vector_store %arg5[%c0_2, %c0_3], %2 {strides = array<i32>} : memref<16x128xf32, #tpu.memory_space<vmem>>, vector<16x128xf32>,
    %c0_i32 = arith.constant 0 : i32
    %4 = arith.index_cast %c0_i32 : i32 to index
    %c0_4 = arith.constant 0 : index
    %c0_5 = arith.constant 0 : index
    %5 = vector.load %arg1[%4, %c0_4, %c0_5] : memref<6x16x512xf32, #tpu.memory_space<vmem>>, vector<1x16x512xf32>
    %6 = vector.shape_cast %5 : vector<1x16x512xf32> to vector<16x512xf32>
    %c0_6 = arith.constant 0 : index
    %c0_7 = arith.constant 0 : index
    %7 = vector.load %arg4[%c0_6, %c0_7] : memref<16x128xf32, #tpu.memory_space<vmem>>, vector<16x128xf32>
    %c0_8 = arith.constant 0 : index
    %c0_9 = arith.constant 0 : index
    %8 = vector.load %arg5[%c0_8, %c0_9] : memref<16x128xf32, #tpu.memory_space<vmem>>, vector<16x128xf32>
    %9 = arith.truncf %7 : vector<16x128xf32> to vector<16x128xbf16>
    %c0_10 = arith.constant 0 : index
    %c0_11 = arith.constant 0 : index
    %10 = vector.load %arg2[%c0_10, %c0_11] : memref<128x512xbf16, #tpu.memory_space<vmem>>, vector<128x512xbf16>
    %cst_12 = arith.constant dense<0.000000e+00> : vector<16x512xf32>
    %11 = tpu.matmul %9, %10, %cst_12 {dimension_numbers = #tpu.dot_dimension_numbers<[1], [0], [0], [1], [0, 0, 1, 1], [], []>} : vector<16x128xbf16>, vector<128x512xbf16>, vector<16x512xf32> -> vector<16x512xf32>
    %12 = arith.addf %6, %11 : vector<16x512xf32>
    %13 = vector.extract_strided_slice %12 {offsets = [0, 0], sizes = [16, 128], strides = [1, 1]} : vector<16x512xf32> to vector<16x128xf32>
    %14 = arith.negf %13 : vector<16x128xf32>
    %15 = math.exp %14 : vector<16x128xf32>
    %cst_13 = arith.constant 1.000000e+00 : f32
    %16 = vector.broadcast %cst_13 : f32 to vector<16x128xf32>
    %17 = arith.addf %16, %15 : vector<16x128xf32>
    %18 = arith.divf %16, %17 : vector<16x128xf32>
    %19 = vector.extract_strided_slice %12 {offsets = [0, 128], sizes = [16, 128], strides = [1, 1]} : vector<16x512xf32> to vector<16x128xf32>
    %20 = arith.negf %19 : vector<16x128xf32>
    %21 = math.exp %20 : vector<16x128xf32>
    %cst_14 = arith.constant 1.000000e+00 : f32
    %22 = vector.broadcast %cst_14 : f32 to vector<16x128xf32>
    %23 = arith.addf %22, %21 : vector<16x128xf32>
    %24 = arith.divf %22, %23 : vector<16x128xf32>
    %25 = vector.extract_strided_slice %12 {offsets = [0, 256], sizes = [16, 128], strides = [1, 1]} : vector<16x512xf32> to vector<16x128xf32>
    %26 = math.tanh %25 : vector<16x128xf32>
    %27 = vector.extract_strided_slice %12 {offsets = [0, 384], sizes = [16, 128], strides = [1, 1]} : vector<16x512xf32> to vector<16x128xf32>
    %28 = arith.negf %27 : vector<16x128xf32>
    %29 = math.exp %28 : vector<16x128xf32>
    %cst_15 = arith.constant 1.000000e+00 : f32
    %30 = vector.broadcast %cst_15 : f32 to vector<16x128xf32>
    %31 = arith.addf %30, %29 : vector<16x128xf32>
    %32 = arith.divf %30, %31 : vector<16x128xf32>
    %33 = arith.mulf %24, %8 : vector<16x128xf32>
    %34 = arith.mulf %18, %26 : vector<16x128xf32>
    %35 = arith.addf %33, %34 : vector<16x128xf32>
    %36 = math.tanh %35 : vector<16x128xf32>
    %37 = arith.mulf %32, %36 : vector<16x128xf32>
    %c0_16 = arith.constant 0 : index
    %c0_17 = arith.constant 0 : index
    %38 = vector.load %arg4[%c0_16, %c0_17] : memref<16x128xf32, #tpu.memory_space<vmem>>, vector<16x128xf32>
    tpu.vector_store %arg4[%c0_16, %c0_17], %37 {strides = array<i32>} : memref<16x128xf32, #tpu.memory_space<vmem>>, vector<16x128xf32>,
    %c0_18 = arith.constant 0 : index
    %c0_19 = arith.constant 0 : index
    %39 = vector.load %arg5[%c0_18, %c0_19] : memref<16x128xf32, #tpu.memory_space<vmem>>, vector<16x128xf32>
    tpu.vector_store %arg5[%c0_18, %c0_19], %35 {strides = array<i32>} : memref<16x128xf32, #tpu.memory_space<vmem>>, vector<16x128xf32>,
    %c1_i32 = arith.constant 1 : i32
    %40 = arith.index_cast %c1_i32 : i32 to index
    %c0_20 = arith.constant 0 : index
    %c0_21 = arith.constant 0 : index
    %41 = vector.load %arg1[%40, %c0_20, %c0_21] : memref<6x16x512xf32, #tpu.memory_space<vmem>>, vector<1x16x512xf32>
    %42 = vector.shape_cast %41 : vector<1x16x512xf32> to vector<16x512xf32>
    %c0_22 = arith.constant 0 : index
    %c0_23 = arith.constant 0 : index
    %43 = vector.load %arg4[%c0_22, %c0_23] : memref<16x128xf32, #tpu.memory_space<vmem>>, vector<16x128xf32>
    %c0_24 = arith.constant 0 : index
    %c0_25 = arith.constant 0 : index
    %44 = vector.load %arg5[%c0_24, %c0_25] : memref<16x128xf32, #tpu.memory_space<vmem>>, vector<16x128xf32>
    %45 = arith.truncf %43 : vector<16x128xf32> to vector<16x128xbf16>
    %c0_26 = arith.constant 0 : index
    %c0_27 = arith.constant 0 : index
    %46 = vector.load %arg2[%c0_26, %c0_27] : memref<128x512xbf16, #tpu.memory_space<vmem>>, vector<128x512xbf16>
    %cst_28 = arith.constant dense<0.000000e+00> : vector<16x512xf32>
    %47 = tpu.matmul %45, %46, %cst_28 {dimension_numbers = #tpu.dot_dimension_numbers<[1], [0], [0], [1], [0, 0, 1, 1], [], []>} : vector<16x128xbf16>, vector<128x512xbf16>, vector<16x512xf32> -> vector<16x512xf32>
    %48 = arith.addf %42, %47 : vector<16x512xf32>
    %49 = vector.extract_strided_slice %48 {offsets = [0, 0], sizes = [16, 128], strides = [1, 1]} : vector<16x512xf32> to vector<16x128xf32>
    %50 = arith.negf %49 : vector<16x128xf32>
    %51 = math.exp %50 : vector<16x128xf32>
    %cst_29 = arith.constant 1.000000e+00 : f32
    %52 = vector.broadcast %cst_29 : f32 to vector<16x128xf32>
    %53 = arith.addf %52, %51 : vector<16x128xf32>
    %54 = arith.divf %52, %53 : vector<16x128xf32>
    %55 = vector.extract_strided_slice %48 {offsets = [0, 128], sizes = [16, 128], strides = [1, 1]} : vector<16x512xf32> to vector<16x128xf32>
    %56 = arith.negf %55 : vector<16x128xf32>
    %57 = math.exp %56 : vector<16x128xf32>
    %cst_30 = arith.constant 1.000000e+00 : f32
    %58 = vector.broadcast %cst_30 : f32 to vector<16x128xf32>
    %59 = arith.addf %58, %57 : vector<16x128xf32>
    %60 = arith.divf %58, %59 : vector<16x128xf32>
    %61 = vector.extract_strided_slice %48 {offsets = [0, 256], sizes = [16, 128], strides = [1, 1]} : vector<16x512xf32> to vector<16x128xf32>
    %62 = math.tanh %61 : vector<16x128xf32>
    %63 = vector.extract_strided_slice %48 {offsets = [0, 384], sizes = [16, 128], strides = [1, 1]} : vector<16x512xf32> to vector<16x128xf32>
    %64 = arith.negf %63 : vector<16x128xf32>
    %65 = math.exp %64 : vector<16x128xf32>
    %cst_31 = arith.constant 1.000000e+00 : f32
    %66 = vector.broadcast %cst_31 : f32 to vector<16x128xf32>
    %67 = arith.addf %66, %65 : vector<16x128xf32>
    %68 = arith.divf %66, %67 : vector<16x128xf32>
    %69 = arith.mulf %60, %44 : vector<16x128xf32>
    %70 = arith.mulf %54, %62 : vector<16x128xf32>
    %71 = arith.addf %69, %70 : vector<16x128xf32>
    %72 = math.tanh %71 : vector<16x128xf32>
    %73 = arith.mulf %68, %72 : vector<16x128xf32>
    %c0_32 = arith.constant 0 : index
    %c0_33 = arith.constant 0 : index
    %74 = vector.load %arg4[%c0_32, %c0_33] : memref<16x128xf32, #tpu.memory_space<vmem>>, vector<16x128xf32>
    tpu.vector_store %arg4[%c0_32, %c0_33], %73 {strides = array<i32>} : memref<16x128xf32, #tpu.memory_space<vmem>>, vector<16x128xf32>,
    %c0_34 = arith.constant 0 : index
    %c0_35 = arith.constant 0 : index
    %75 = vector.load %arg5[%c0_34, %c0_35] : memref<16x128xf32, #tpu.memory_space<vmem>>, vector<16x128xf32>
    tpu.vector_store %arg5[%c0_34, %c0_35], %71 {strides = array<i32>} : memref<16x128xf32, #tpu.memory_space<vmem>>, vector<16x128xf32>,
    %c2_i32 = arith.constant 2 : i32
    %76 = arith.index_cast %c2_i32 : i32 to index
    %c0_36 = arith.constant 0 : index
    %c0_37 = arith.constant 0 : index
    %77 = vector.load %arg1[%76, %c0_36, %c0_37] : memref<6x16x512xf32, #tpu.memory_space<vmem>>, vector<1x16x512xf32>
    %78 = vector.shape_cast %77 : vector<1x16x512xf32> to vector<16x512xf32>
    %c0_38 = arith.constant 0 : index
    %c0_39 = arith.constant 0 : index
    %79 = vector.load %arg4[%c0_38, %c0_39] : memref<16x128xf32, #tpu.memory_space<vmem>>, vector<16x128xf32>
    %c0_40 = arith.constant 0 : index
    %c0_41 = arith.constant 0 : index
    %80 = vector.load %arg5[%c0_40, %c0_41] : memref<16x128xf32, #tpu.memory_space<vmem>>, vector<16x128xf32>
    %81 = arith.truncf %79 : vector<16x128xf32> to vector<16x128xbf16>
    %c0_42 = arith.constant 0 : index
    %c0_43 = arith.constant 0 : index
    %82 = vector.load %arg2[%c0_42, %c0_43] : memref<128x512xbf16, #tpu.memory_space<vmem>>, vector<128x512xbf16>
    %cst_44 = arith.constant dense<0.000000e+00> : vector<16x512xf32>
    %83 = tpu.matmul %81, %82, %cst_44 {dimension_numbers = #tpu.dot_dimension_numbers<[1], [0], [0], [1], [0, 0, 1, 1], [], []>} : vector<16x128xbf16>, vector<128x512xbf16>, vector<16x512xf32> -> vector<16x512xf32>
    %84 = arith.addf %78, %83 : vector<16x512xf32>
    %85 = vector.extract_strided_slice %84 {offsets = [0, 0], sizes = [16, 128], strides = [1, 1]} : vector<16x512xf32> to vector<16x128xf32>
    %86 = arith.negf %85 : vector<16x128xf32>
    %87 = math.exp %86 : vector<16x128xf32>
    %cst_45 = arith.constant 1.000000e+00 : f32
    %88 = vector.broadcast %cst_45 : f32 to vector<16x128xf32>
    %89 = arith.addf %88, %87 : vector<16x128xf32>
    %90 = arith.divf %88, %89 : vector<16x128xf32>
    %91 = vector.extract_strided_slice %84 {offsets = [0, 128], sizes = [16, 128], strides = [1, 1]} : vector<16x512xf32> to vector<16x128xf32>
    %92 = arith.negf %91 : vector<16x128xf32>
    %93 = math.exp %92 : vector<16x128xf32>
    %cst_46 = arith.constant 1.000000e+00 : f32
    %94 = vector.broadcast %cst_46 : f32 to vector<16x128xf32>
    %95 = arith.addf %94, %93 : vector<16x128xf32>
    %96 = arith.divf %94, %95 : vector<16x128xf32>
    %97 = vector.extract_strided_slice %84 {offsets = [0, 256], sizes = [16, 128], strides = [1, 1]} : vector<16x512xf32> to vector<16x128xf32>
    %98 = math.tanh %97 : vector<16x128xf32>
    %99 = vector.extract_strided_slice %84 {offsets = [0, 384], sizes = [16, 128], strides = [1, 1]} : vector<16x512xf32> to vector<16x128xf32>
    %100 = arith.negf %99 : vector<16x128xf32>
    %101 = math.exp %100 : vector<16x128xf32>
    %cst_47 = arith.constant 1.000000e+00 : f32
    %102 = vector.broadcast %cst_47 : f32 to vector<16x128xf32>
    %103 = arith.addf %102, %101 : vector<16x128xf32>
    %104 = arith.divf %102, %103 : vector<16x128xf32>
    %105 = arith.mulf %96, %80 : vector<16x128xf32>
    %106 = arith.mulf %90, %98 : vector<16x128xf32>
    %107 = arith.addf %105, %106 : vector<16x128xf32>
    %108 = math.tanh %107 : vector<16x128xf32>
    %109 = arith.mulf %104, %108 : vector<16x128xf32>
    %c0_48 = arith.constant 0 : index
    %c0_49 = arith.constant 0 : index
    %110 = vector.load %arg4[%c0_48, %c0_49] : memref<16x128xf32, #tpu.memory_space<vmem>>, vector<16x128xf32>
    tpu.vector_store %arg4[%c0_48, %c0_49], %109 {strides = array<i32>} : memref<16x128xf32, #tpu.memory_space<vmem>>, vector<16x128xf32>,
    %c0_50 = arith.constant 0 : index
    %c0_51 = arith.constant 0 : index
    %111 = vector.load %arg5[%c0_50, %c0_51] : memref<16x128xf32, #tpu.memory_space<vmem>>, vector<16x128xf32>
    tpu.vector_store %arg5[%c0_50, %c0_51], %107 {strides = array<i32>} : memref<16x128xf32, #tpu.memory_space<vmem>>, vector<16x128xf32>,
    %c3_i32 = arith.constant 3 : i32
    %112 = arith.index_cast %c3_i32 : i32 to index
    %c0_52 = arith.constant 0 : index
    %c0_53 = arith.constant 0 : index
    %113 = vector.load %arg1[%112, %c0_52, %c0_53] : memref<6x16x512xf32, #tpu.memory_space<vmem>>, vector<1x16x512xf32>
    %114 = vector.shape_cast %113 : vector<1x16x512xf32> to vector<16x512xf32>
    %c0_54 = arith.constant 0 : index
    %c0_55 = arith.constant 0 : index
    %115 = vector.load %arg4[%c0_54, %c0_55] : memref<16x128xf32, #tpu.memory_space<vmem>>, vector<16x128xf32>
    %c0_56 = arith.constant 0 : index
    %c0_57 = arith.constant 0 : index
    %116 = vector.load %arg5[%c0_56, %c0_57] : memref<16x128xf32, #tpu.memory_space<vmem>>, vector<16x128xf32>
    %117 = arith.truncf %115 : vector<16x128xf32> to vector<16x128xbf16>
    %c0_58 = arith.constant 0 : index
    %c0_59 = arith.constant 0 : index
    %118 = vector.load %arg2[%c0_58, %c0_59] : memref<128x512xbf16, #tpu.memory_space<vmem>>, vector<128x512xbf16>
    %cst_60 = arith.constant dense<0.000000e+00> : vector<16x512xf32>
    %119 = tpu.matmul %117, %118, %cst_60 {dimension_numbers = #tpu.dot_dimension_numbers<[1], [0], [0], [1], [0, 0, 1, 1], [], []>} : vector<16x128xbf16>, vector<128x512xbf16>, vector<16x512xf32> -> vector<16x512xf32>
    %120 = arith.addf %114, %119 : vector<16x512xf32>
    %121 = vector.extract_strided_slice %120 {offsets = [0, 0], sizes = [16, 128], strides = [1, 1]} : vector<16x512xf32> to vector<16x128xf32>
    %122 = arith.negf %121 : vector<16x128xf32>
    %123 = math.exp %122 : vector<16x128xf32>
    %cst_61 = arith.constant 1.000000e+00 : f32
    %124 = vector.broadcast %cst_61 : f32 to vector<16x128xf32>
    %125 = arith.addf %124, %123 : vector<16x128xf32>
    %126 = arith.divf %124, %125 : vector<16x128xf32>
    %127 = vector.extract_strided_slice %120 {offsets = [0, 128], sizes = [16, 128], strides = [1, 1]} : vector<16x512xf32> to vector<16x128xf32>
    %128 = arith.negf %127 : vector<16x128xf32>
    %129 = math.exp %128 : vector<16x128xf32>
    %cst_62 = arith.constant 1.000000e+00 : f32
    %130 = vector.broadcast %cst_62 : f32 to vector<16x128xf32>
    %131 = arith.addf %130, %129 : vector<16x128xf32>
    %132 = arith.divf %130, %131 : vector<16x128xf32>
    %133 = vector.extract_strided_slice %120 {offsets = [0, 256], sizes = [16, 128], strides = [1, 1]} : vector<16x512xf32> to vector<16x128xf32>
    %134 = math.tanh %133 : vector<16x128xf32>
    %135 = vector.extract_strided_slice %120 {offsets = [0, 384], sizes = [16, 128], strides = [1, 1]} : vector<16x512xf32> to vector<16x128xf32>
    %136 = arith.negf %135 : vector<16x128xf32>
    %137 = math.exp %136 : vector<16x128xf32>
    %cst_63 = arith.constant 1.000000e+00 : f32
    %138 = vector.broadcast %cst_63 : f32 to vector<16x128xf32>
    %139 = arith.addf %138, %137 : vector<16x128xf32>
    %140 = arith.divf %138, %139 : vector<16x128xf32>
    %141 = arith.mulf %132, %116 : vector<16x128xf32>
    %142 = arith.mulf %126, %134 : vector<16x128xf32>
    %143 = arith.addf %141, %142 : vector<16x128xf32>
    %144 = math.tanh %143 : vector<16x128xf32>
    %145 = arith.mulf %140, %144 : vector<16x128xf32>
    %c0_64 = arith.constant 0 : index
    %c0_65 = arith.constant 0 : index
    %146 = vector.load %arg4[%c0_64, %c0_65] : memref<16x128xf32, #tpu.memory_space<vmem>>, vector<16x128xf32>
    tpu.vector_store %arg4[%c0_64, %c0_65], %145 {strides = array<i32>} : memref<16x128xf32, #tpu.memory_space<vmem>>, vector<16x128xf32>,
    %c0_66 = arith.constant 0 : index
    %c0_67 = arith.constant 0 : index
    %147 = vector.load %arg5[%c0_66, %c0_67] : memref<16x128xf32, #tpu.memory_space<vmem>>, vector<16x128xf32>
    tpu.vector_store %arg5[%c0_66, %c0_67], %143 {strides = array<i32>} : memref<16x128xf32, #tpu.memory_space<vmem>>, vector<16x128xf32>,
    %c4_i32 = arith.constant 4 : i32
    %148 = arith.index_cast %c4_i32 : i32 to index
    %c0_68 = arith.constant 0 : index
    %c0_69 = arith.constant 0 : index
    %149 = vector.load %arg1[%148, %c0_68, %c0_69] : memref<6x16x512xf32, #tpu.memory_space<vmem>>, vector<1x16x512xf32>
    %150 = vector.shape_cast %149 : vector<1x16x512xf32> to vector<16x512xf32>
    %c0_70 = arith.constant 0 : index
    %c0_71 = arith.constant 0 : index
    %151 = vector.load %arg4[%c0_70, %c0_71] : memref<16x128xf32, #tpu.memory_space<vmem>>, vector<16x128xf32>
    %c0_72 = arith.constant 0 : index
    %c0_73 = arith.constant 0 : index
    %152 = vector.load %arg5[%c0_72, %c0_73] : memref<16x128xf32, #tpu.memory_space<vmem>>, vector<16x128xf32>
    %153 = arith.truncf %151 : vector<16x128xf32> to vector<16x128xbf16>
    %c0_74 = arith.constant 0 : index
    %c0_75 = arith.constant 0 : index
    %154 = vector.load %arg2[%c0_74, %c0_75] : memref<128x512xbf16, #tpu.memory_space<vmem>>, vector<128x512xbf16>
    %cst_76 = arith.constant dense<0.000000e+00> : vector<16x512xf32>
    %155 = tpu.matmul %153, %154, %cst_76 {dimension_numbers = #tpu.dot_dimension_numbers<[1], [0], [0], [1], [0, 0, 1, 1], [], []>} : vector<16x128xbf16>, vector<128x512xbf16>, vector<16x512xf32> -> vector<16x512xf32>
    %156 = arith.addf %150, %155 : vector<16x512xf32>
    %157 = vector.extract_strided_slice %156 {offsets = [0, 0], sizes = [16, 128], strides = [1, 1]} : vector<16x512xf32> to vector<16x128xf32>
    %158 = arith.negf %157 : vector<16x128xf32>
    %159 = math.exp %158 : vector<16x128xf32>
    %cst_77 = arith.constant 1.000000e+00 : f32
    %160 = vector.broadcast %cst_77 : f32 to vector<16x128xf32>
    %161 = arith.addf %160, %159 : vector<16x128xf32>
    %162 = arith.divf %160, %161 : vector<16x128xf32>
    %163 = vector.extract_strided_slice %156 {offsets = [0, 128], sizes = [16, 128], strides = [1, 1]} : vector<16x512xf32> to vector<16x128xf32>
    %164 = arith.negf %163 : vector<16x128xf32>
    %165 = math.exp %164 : vector<16x128xf32>
    %cst_78 = arith.constant 1.000000e+00 : f32
    %166 = vector.broadcast %cst_78 : f32 to vector<16x128xf32>
    %167 = arith.addf %166, %165 : vector<16x128xf32>
    %168 = arith.divf %166, %167 : vector<16x128xf32>
    %169 = vector.extract_strided_slice %156 {offsets = [0, 256], sizes = [16, 128], strides = [1, 1]} : vector<16x512xf32> to vector<16x128xf32>
    %170 = math.tanh %169 : vector<16x128xf32>
    %171 = vector.extract_strided_slice %156 {offsets = [0, 384], sizes = [16, 128], strides = [1, 1]} : vector<16x512xf32> to vector<16x128xf32>
    %172 = arith.negf %171 : vector<16x128xf32>
    %173 = math.exp %172 : vector<16x128xf32>
    %cst_79 = arith.constant 1.000000e+00 : f32
    %174 = vector.broadcast %cst_79 : f32 to vector<16x128xf32>
    %175 = arith.addf %174, %173 : vector<16x128xf32>
    %176 = arith.divf %174, %175 : vector<16x128xf32>
    %177 = arith.mulf %168, %152 : vector<16x128xf32>
    %178 = arith.mulf %162, %170 : vector<16x128xf32>
    %179 = arith.addf %177, %178 : vector<16x128xf32>
    %180 = math.tanh %179 : vector<16x128xf32>
    %181 = arith.mulf %176, %180 : vector<16x128xf32>
    %c0_80 = arith.constant 0 : index
    %c0_81 = arith.constant 0 : index
    %182 = vector.load %arg4[%c0_80, %c0_81] : memref<16x128xf32, #tpu.memory_space<vmem>>, vector<16x128xf32>
    tpu.vector_store %arg4[%c0_80, %c0_81], %181 {strides = array<i32>} : memref<16x128xf32, #tpu.memory_space<vmem>>, vector<16x128xf32>,
    %c0_82 = arith.constant 0 : index
    %c0_83 = arith.constant 0 : index
    %183 = vector.load %arg5[%c0_82, %c0_83] : memref<16x128xf32, #tpu.memory_space<vmem>>, vector<16x128xf32>
    tpu.vector_store %arg5[%c0_82, %c0_83], %179 {strides = array<i32>} : memref<16x128xf32, #tpu.memory_space<vmem>>, vector<16x128xf32>,
    %c5_i32 = arith.constant 5 : i32
    %184 = arith.index_cast %c5_i32 : i32 to index
    %c0_84 = arith.constant 0 : index
    %c0_85 = arith.constant 0 : index
    %185 = vector.load %arg1[%184, %c0_84, %c0_85] : memref<6x16x512xf32, #tpu.memory_space<vmem>>, vector<1x16x512xf32>
    %186 = vector.shape_cast %185 : vector<1x16x512xf32> to vector<16x512xf32>
    %c0_86 = arith.constant 0 : index
    %c0_87 = arith.constant 0 : index
    %187 = vector.load %arg4[%c0_86, %c0_87] : memref<16x128xf32, #tpu.memory_space<vmem>>, vector<16x128xf32>
    %c0_88 = arith.constant 0 : index
    %c0_89 = arith.constant 0 : index
    %188 = vector.load %arg5[%c0_88, %c0_89] : memref<16x128xf32, #tpu.memory_space<vmem>>, vector<16x128xf32>
    %189 = arith.truncf %187 : vector<16x128xf32> to vector<16x128xbf16>
    %c0_90 = arith.constant 0 : index
    %c0_91 = arith.constant 0 : index
    %190 = vector.load %arg2[%c0_90, %c0_91] : memref<128x512xbf16, #tpu.memory_space<vmem>>, vector<128x512xbf16>
    %cst_92 = arith.constant dense<0.000000e+00> : vector<16x512xf32>
    %191 = tpu.matmul %189, %190, %cst_92 {dimension_numbers = #tpu.dot_dimension_numbers<[1], [0], [0], [1], [0, 0, 1, 1], [], []>} : vector<16x128xbf16>, vector<128x512xbf16>, vector<16x512xf32> -> vector<16x512xf32>
    %192 = arith.addf %186, %191 : vector<16x512xf32>
    %193 = vector.extract_strided_slice %192 {offsets = [0, 0], sizes = [16, 128], strides = [1, 1]} : vector<16x512xf32> to vector<16x128xf32>
    %194 = arith.negf %193 : vector<16x128xf32>
    %195 = math.exp %194 : vector<16x128xf32>
    %cst_93 = arith.constant 1.000000e+00 : f32
    %196 = vector.broadcast %cst_93 : f32 to vector<16x128xf32>
    %197 = arith.addf %196, %195 : vector<16x128xf32>
    %198 = arith.divf %196, %197 : vector<16x128xf32>
    %199 = vector.extract_strided_slice %192 {offsets = [0, 128], sizes = [16, 128], strides = [1, 1]} : vector<16x512xf32> to vector<16x128xf32>
    %200 = arith.negf %199 : vector<16x128xf32>
    %201 = math.exp %200 : vector<16x128xf32>
    %cst_94 = arith.constant 1.000000e+00 : f32
    %202 = vector.broadcast %cst_94 : f32 to vector<16x128xf32>
    %203 = arith.addf %202, %201 : vector<16x128xf32>
    %204 = arith.divf %202, %203 : vector<16x128xf32>
    %205 = vector.extract_strided_slice %192 {offsets = [0, 256], sizes = [16, 128], strides = [1, 1]} : vector<16x512xf32> to vector<16x128xf32>
    %206 = math.tanh %205 : vector<16x128xf32>
    %207 = vector.extract_strided_slice %192 {offsets = [0, 384], sizes = [16, 128], strides = [1, 1]} : vector<16x512xf32> to vector<16x128xf32>
    %208 = arith.negf %207 : vector<16x128xf32>
    %209 = math.exp %208 : vector<16x128xf32>
    %cst_95 = arith.constant 1.000000e+00 : f32
    %210 = vector.broadcast %cst_95 : f32 to vector<16x128xf32>
    %211 = arith.addf %210, %209 : vector<16x128xf32>
    %212 = arith.divf %210, %211 : vector<16x128xf32>
    %213 = arith.mulf %204, %188 : vector<16x128xf32>
    %214 = arith.mulf %198, %206 : vector<16x128xf32>
    %215 = arith.addf %213, %214 : vector<16x128xf32>
    %216 = math.tanh %215 : vector<16x128xf32>
    %217 = arith.mulf %212, %216 : vector<16x128xf32>
    %c0_96 = arith.constant 0 : index
    %c0_97 = arith.constant 0 : index
    %218 = vector.load %arg4[%c0_96, %c0_97] : memref<16x128xf32, #tpu.memory_space<vmem>>, vector<16x128xf32>
    tpu.vector_store %arg4[%c0_96, %c0_97], %217 {strides = array<i32>} : memref<16x128xf32, #tpu.memory_space<vmem>>, vector<16x128xf32>,
    %c0_98 = arith.constant 0 : index
    %c0_99 = arith.constant 0 : index
    %219 = vector.load %arg5[%c0_98, %c0_99] : memref<16x128xf32, #tpu.memory_space<vmem>>, vector<16x128xf32>
    tpu.vector_store %arg5[%c0_98, %c0_99], %215 {strides = array<i32>} : memref<16x128xf32, #tpu.memory_space<vmem>>, vector<16x128xf32>,
    %c6_i32 = arith.constant 6 : i32
    %c0_100 = arith.constant 0 : index
    %c0_101 = arith.constant 0 : index
    %220 = vector.load %arg4[%c0_100, %c0_101] : memref<16x128xf32, #tpu.memory_space<vmem>>, vector<16x128xf32>
    %c0_102 = arith.constant 0 : index
    %c0_103 = arith.constant 0 : index
    %221 = vector.load %arg3[%c0_102, %c0_103] : memref<16x128xf32, #tpu.memory_space<vmem>>, vector<16x128xf32>
    tpu.vector_store %arg3[%c0_102, %c0_103], %220 {strides = array<i32>} : memref<16x128xf32, #tpu.memory_space<vmem>>, vector<16x128xf32>,
    return
  }
  func.func @transform_0(%arg0: i32) -> (i32, i32, i32) {
    %c0_i32 = arith.constant 0 : i32
    %c0_i32_0 = arith.constant 0 : i32
    %c0_i32_1 = arith.constant 0 : i32
    return %c0_i32, %arg0, %c0_i32_0 : i32, i32, i32
  }
  func.func @transform_1(%arg0: i32) -> (i32, i32) {
    %c0_i32 = arith.constant 0 : i32
    %c0_i32_0 = arith.constant 0 : i32
    %c0_i32_1 = arith.constant 0 : i32
    return %c0_i32, %c0_i32_0 : i32, i32
  }
  func.func @transform_2(%arg0: i32) -> (i32, i32) {
    %c0_i32 = arith.constant 0 : i32
    %c0_i32_0 = arith.constant 0 : i32
    return %arg0, %c0_i32 : i32, i32
  }
}

module attributes {stable_mosaic.version = 11 : i64} {
  func.func @kernel(%arg0: i32, %arg1: memref<1x8x1024xf32, #tpu.memory_space<vmem>>, %arg2: memref<1x8x1024xf32, #tpu.memory_space<vmem>>, %arg3: memref<256x1024xbf16, #tpu.memory_space<vmem>>, %arg4: memref<256x1024xbf16, #tpu.memory_space<vmem>>, %arg5: memref<8x1xi32, #tpu.memory_space<vmem>>, %arg6: memref<512x128xf32, #tpu.memory_space<vmem>>, %arg7: memref<1x128xf32, #tpu.memory_space<vmem>>, %arg8: memref<64x1xi32, #tpu.memory_space<vmem>>, %arg9: memref<1x1xf32, #tpu.memory_space<vmem>>, %arg10: memref<64x1xi32, #tpu.memory_space<vmem>>, %arg11: memref<64x512xf32, #tpu.memory_space<vmem>>, %arg12: memref<8x256xf32, #tpu.memory_space<vmem>>, %arg13: memref<8x256xf32, #tpu.memory_space<vmem>>, %arg14: memref<8x256xf32, #tpu.memory_space<vmem>>, %arg15: memref<8x256xf32, #tpu.memory_space<vmem>>) attributes {dimension_semantics = [#tpu.dimension_semantics<arbitrary>], iteration_bounds = array<i64: 8>, scalar_prefetch = 0 : i64, scratch_operands = 5 : i64, tpu.core_type = #tpu.core_type<tc>, window_params = [{transform_indices = @transform_0, window_bounds = array<i64: 1, 8, 1024>}, {transform_indices = @transform_1, window_bounds = array<i64: 1, 8, 1024>}, {pipeline_mode = #tpu.pipeline_mode<synchronous>, transform_indices = @transform_2, window_bounds = array<i64: 256, 1024>}, {pipeline_mode = #tpu.pipeline_mode<synchronous>, transform_indices = @transform_3, window_bounds = array<i64: 256, 1024>}, {pipeline_mode = #tpu.pipeline_mode<synchronous>, transform_indices = @transform_4, window_bounds = array<i64: 8, 1>}, {pipeline_mode = #tpu.pipeline_mode<synchronous>, transform_indices = @transform_5, window_bounds = array<i64: 512, 128>}, {pipeline_mode = #tpu.pipeline_mode<synchronous>, transform_indices = @transform_6, window_bounds = array<i64: 1, 128>}, {pipeline_mode = #tpu.pipeline_mode<synchronous>, transform_indices = @transform_7, window_bounds = array<i64: 64, 1>}, {pipeline_mode = #tpu.pipeline_mode<synchronous>, transform_indices = @transform_8, window_bounds = array<i64: 1, 1>}, {pipeline_mode = #tpu.pipeline_mode<synchronous>, transform_indices = @transform_9, window_bounds = array<i64: 64, 1>}]} {
    %c0_i32 = arith.constant 0 : i32
    %0 = arith.cmpi eq, %arg0, %c0_i32 : i32
    %1 = arith.extui %0 : i1 to i32
    %c0_i32_0 = arith.constant 0 : i32
    %2 = arith.cmpi ne, %1, %c0_i32_0 : i32
    scf.if %2 {
      %cst_43 = arith.constant 0.000000e+00 : f32
      %126 = vector.broadcast %cst_43 : f32 to vector<8x256xf32>
      %c0_44 = arith.constant 0 : index
      %c0_45 = arith.constant 0 : index
      %127 = vector.load %arg12[%c0_44, %c0_45] : memref<8x256xf32, #tpu.memory_space<vmem>>, vector<8x256xf32>
      tpu.vector_store %arg12[%c0_44, %c0_45], %126 {strides = array<i32>} : memref<8x256xf32, #tpu.memory_space<vmem>>, vector<8x256xf32>,
      %cst_46 = arith.constant 0.000000e+00 : f32
      %128 = vector.broadcast %cst_46 : f32 to vector<8x256xf32>
      %c0_47 = arith.constant 0 : index
      %c0_48 = arith.constant 0 : index
      %129 = vector.load %arg13[%c0_47, %c0_48] : memref<8x256xf32, #tpu.memory_space<vmem>>, vector<8x256xf32>
      tpu.vector_store %arg13[%c0_47, %c0_48], %128 {strides = array<i32>} : memref<8x256xf32, #tpu.memory_space<vmem>>, vector<8x256xf32>,
      %cst_49 = arith.constant 0.000000e+00 : f32
      %130 = vector.broadcast %cst_49 : f32 to vector<8x256xf32>
      %c0_50 = arith.constant 0 : index
      %c0_51 = arith.constant 0 : index
      %131 = vector.load %arg14[%c0_50, %c0_51] : memref<8x256xf32, #tpu.memory_space<vmem>>, vector<8x256xf32>
      tpu.vector_store %arg14[%c0_50, %c0_51], %130 {strides = array<i32>} : memref<8x256xf32, #tpu.memory_space<vmem>>, vector<8x256xf32>,
      %cst_52 = arith.constant 0.000000e+00 : f32
      %132 = vector.broadcast %cst_52 : f32 to vector<8x256xf32>
      %c0_53 = arith.constant 0 : index
      %c0_54 = arith.constant 0 : index
      %133 = vector.load %arg15[%c0_53, %c0_54] : memref<8x256xf32, #tpu.memory_space<vmem>>, vector<8x256xf32>
      tpu.vector_store %arg15[%c0_53, %c0_54], %132 {strides = array<i32>} : memref<8x256xf32, #tpu.memory_space<vmem>>, vector<8x256xf32>,
    } else {
    }
    %c0 = arith.constant 0 : index
    %c0_1 = arith.constant 0 : index
    %3 = vector.load %arg5[%c0, %c0_1] : memref<8x1xi32, #tpu.memory_space<vmem>>, vector<8x1xi32>
    %4 = vector.broadcast %arg0 : i32 to vector<8x1xi32>
    %5 = arith.cmpi slt, %4, %3 : vector<8x1xi32>
    %6 = arith.extui %5 : vector<8x1xi1> to vector<8x1xi32>
    %7 = arith.sitofp %6 : vector<8x1xi32> to vector<8x1xf32>
    %c0_2 = arith.constant 0 : index
    %c0_3 = arith.constant 0 : index
    %8 = vector.load %arg12[%c0_2, %c0_3] : memref<8x256xf32, #tpu.memory_space<vmem>>, vector<8x256xf32>
    %c0_4 = arith.constant 0 : index
    %c0_5 = arith.constant 0 : index
    %9 = vector.load %arg13[%c0_4, %c0_5] : memref<8x256xf32, #tpu.memory_space<vmem>>, vector<8x256xf32>
    %c0_6 = arith.constant 0 : index
    %c0_7 = arith.constant 0 : index
    %c0_8 = arith.constant 0 : index
    %10 = vector.load %arg1[%c0_6, %c0_7, %c0_8] : memref<1x8x1024xf32, #tpu.memory_space<vmem>>, vector<1x8x1024xf32>
    %11 = vector.shape_cast %10 : vector<1x8x1024xf32> to vector<8x1024xf32>
    %12 = arith.truncf %8 : vector<8x256xf32> to vector<8x256xbf16>
    %c0_9 = arith.constant 0 : index
    %c0_10 = arith.constant 0 : index
    %13 = vector.load %arg3[%c0_9, %c0_10] : memref<256x1024xbf16, #tpu.memory_space<vmem>>, vector<256x1024xbf16>
    %cst = arith.constant dense<0.000000e+00> : vector<8x1024xf32>
    %14 = tpu.matmul %12, %13, %cst {dimension_numbers = #tpu.dot_dimension_numbers<[1], [0], [0], [1], [0, 0, 1, 1], [], []>} : vector<8x256xbf16>, vector<256x1024xbf16>, vector<8x1024xf32> -> vector<8x1024xf32>
    %15 = arith.addf %11, %14 : vector<8x1024xf32>
    %16 = vector.extract_strided_slice %15 {offsets = [0, 0], sizes = [8, 256], strides = [1, 1]} : vector<8x1024xf32> to vector<8x256xf32>
    %17 = arith.negf %16 : vector<8x256xf32>
    %18 = math.exp %17 : vector<8x256xf32>
    %cst_11 = arith.constant 1.000000e+00 : f32
    %19 = vector.broadcast %cst_11 : f32 to vector<8x256xf32>
    %20 = arith.addf %19, %18 : vector<8x256xf32>
    %21 = arith.divf %19, %20 : vector<8x256xf32>
    %22 = vector.extract_strided_slice %15 {offsets = [0, 256], sizes = [8, 256], strides = [1, 1]} : vector<8x1024xf32> to vector<8x256xf32>
    %23 = arith.negf %22 : vector<8x256xf32>
    %24 = math.exp %23 : vector<8x256xf32>
    %cst_12 = arith.constant 1.000000e+00 : f32
    %25 = vector.broadcast %cst_12 : f32 to vector<8x256xf32>
    %26 = arith.addf %25, %24 : vector<8x256xf32>
    %27 = arith.divf %25, %26 : vector<8x256xf32>
    %28 = vector.extract_strided_slice %15 {offsets = [0, 512], sizes = [8, 256], strides = [1, 1]} : vector<8x1024xf32> to vector<8x256xf32>
    %29 = math.tanh %28 : vector<8x256xf32>
    %30 = vector.extract_strided_slice %15 {offsets = [0, 768], sizes = [8, 256], strides = [1, 1]} : vector<8x1024xf32> to vector<8x256xf32>
    %31 = arith.negf %30 : vector<8x256xf32>
    %32 = math.exp %31 : vector<8x256xf32>
    %cst_13 = arith.constant 1.000000e+00 : f32
    %33 = vector.broadcast %cst_13 : f32 to vector<8x256xf32>
    %34 = arith.addf %33, %32 : vector<8x256xf32>
    %35 = arith.divf %33, %34 : vector<8x256xf32>
    %36 = arith.mulf %27, %9 : vector<8x256xf32>
    %37 = arith.mulf %21, %29 : vector<8x256xf32>
    %38 = arith.addf %36, %37 : vector<8x256xf32>
    %39 = math.tanh %38 : vector<8x256xf32>
    %40 = arith.mulf %35, %39 : vector<8x256xf32>
    %41 = vector.broadcast %7 : vector<8x1xf32> to vector<8x256xf32>
    %42 = arith.mulf %41, %40 : vector<8x256xf32>
    %cst_14 = arith.constant 1.000000e+00 : f32
    %43 = vector.broadcast %cst_14 : f32 to vector<8x1xf32>
    %44 = arith.subf %43, %7 : vector<8x1xf32>
    %45 = vector.broadcast %44 : vector<8x1xf32> to vector<8x256xf32>
    %46 = arith.mulf %45, %8 : vector<8x256xf32>
    %47 = arith.addf %42, %46 : vector<8x256xf32>
    %c0_15 = arith.constant 0 : index
    %c0_16 = arith.constant 0 : index
    %48 = vector.load %arg12[%c0_15, %c0_16] : memref<8x256xf32, #tpu.memory_space<vmem>>, vector<8x256xf32>
    tpu.vector_store %arg12[%c0_15, %c0_16], %47 {strides = array<i32>} : memref<8x256xf32, #tpu.memory_space<vmem>>, vector<8x256xf32>,
    %49 = vector.broadcast %7 : vector<8x1xf32> to vector<8x256xf32>
    %50 = arith.mulf %49, %38 : vector<8x256xf32>
    %cst_17 = arith.constant 1.000000e+00 : f32
    %51 = vector.broadcast %cst_17 : f32 to vector<8x1xf32>
    %52 = arith.subf %51, %7 : vector<8x1xf32>
    %53 = vector.broadcast %52 : vector<8x1xf32> to vector<8x256xf32>
    %54 = arith.mulf %53, %9 : vector<8x256xf32>
    %55 = arith.addf %50, %54 : vector<8x256xf32>
    %c0_18 = arith.constant 0 : index
    %c0_19 = arith.constant 0 : index
    %56 = vector.load %arg13[%c0_18, %c0_19] : memref<8x256xf32, #tpu.memory_space<vmem>>, vector<8x256xf32>
    tpu.vector_store %arg13[%c0_18, %c0_19], %55 {strides = array<i32>} : memref<8x256xf32, #tpu.memory_space<vmem>>, vector<8x256xf32>,
    %c8_i32 = arith.constant 8 : i32
    %57 = arith.muli %arg0, %c8_i32 : i32
    %58 = tpu.assume_multiple %57, 8 : i32
    %59 = vector.broadcast %7 : vector<8x1xf32> to vector<8x256xf32>
    %60 = arith.mulf %59, %40 : vector<8x256xf32>
    %61 = arith.index_cast %58 : i32 to index
    %c0_20 = arith.constant 0 : index
    %62 = vector.load %arg11[%61, %c0_20] : memref<64x512xf32, #tpu.memory_space<vmem>>, vector<8x256xf32>
    tpu.vector_store %arg11[%61, %c0_20], %60 {strides = array<i32>} : memref<64x512xf32, #tpu.memory_space<vmem>>, vector<8x256xf32>,
    %c7_i32 = arith.constant 7 : i32
    %63 = arith.subi %c7_i32, %arg0 : i32
    %64 = vector.broadcast %63 : i32 to vector<8x1xi32>
    %65 = arith.cmpi slt, %64, %3 : vector<8x1xi32>
    %66 = arith.extui %65 : vector<8x1xi1> to vector<8x1xi32>
    %67 = arith.sitofp %66 : vector<8x1xi32> to vector<8x1xf32>
    %c0_21 = arith.constant 0 : index
    %c0_22 = arith.constant 0 : index
    %68 = vector.load %arg14[%c0_21, %c0_22] : memref<8x256xf32, #tpu.memory_space<vmem>>, vector<8x256xf32>
    %c0_23 = arith.constant 0 : index
    %c0_24 = arith.constant 0 : index
    %69 = vector.load %arg15[%c0_23, %c0_24] : memref<8x256xf32, #tpu.memory_space<vmem>>, vector<8x256xf32>
    %c0_25 = arith.constant 0 : index
    %c0_26 = arith.constant 0 : index
    %c0_27 = arith.constant 0 : index
    %70 = vector.load %arg2[%c0_25, %c0_26, %c0_27] : memref<1x8x1024xf32, #tpu.memory_space<vmem>>, vector<1x8x1024xf32>
    %71 = vector.shape_cast %70 : vector<1x8x1024xf32> to vector<8x1024xf32>
    %72 = arith.truncf %68 : vector<8x256xf32> to vector<8x256xbf16>
    %c0_28 = arith.constant 0 : index
    %c0_29 = arith.constant 0 : index
    %73 = vector.load %arg4[%c0_28, %c0_29] : memref<256x1024xbf16, #tpu.memory_space<vmem>>, vector<256x1024xbf16>
    %cst_30 = arith.constant dense<0.000000e+00> : vector<8x1024xf32>
    %74 = tpu.matmul %72, %73, %cst_30 {dimension_numbers = #tpu.dot_dimension_numbers<[1], [0], [0], [1], [0, 0, 1, 1], [], []>} : vector<8x256xbf16>, vector<256x1024xbf16>, vector<8x1024xf32> -> vector<8x1024xf32>
    %75 = arith.addf %71, %74 : vector<8x1024xf32>
    %76 = vector.extract_strided_slice %75 {offsets = [0, 0], sizes = [8, 256], strides = [1, 1]} : vector<8x1024xf32> to vector<8x256xf32>
    %77 = arith.negf %76 : vector<8x256xf32>
    %78 = math.exp %77 : vector<8x256xf32>
    %cst_31 = arith.constant 1.000000e+00 : f32
    %79 = vector.broadcast %cst_31 : f32 to vector<8x256xf32>
    %80 = arith.addf %79, %78 : vector<8x256xf32>
    %81 = arith.divf %79, %80 : vector<8x256xf32>
    %82 = vector.extract_strided_slice %75 {offsets = [0, 256], sizes = [8, 256], strides = [1, 1]} : vector<8x1024xf32> to vector<8x256xf32>
    %83 = arith.negf %82 : vector<8x256xf32>
    %84 = math.exp %83 : vector<8x256xf32>
    %cst_32 = arith.constant 1.000000e+00 : f32
    %85 = vector.broadcast %cst_32 : f32 to vector<8x256xf32>
    %86 = arith.addf %85, %84 : vector<8x256xf32>
    %87 = arith.divf %85, %86 : vector<8x256xf32>
    %88 = vector.extract_strided_slice %75 {offsets = [0, 512], sizes = [8, 256], strides = [1, 1]} : vector<8x1024xf32> to vector<8x256xf32>
    %89 = math.tanh %88 : vector<8x256xf32>
    %90 = vector.extract_strided_slice %75 {offsets = [0, 768], sizes = [8, 256], strides = [1, 1]} : vector<8x1024xf32> to vector<8x256xf32>
    %91 = arith.negf %90 : vector<8x256xf32>
    %92 = math.exp %91 : vector<8x256xf32>
    %cst_33 = arith.constant 1.000000e+00 : f32
    %93 = vector.broadcast %cst_33 : f32 to vector<8x256xf32>
    %94 = arith.addf %93, %92 : vector<8x256xf32>
    %95 = arith.divf %93, %94 : vector<8x256xf32>
    %96 = arith.mulf %87, %69 : vector<8x256xf32>
    %97 = arith.mulf %81, %89 : vector<8x256xf32>
    %98 = arith.addf %96, %97 : vector<8x256xf32>
    %99 = math.tanh %98 : vector<8x256xf32>
    %100 = arith.mulf %95, %99 : vector<8x256xf32>
    %101 = vector.broadcast %67 : vector<8x1xf32> to vector<8x256xf32>
    %102 = arith.mulf %101, %100 : vector<8x256xf32>
    %cst_34 = arith.constant 1.000000e+00 : f32
    %103 = vector.broadcast %cst_34 : f32 to vector<8x1xf32>
    %104 = arith.subf %103, %67 : vector<8x1xf32>
    %105 = vector.broadcast %104 : vector<8x1xf32> to vector<8x256xf32>
    %106 = arith.mulf %105, %68 : vector<8x256xf32>
    %107 = arith.addf %102, %106 : vector<8x256xf32>
    %c0_35 = arith.constant 0 : index
    %c0_36 = arith.constant 0 : index
    %108 = vector.load %arg14[%c0_35, %c0_36] : memref<8x256xf32, #tpu.memory_space<vmem>>, vector<8x256xf32>
    tpu.vector_store %arg14[%c0_35, %c0_36], %107 {strides = array<i32>} : memref<8x256xf32, #tpu.memory_space<vmem>>, vector<8x256xf32>,
    %109 = vector.broadcast %67 : vector<8x1xf32> to vector<8x256xf32>
    %110 = arith.mulf %109, %98 : vector<8x256xf32>
    %cst_37 = arith.constant 1.000000e+00 : f32
    %111 = vector.broadcast %cst_37 : f32 to vector<8x1xf32>
    %112 = arith.subf %111, %67 : vector<8x1xf32>
    %113 = vector.broadcast %112 : vector<8x1xf32> to vector<8x256xf32>
    %114 = arith.mulf %113, %69 : vector<8x256xf32>
    %115 = arith.addf %110, %114 : vector<8x256xf32>
    %c0_38 = arith.constant 0 : index
    %c0_39 = arith.constant 0 : index
    %116 = vector.load %arg15[%c0_38, %c0_39] : memref<8x256xf32, #tpu.memory_space<vmem>>, vector<8x256xf32>
    tpu.vector_store %arg15[%c0_38, %c0_39], %115 {strides = array<i32>} : memref<8x256xf32, #tpu.memory_space<vmem>>, vector<8x256xf32>,
    %c8_i32_40 = arith.constant 8 : i32
    %117 = arith.muli %63, %c8_i32_40 : i32
    %118 = tpu.assume_multiple %117, 8 : i32
    %119 = vector.broadcast %67 : vector<8x1xf32> to vector<8x256xf32>
    %120 = arith.mulf %119, %100 : vector<8x256xf32>
    %121 = arith.index_cast %118 : i32 to index
    %c256 = arith.constant 256 : index
    %122 = vector.load %arg11[%121, %c256] : memref<64x512xf32, #tpu.memory_space<vmem>>, vector<8x256xf32>
    tpu.vector_store %arg11[%121, %c256], %120 {strides = array<i32>} : memref<64x512xf32, #tpu.memory_space<vmem>>, vector<8x256xf32>,
    %c7_i32_41 = arith.constant 7 : i32
    %123 = arith.cmpi eq, %arg0, %c7_i32_41 : i32
    %124 = arith.extui %123 : i1 to i32
    %c0_i32_42 = arith.constant 0 : i32
    %125 = arith.cmpi ne, %124, %c0_i32_42 : i32
    scf.if %125 {
      %cst_43 = arith.constant 0.000000e+00 : f32
      %c0_i32_44 = arith.constant 0 : i32
      %c64_i32 = arith.constant 64 : i32
      %126 = arith.muli %c0_i32_44, %c64_i32 : i32
      %127 = tpu.assume_multiple %126, 64 : i32
      %128 = arith.index_cast %127 : i32 to index
      %c0_45 = arith.constant 0 : index
      %129 = vector.load %arg11[%128, %c0_45] : memref<64x512xf32, #tpu.memory_space<vmem>>, vector<64x512xf32>
      %c0_46 = arith.constant 0 : index
      %c0_47 = arith.constant 0 : index
      %130 = vector.load %arg6[%c0_46, %c0_47] : memref<512x128xf32, #tpu.memory_space<vmem>>, vector<512x128xf32>
      %cst_48 = arith.constant dense<0.000000e+00> : vector<64x128xf32>
      %131 = tpu.matmul %129, %130, %cst_48 {dimension_numbers = #tpu.dot_dimension_numbers<[1], [0], [0], [1], [0, 0, 1, 1], [], []>} : vector<64x512xf32>, vector<512x128xf32>, vector<64x128xf32> -> vector<64x128xf32>
      %c0_49 = arith.constant 0 : index
      %c0_50 = arith.constant 0 : index
      %132 = vector.load %arg7[%c0_49, %c0_50] : memref<1x128xf32, #tpu.memory_space<vmem>>, vector<1x128xf32>
      %133 = vector.broadcast %132 : vector<1x128xf32> to vector<64x128xf32>
      %134 = arith.addf %131, %133 : vector<64x128xf32>
      %cst_51 = arith.constant dense<0xFF800000> : vector<64xf32>
      %135 = vector.multi_reduction <maximumf>, %134, %cst_51 [1] : vector<64x128xf32> to vector<64xf32>
      %136 = vector.shape_cast %135 : vector<64xf32> to vector<64x1xf32>
      %137 = vector.broadcast %136 : vector<64x1xf32> to vector<64x128xf32>
      %138 = arith.subf %134, %137 : vector<64x128xf32>
      %139 = math.exp %138 : vector<64x128xf32>
      %cst_52 = arith.constant dense<0.000000e+00> : vector<64xf32>
      %140 = vector.multi_reduction <add>, %139, %cst_52 [1] : vector<64x128xf32> to vector<64xf32>
      %141 = vector.shape_cast %140 : vector<64xf32> to vector<64x1xf32>
      %142 = math.log %141 : vector<64x1xf32>
      %143 = arith.addf %136, %142 : vector<64x1xf32>
      %144 = arith.index_cast %127 : i32 to index
      %c0_53 = arith.constant 0 : index
      %145 = vector.load %arg8[%144, %c0_53] : memref<64x1xi32, #tpu.memory_space<vmem>>, vector<64x1xi32>
      %146 = tpu.iota {dimensions = array<i32: 1>} : vector<64x128xi32>
      %147 = vector.broadcast %145 : vector<64x1xi32> to vector<64x128xi32>
      %148 = arith.cmpi eq, %146, %147 : vector<64x128xi32>
      %cst_54 = arith.constant 0.000000e+00 : f32
      %149 = vector.broadcast %cst_54 : f32 to vector<64x128xf32>
      %150 = arith.select %148, %134, %149 : vector<64x128xi1>, vector<64x128xf32>
      %cst_55 = arith.constant dense<0.000000e+00> : vector<64xf32>
      %151 = vector.multi_reduction <add>, %150, %cst_55 [1] : vector<64x128xf32> to vector<64xf32>
      %152 = vector.shape_cast %151 : vector<64xf32> to vector<64x1xf32>
      %c0_i32_56 = arith.constant 0 : i32
      %153 = vector.broadcast %c0_i32_56 : i32 to vector<64x1xi32>
      %154 = arith.cmpi ne, %145, %153 : vector<64x1xi32>
      %155 = arith.extui %154 : vector<64x1xi1> to vector<64x1xi32>
      %156 = arith.sitofp %155 : vector<64x1xi32> to vector<64x1xf32>
      %157 = vector.broadcast %136 : vector<64x1xf32> to vector<64x128xf32>
      %158 = arith.cmpf oge, %134, %157 : vector<64x128xf32>
      %c128_i32 = arith.constant 128 : i32
      %159 = vector.broadcast %c128_i32 : i32 to vector<64x128xi32>
      %160 = arith.select %158, %146, %159 : vector<64x128xi1>, vector<64x128xi32>
      %cst_57 = arith.constant dense<2147483647> : vector<64xi32>
      %161 = vector.multi_reduction <minsi>, %160, %cst_57 [1] : vector<64x128xi32> to vector<64xi32>
      %162 = vector.shape_cast %161 : vector<64xi32> to vector<64x1xi32>
      %163 = arith.index_cast %127 : i32 to index
      %c0_58 = arith.constant 0 : index
      %164 = vector.load %arg10[%163, %c0_58] : memref<64x1xi32, #tpu.memory_space<vmem>>, vector<64x1xi32>
      tpu.vector_store %arg10[%163, %c0_58], %162 {strides = array<i32>} : memref<64x1xi32, #tpu.memory_space<vmem>>, vector<64x1xi32>,
      %165 = arith.subf %143, %152 : vector<64x1xf32>
      %166 = arith.mulf %156, %165 : vector<64x1xf32>
      %167 = vector.shape_cast %166 : vector<64x1xf32> to vector<1x64x1xf32>
      %cst_59 = arith.constant dense<0.000000e+00> : vector<1xf32>
      %168 = vector.multi_reduction <add>, %167, %cst_59 [1, 2] : vector<1x64x1xf32> to vector<1xf32>
      %169 = vector.shape_cast %168 : vector<1xf32> to vector<1x1x1xf32>
      %170 = vector.extract %169[0, 0, 0] : f32 from vector<1x1x1xf32>
      %171 = arith.addf %cst_43, %170 : f32
      %c1_i32 = arith.constant 1 : i32
      %172 = vector.broadcast %171 : f32 to vector<1x1xf32>
      %c0_60 = arith.constant 0 : index
      %c0_61 = arith.constant 0 : index
      %173 = vector.load %arg9[%c0_60, %c0_61] : memref<1x1xf32, #tpu.memory_space<vmem>>, vector<1x1xf32>
      tpu.vector_store %arg9[%c0_60, %c0_61], %172 {strides = array<i32>} : memref<1x1xf32, #tpu.memory_space<vmem>>, vector<1x1xf32>,
    } else {
    }
    return
  }
  func.func @transform_0(%arg0: i32) -> (i32, i32, i32) {
    %c0_i32 = arith.constant 0 : i32
    %c0_i32_0 = arith.constant 0 : i32
    %c0_i32_1 = arith.constant 0 : i32
    return %arg0, %c0_i32, %c0_i32_0 : i32, i32, i32
  }
  func.func @transform_1(%arg0: i32) -> (i32, i32, i32) {
    %c7_i32 = arith.constant 7 : i32
    %0 = arith.subi %c7_i32, %arg0 : i32
    %c0_i32 = arith.constant 0 : i32
    %c1_i32 = arith.constant 1 : i32
    %c0_i32_0 = arith.constant 0 : i32
    return %0, %c0_i32, %c1_i32 : i32, i32, i32
  }
  func.func @transform_2(%arg0: i32) -> (i32, i32) {
    %c0_i32 = arith.constant 0 : i32
    %c0_i32_0 = arith.constant 0 : i32
    %c0_i32_1 = arith.constant 0 : i32
    return %c0_i32, %c0_i32_0 : i32, i32
  }
  func.func @transform_3(%arg0: i32) -> (i32, i32) {
    %c0_i32 = arith.constant 0 : i32
    %c0_i32_0 = arith.constant 0 : i32
    %c0_i32_1 = arith.constant 0 : i32
    return %c0_i32, %c0_i32_0 : i32, i32
  }
  func.func @transform_4(%arg0: i32) -> (i32, i32) {
    %c0_i32 = arith.constant 0 : i32
    %c0_i32_0 = arith.constant 0 : i32
    %c0_i32_1 = arith.constant 0 : i32
    return %c0_i32, %c0_i32_0 : i32, i32
  }
  func.func @transform_5(%arg0: i32) -> (i32, i32) {
    %c0_i32 = arith.constant 0 : i32
    %c0_i32_0 = arith.constant 0 : i32
    %c0_i32_1 = arith.constant 0 : i32
    return %c0_i32, %c0_i32_0 : i32, i32
  }
  func.func @transform_6(%arg0: i32) -> (i32, i32) {
    %c0_i32 = arith.constant 0 : i32
    %c0_i32_0 = arith.constant 0 : i32
    %c0_i32_1 = arith.constant 0 : i32
    return %c0_i32, %c0_i32_0 : i32, i32
  }
  func.func @transform_7(%arg0: i32) -> (i32, i32) {
    %c0_i32 = arith.constant 0 : i32
    %c0_i32_0 = arith.constant 0 : i32
    %c0_i32_1 = arith.constant 0 : i32
    return %c0_i32, %c0_i32_0 : i32, i32
  }
  func.func @transform_8(%arg0: i32) -> (i32, i32) {
    %c0_i32 = arith.constant 0 : i32
    %c0_i32_0 = arith.constant 0 : i32
    %c0_i32_1 = arith.constant 0 : i32
    return %c0_i32, %c0_i32_0 : i32, i32
  }
  func.func @transform_9(%arg0: i32) -> (i32, i32) {
    %c0_i32 = arith.constant 0 : i32
    %c0_i32_0 = arith.constant 0 : i32
    %c0_i32_1 = arith.constant 0 : i32
    return %c0_i32, %c0_i32_0 : i32, i32
  }
}

</mosaic_0001>

<llo_original>
// kernel: tagger_forward.2
$region0: #{tagger_forward.2}
  #allocation0 [shape = 'u32[]', space=smem, size = 0x4, offset = 0x4, fixed_abs, tag = 'smem constant byte address 0x4 - core index']
  #allocation1 [shape = 'u32[72,128]{1,0:T(1,128)}', space=vmem, size = 0x9000, scoped, tag = 'internal scratch']
  #allocation2 [shape = 'f32[16,128]{1,0:T(8,128)}', space=vmem, size = 0x2000, scoped, tag = 'scratch operand']
  #allocation3 [shape = 'f32[16,128]{1,0:T(8,128)}', space=vmem, size = 0x2000, scoped, tag = 'scratch operand']
  %s0 = inlined_call_operand.vmem [shape: f32[6,16,512], index: 0, kind: input, shape index: {}]
  %s1 = inlined_call_operand.hbm [shape: bf16[128,512], index: 1, kind: input, shape index: {}]
  %s2 = inlined_call_operand.vmem [shape: f32[16,128], index: 2, kind: output, shape index: {}]
  %s3 = sld [smem:[#allocation0]]
  $region22: #{tagger_forward.2} parent=0
    _
  %s5 = ssub.s32 1, %s3
  %s6 = scalar_select 0, %s5, %s3
  $region1: #{tagger_forward.2} parent=0
    #allocation4 [shape = 'u8[131072]{0}', space=vmem, size = 0x20000, scoped, tag = 'input window, operand 1, single buffered']
    #allocation5 [shape = 's32[1]{0}', space=sflag, size = 0x4, scoped, tag = 'scoped memory for tagger_forward.2']
    %7 = vsyncpa [#allocation5], 0
    // Predicated region
    $region2: #{tagger_forward.2} parent=1 // pred_check
      _
    $region3: #{tagger_forward.2} parent=1 // pred_check_branch
      %9 = sbr.rel (0) target = $region5
    $region4: #{tagger_forward.2} parent=1 // pred_region
      _
    $region5: #{tagger_forward.2} parent=1 // pred_fallthru
      _
    // Predicated region
    $region6: #{tagger_forward.2} parent=1 // pred_check
      _
    $region7: #{tagger_forward.2} parent=1 // pred_check_branch
      %11 = sbr.rel (0) target = $region9
    $region8: #{tagger_forward.2} parent=1 // pred_region
      %13 = vsyncadd [#allocation5], 0
      %s14 = sshll.u32 %s1, 4
      %s15 = int_to_ptr.hbm [resolvable:$true] %s14
      %s16 = sshll.u32 [#allocation4], 4
      %s17 = int_to_ptr.vmem [resolvable:$true] %s16
      %22 = dma.hbm_to_vmem [thread:$0]  %s15, 4096, %s17, [#allocation5], 256, 256, 16
    $region9: #{tagger_forward.2} parent=1 // pred_fallthru
      _
    // Predicated region
    $region10: #{tagger_forward.2} parent=1 // pred_check
      _
    $region11: #{tagger_forward.2} parent=1 // pred_check_branch
      %24 = sbr.rel (0) target = $region13
    $region12: #{tagger_forward.2} parent=1 // pred_region
      %26 = dma.done [#allocation5], 4096
    $region13: #{tagger_forward.2} parent=1 // pred_fallthru
      _
    %27 = vst [vmem:[#allocation2] sm:$0xff] 0.0
    %28 = vst [vmem:[#allocation2 + $0x8] sm:$0xff] 0.0
    %29 = vst [vmem:[#allocation3] sm:$0xff] 0.0
    %30 = vst [vmem:[#allocation3 + $0x8] sm:$0xff] 0.0
    %v31 = vld [vmem:[%s0] sm:$0xff]
    %v32 = vld [vmem:[%s0 + $0x8] sm:$0xff]
    %v33 = vld [vmem:[%s0 + $0x10] sm:$0xff]
    %v34 = vld [vmem:[%s0 + $0x18] sm:$0xff]
    %v35 = vld [vmem:[%s0 + $0x20] sm:$0xff]
    %v36 = vld [vmem:[%s0 + $0x28] sm:$0xff]
    %v37 = vld [vmem:[%s0 + $0x30] sm:$0xff]
    %v38 = vld [vmem:[%s0 + $0x38] sm:$0xff]
    %v39 = vld [vmem:[#allocation2] sm:$0xff]
    %v40 = vld [vmem:[#allocation2 + $0x8] sm:$0xff]
    %v41 = vld [vmem:[#allocation3] sm:$0xff]
    %v42 = vld [vmem:[#allocation3 + $0x8] sm:$0xff]
    %v43 = vpack.c.bf16 %v40, %v39
    %v44 = vld [vmem:[#allocation4] sm:$0xff]
    %v45 = vld [vmem:[#allocation4 + $0x8] sm:$0xff]
    %v46 = vld [vmem:[#allocation4 + $0x10] sm:$0xff]
    %v47 = vld [vmem:[#allocation4 + $0x18] sm:$0xff]
    %v48 = vld [vmem:[#allocation4 + $0x20] sm:$0xff]
    %v49 = vld [vmem:[#allocation4 + $0x28] sm:$0xff]
    %v50 = vld [vmem:[#allocation4 + $0x30] sm:$0xff]
    %v51 = vld [vmem:[#allocation4 + $0x38] sm:$0xff]
    %v52 = vld [vmem:[#allocation4 + $0x40] sm:$0xff]
    %v53 = vld [vmem:[#allocation4 + $0x48] sm:$0xff]
    %v54 = vld [vmem:[#allocation4 + $0x50] sm:$0xff]
    %v55 = vld [vmem:[#allocation4 + $0x58] sm:$0xff]
    %v56 = vld [vmem:[#allocation4 + $0x60] sm:$0xff]
    %v57 = vld [vmem:[#allocation4 + $0x68] sm:$0xff]
    %v58 = vld [vmem:[#allocation4 + $0x70] sm:$0xff]
    %v59 = vld [vmem:[#allocation4 + $0x78] sm:$0xff]
    %v60 = vld [vmem:[#allocation4 + $0x80] sm:$0xff]
    %v61 = vld [vmem:[#allocation4 + $0x88] sm:$0xff]
    %v62 = vld [vmem:[#allocation4 + $0x90] sm:$0xff]
    %v63 = vld [vmem:[#allocation4 + $0x98] sm:$0xff]
    %v64 = vld [vmem:[#allocation4 + $0xa0] sm:$0xff]
    %v65 = vld [vmem:[#allocation4 + $0xa8] sm:$0xff]
    %v66 = vld [vmem:[#allocation4 + $0xb0] sm:$0xff]
    %v67 = vld [vmem:[#allocation4 + $0xb8] sm:$0xff]
    %v68 = vld [vmem:[#allocation4 + $0xc0] sm:$0xff]
    %v69 = vld [vmem:[#allocation4 + $0xc8] sm:$0xff]
    %v70 = vld [vmem:[#allocation4 + $0xd0] sm:$0xff]
    %v71 = vld [vmem:[#allocation4 + $0xd8] sm:$0xff]
    %v72 = vld [vmem:[#allocation4 + $0xe0] sm:$0xff]
    %v73 = vld [vmem:[#allocation4 + $0xe8] sm:$0xff]
    %v74 = vld [vmem:[#allocation4 + $0xf0] sm:$0xff]
    %v75 = vld [vmem:[#allocation4 + $0xf8] sm:$0xff]
    %v108 = vunpack.c.l.b16 %v44
    %v109 = vunpack.c.h.b16 %v44
    %v110 = vunpack.c.l.b16 %v45
    %v111 = vunpack.c.h.b16 %v45
    %v112 = vunpack.c.l.b16 %v46
    %v113 = vunpack.c.h.b16 %v46
    %v114 = vunpack.c.l.b16 %v47
    %v115 = vunpack.c.h.b16 %v47
    %v116 = vunpack.c.l.b16 %v48
    %v117 = vunpack.c.h.b16 %v48
    %v118 = vunpack.c.l.b16 %v49
    %v119 = vunpack.c.h.b16 %v49
    %v120 = vunpack.c.l.b16 %v50
    %v121 = vunpack.c.h.b16 %v50
    %v122 = vunpack.c.l.b16 %v51
    %v123 = vunpack.c.h.b16 %v51
    %v124 = vunpack.c.l.b16 %v52
    %v125 = vunpack.c.h.b16 %v52
    %v126 = vunpack.c.l.b16 %v53
    %v127 = vunpack.c.h.b16 %v53
    %v128 = vunpack.c.l.b16 %v54
    %v129 = vunpack.c.h.b16 %v54
    %v130 = vunpack.c.l.b16 %v55
    %v131 = vunpack.c.h.b16 %v55
    %v132 = vunpack.c.l.b16 %v56
    %v133 = vunpack.c.h.b16 %v56
    %v134 = vunpack.c.l.b16 %v57
    %v135 = vunpack.c.h.b16 %v57
    %v136 = vunpack.c.l.b16 %v58
    %v137 = vunpack.c.h.b16 %v58
    %v138 = vunpack.c.l.b16 %v59
    %v139 = vunpack.c.h.b16 %v59
    %v140 = vunpack.c.l.b16 %v60
    %v141 = vunpack.c.h.b16 %v60
    %v142 = vunpack.c.l.b16 %v61
    %v143 = vunpack.c.h.b16 %v61
    %v144 = vunpack.c.l.b16 %v62
    %v145 = vunpack.c.h.b16 %v62
    %v146 = vunpack.c.l.b16 %v63
    %v147 = vunpack.c.h.b16 %v63
    %v148 = vunpack.c.l.b16 %v64
    %v149 = vunpack.c.h.b16 %v64
    %v150 = vunpack.c.l.b16 %v65
    %v151 = vunpack.c.h.b16 %v65
    %v152 = vunpack.c.l.b16 %v66
    %v153 = vunpack.c.h.b16 %v66
    %v154 = vunpack.c.l.b16 %v67
    %v155 = vunpack.c.h.b16 %v67
    %v156 = vunpack.c.l.b16 %v68
    %v157 = vunpack.c.h.b16 %v68
    %v158 = vunpack.c.l.b16 %v69
    %v159 = vunpack.c.h.b16 %v69
    %v160 = vunpack.c.l.b16 %v70
    %v161 = vunpack.c.h.b16 %v70
    %v162 = vunpack.c.l.b16 %v71
    %v163 = vunpack.c.h.b16 %v71
    %v164 = vunpack.c.l.b16 %v72
    %v165 = vunpack.c.h.b16 %v72
    %v166 = vunpack.c.l.b16 %v73
    %v167 = vunpack.c.h.b16 %v73
    %v168 = vunpack.c.l.b16 %v74
    %v169 = vunpack.c.h.b16 %v74
    %v170 = vunpack.c.l.b16 %v75
    %v171 = vunpack.c.h.b16 %v75
    %v172 = vpack.c.b16 %v112, %v108
    %v173 = vpack.c.b16 %v113, %v109
    %v174 = vpack.c.b16 %v114, %v110
    %v175 = vpack.c.b16 %v115, %v111
    %v176 = vpack.c.b16 %v120, %v116
    %v177 = vpack.c.b16 %v121, %v117
    %v178 = vpack.c.b16 %v122, %v118
    %v179 = vpack.c.b16 %v123, %v119
    %v180 = vpack.c.b16 %v128, %v124
    %v181 = vpack.c.b16 %v129, %v125
    %v182 = vpack.c.b16 %v130, %v126
    %v183 = vpack.c.b16 %v131, %v127
    %v184 = vpack.c.b16 %v136, %v132
    %v185 = vpack.c.b16 %v137, %v133
    %v186 = vpack.c.b16 %v138, %v134
    %v187 = vpack.c.b16 %v139, %v135
    %v188 = vpack.c.b16 %v144, %v140
    %v189 = vpack.c.b16 %v145, %v141
    %v190 = vpack.c.b16 %v146, %v142
    %v191 = vpack.c.b16 %v147, %v143
    %v192 = vpack.c.b16 %v152, %v148
    %v193 = vpack.c.b16 %v153, %v149
    %v194 = vpack.c.b16 %v154, %v150
    %v195 = vpack.c.b16 %v155, %v151
    %v196 = vpack.c.b16 %v160, %v156
    %v197 = vpack.c.b16 %v161, %v157
    %v198 = vpack.c.b16 %v162, %v158
    %v199 = vpack.c.b16 %v163, %v159
    %v200 = vpack.c.b16 %v168, %v164
    %v201 = vpack.c.b16 %v169, %v165
    %v202 = vpack.c.b16 %v170, %v166
    %v203 = vpack.c.b16 %v171, %v167
    %236 = vmatpush.bf16.msra.mxu0 %v200
    %237 = vmatpush.bf16.msra.mxu0 %v196
    %238 = vmatpush.bf16.msra.mxu0 %v192
    %239 = vmatpush.bf16.msra.mxu0 %v188
    %240 = vmatpush.bf16.msra.mxu0 %v184
    %241 = vmatpush.bf16.msra.mxu0 %v180
    %242 = vmatpush.bf16.msra.mxu0 %v176
    %243 = vmatpush.bf16.msra.mxu0 %v172
    %244 = vmatmul.bf16.gmra.mxu0 %v43
    %v245 = vpop.f32.mrf.mxu0
    %v246 = vadd.f32 0.0, %v245
    %v247 = vpop.f32.mrf.mxu0
    %v248 = vadd.f32 0.0, %v247
    %249 = vdwg.mxu0
    %250 = vmatpush.bf16.msra.mxu0 %v201
    %251 = vmatpush.bf16.msra.mxu0 %v197
    %252 = vmatpush.bf16.msra.mxu0 %v193
    %253 = vmatpush.bf16.msra.mxu0 %v189
    %254 = vmatpush.bf16.msra.mxu0 %v185
    %255 = vmatpush.bf16.msra.mxu0 %v181
    %256 = vmatpush.bf16.msra.mxu0 %v177
    %257 = vmatpush.bf16.msra.mxu0 %v173
    %258 = vmatmul.bf16.gmra.mxu0 %v43
    %v259 = vpop.f32.mrf.mxu0
    %v260 = vadd.f32 0.0, %v259
    %v261 = vpop.f32.mrf.mxu0
    %v262 = vadd.f32 0.0, %v261
    %263 = vdwg.mxu0
    %264 = vmatpush.bf16.msra.mxu0 %v202
    %265 = vmatpush.bf16.msra.mxu0 %v198
    %266 = vmatpush.bf16.msra.mxu0 %v194
    %267 = vmatpush.bf16.msra.mxu0 %v190
    %268 = vmatpush.bf16.msra.mxu0 %v186
    %269 = vmatpush.bf16.msra.mxu0 %v182
    %270 = vmatpush.bf16.msra.mxu0 %v178
    %271 = vmatpush.bf16.msra.mxu0 %v174
    %272 = vmatmul.bf16.gmra.mxu0 %v43
    %v273 = vpop.f32.mrf.mxu0
    %v274 = vadd.f32 0.0, %v273
    %v275 = vpop.f32.mrf.mxu0
    %v276 = vadd.f32 0.0, %v275
    %277 = vdwg.mxu0
    %278 = vmatpush.bf16.msra.mxu0 %v203
    %279 = vmatpush.bf16.msra.mxu0 %v199
    %280 = vmatpush.bf16.msra.mxu0 %v195
    %281 = vmatpush.bf16.msra.mxu0 %v191
    %282 = vmatpush.bf16.msra.mxu0 %v187
    %283 = vmatpush.bf16.msra.mxu0 %v183
    %284 = vmatpush.bf16.msra.mxu0 %v179
    %285 = vmatpush.bf16.msra.mxu0 %v175
    %286 = vmatmul.bf16.gmra.mxu0 %v43
    %v287 = vpop.f32.mrf.mxu0
    %v288 = vadd.f32 0.0, %v287
    %v289 = vpop.f32.mrf.mxu0
    %v290 = vadd.f32 0.0, %v289
    %291 = vdwg.mxu0
    %v292 = vadd.f32 %v31, %v246
    %v293 = vadd.f32 %v32, %v260
    %v294 = vadd.f32 %v33, %v274
    %v295 = vadd.f32 %v34, %v288
    %v296 = vadd.f32 %v35, %v248
    %v297 = vadd.f32 %v36, %v262
    %v298 = vadd.f32 %v37, %v276
    %v299 = vadd.f32 %v38, %v290
    %v300 = vxor.u32 %v292, 2147483648
    %v301 = vxor.u32 %v296, 2147483648
    %v302 = vmul.f32 %v300, 1.442695
    %v303 = vpow.pop %v302
    %v304 = vmul.f32 %v301, 1.442695
    %v305 = vpow.pop %v304
    %v306 = vadd.f32 %v303, 1.0
    %v307 = vadd.f32 %v305, 1.0
    %v308 = vrcp.pop %v306
    %v309 = vmul.f32 %v306, %v308
    %v310 = vsub.f32 1.0, %v309
    %v311 = vmul.f32 %v308, %v310
    %v312 = vadd.f32 %v308, %v311
    %vm313 = vweird.f32 %v306
    %vm314 = vweird.f32 %v308
    %vm315 = vmor %vm313, %vm314
    %v316 = vsel %vm315, %v308, %v312
    %v317 = vand.u32 2147483647, %v306
    %vm318 = vcmp.eq.f32.partialorder %v317, 8.507059e+37
    %v319 = vand.u32 %v306, 2147483648
    %v320 = vor.u32 1.1754944e-38, %v319
    %v321 = vsel %vm318, %v320, %v316
    %v322 = vmul.f32 1.0, %v321
    %v323 = vrcp.pop %v307
    %v324 = vmul.f32 %v307, %v323
    %v325 = vsub.f32 1.0, %v324
    %v326 = vmul.f32 %v323, %v325
    %v327 = vadd.f32 %v323, %v326
    %vm328 = vweird.f32 %v307
    %vm329 = vweird.f32 %v323
    %vm330 = vmor %vm328, %vm329
    %v331 = vsel %vm330, %v323, %v327
    %v332 = vand.u32 2147483647, %v307
    %vm333 = vcmp.eq.f32.partialorder %v332, 8.507059e+37
    %v334 = vand.u32 %v307, 2147483648
    %v335 = vor.u32 1.1754944e-38, %v334
    %v336 = vsel %vm333, %v335, %v331
    %v337 = vmul.f32 1.0, %v336
    %v338 = vxor.u32 %v293, 2147483648
    %v339 = vxor.u32 %v297, 2147483648
    %v340 = vmul.f32 %v338, 1.442695
    %v341 = vpow.pop %v340
    %v342 = vmul.f32 %v339, 1.442695
    %v343 = vpow.pop %v342
    %v344 = vadd.f32 %v341, 1.0
    %v345 = vadd.f32 %v343, 1.0
    %v346 = vrcp.pop %v344
    %v347 = vmul.f32 %v344, %v346
    %v348 = vsub.f32 1.0, %v347
    %v349 = vmul.f32 %v346, %v348
    %v350 = vadd.f32 %v346, %v349
    %vm351 = vweird.f32 %v344
    %vm352 = vweird.f32 %v346
    %vm353 = vmor %vm351, %vm352
    %v354 = vsel %vm353, %v346, %v350
    %v355 = vand.u32 2147483647, %v344
    %vm356 = vcmp.eq.f32.partialorder %v355, 8.507059e+37
    %v357 = vand.u32 %v344, 2147483648
    %v358 = vor.u32 1.1754944e-38, %v357
    %v359 = vsel %vm356, %v358, %v354
    %v360 = vmul.f32 1.0, %v359
    %v361 = vrcp.pop %v345
    %v362 = vmul.f32 %v345, %v361
    %v363 = vsub.f32 1.0, %v362
    %v364 = vmul.f32 %v361, %v363
    %v365 = vadd.f32 %v361, %v364
    %vm366 = vweird.f32 %v345
    %vm367 = vweird.f32 %v361
    %vm368 = vmor %vm366, %vm367
    %v369 = vsel %vm368, %v361, %v365
    %v370 = vand.u32 2147483647, %v345
    %vm371 = vcmp.eq.f32.partialorder %v370, 8.507059e+37
    %v372 = vand.u32 %v345, 2147483648
    %v373 = vor.u32 1.1754944e-38, %v372
    %v374 = vsel %vm371, %v373, %v369
    %v375 = vmul.f32 1.0, %v374
    %v376 = vtanh.pop %v294
    %v377 = vtanh.pop %v298
    %v378 = vxor.u32 %v295, 2147483648
    %v379 = vxor.u32 %v299, 2147483648
    %v380 = vmul.f32 %v378, 1.442695
    %v381 = vpow.pop %v380
    %v382 = vmul.f32 %v379, 1.442695
    %v383 = vpow.pop %v382
    %v384 = vadd.f32 %v381, 1.0
    %v385 = vadd.f32 %v383, 1.0
    %v386 = vrcp.pop %v384
    %v387 = vmul.f32 %v384, %v386
    %v388 = vsub.f32 1.0, %v387
    %v389 = vmul.f32 %v386, %v388
    %v390 = vadd.f32 %v386, %v389
    %vm391 = vweird.f32 %v384
    %vm392 = vweird.f32 %v386
    %vm393 = vmor %vm391, %vm392
    %v394 = vsel %vm393, %v386, %v390
    %v395 = vand.u32 2147483647, %v384
    %vm396 = vcmp.eq.f32.partialorder %v395, 8.507059e+37
    %v397 = vand.u32 %v384, 2147483648
    %v398 = vor.u32 1.1754944e-38, %v397
    %v399 = vsel %vm396, %v398, %v394
    %v400 = vmul.f32 1.0, %v399
    %v401 = vrcp.pop %v385
    %v402 = vmul.f32 %v385, %v401
    %v403 = vsub.f32 1.0, %v402
    %v404 = vmul.f32 %v401, %v403
    %v405 = vadd.f32 %v401, %v404
    %vm406 = vweird.f32 %v385
    %vm407 = vweird.f32 %v401
    %vm408 = vmor %vm406, %vm407
    %v409 = vsel %vm408, %v401, %v405
    %v410 = vand.u32 2147483647, %v385
    %vm411 = vcmp.eq.f32.partialorder %v410, 8.507059e+37
    %v412 = vand.u32 %v385, 2147483648
    %v413 = vor.u32 1.1754944e-38, %v412
    %v414 = vsel %vm411, %v413, %v409
    %v415 = vmul.f32 1.0, %v414
    %v416 = vmul.f32 %v360, %v41
    %v417 = vmul.f32 %v375, %v42
    %v418 = vmul.f32 %v322, %v376
    %v419 = vmul.f32 %v337, %v377
    %v420 = vadd.f32 %v416, %v418
    %v421 = vadd.f32 %v417, %v419
    %v422 = vtanh.pop %v420
    %v423 = vtanh.pop %v421
    %v424 = vmul.f32 %v400, %v422
    %v425 = vmul.f32 %v415, %v423
    %426 = vst [vmem:[#allocation2] sm:$0xff] %v424
    %427 = vst [vmem:[#allocation2 + $0x8] sm:$0xff] %v425
    %428 = vst [vmem:[#allocation3] sm:$0xff] %v420
    %429 = vst [vmem:[#allocation3 + $0x8] sm:$0xff] %v421
    %s430 = scalar_lea.vmem %s0, 64
    %v431 = vld [vmem:[%s430] sm:$0xff]
    %v432 = vld [vmem:[%s430 + $0x8] sm:$0xff]
    %v433 = vld [vmem:[%s430 + $0x10] sm:$0xff]
    %v434 = vld [vmem:[%s430 + $0x18] sm:$0xff]
    %v435 = vld [vmem:[%s430 + $0x20] sm:$0xff]
    %v436 = vld [vmem:[%s430 + $0x28] sm:$0xff]
    %v437 = vld [vmem:[%s430 + $0x30] sm:$0xff]
    %v438 = vld [vmem:[%s430 + $0x38] sm:$0xff]
    %v439 = vld [vmem:[#allocation2] sm:$0xff]
    %v440 = vld [vmem:[#allocation2 + $0x8] sm:$0xff]
    %v441 = vld [vmem:[#allocation3] sm:$0xff]
    %v442 = vld [vmem:[#allocation3 + $0x8] sm:$0xff]
    %v443 = vpack.c.bf16 %v440, %v439
    %v444 = vld [vmem:[#allocation4] sm:$0xff]
    %v445 = vld [vmem:[#allocation4 + $0x8] sm:$0xff]
    %v446 = vld [vmem:[#allocation4 + $0x10] sm:$0xff]
    %v447 = vld [vmem:[#allocation4 + $0x18] sm:$0xff]
    %v448 = vld [vmem:[#allocation4 + $0x20] sm:$0xff]
    %v449 = vld [vmem:[#allocation4 + $0x28] sm:$0xff]
    %v450 = vld [vmem:[#allocation4 + $0x30] sm:$0xff]
    %v451 = vld [vmem:[#allocation4 + $0x38] sm:$0xff]
    %v452 = vld [vmem:[#allocation4 + $0x40] sm:$0xff]
    %v453 = vld [vmem:[#allocation4 + $0x48] sm:$0xff]
    %v454 = vld [vmem:[#allocation4 + $0x50] sm:$0xff]
    %v455 = vld [vmem:[#allocation4 + $0x58] sm:$0xff]
    %v456 = vld [vmem:[#allocation4 + $0x60] sm:$0xff]
    %v457 = vld [vmem:[#allocation4 + $0x68] sm:$0xff]
    %v458 = vld [vmem:[#allocation4 + $0x70] sm:$0xff]
    %v459 = vld [vmem:[#allocation4 + $0x78] sm:$0xff]
    %v460 = vld [vmem:[#allocation4 + $0x80] sm:$0xff]
    %v461 = vld [vmem:[#allocation4 + $0x88] sm:$0xff]
    %v462 = vld [vmem:[#allocation4 + $0x90] sm:$0xff]
    %v463 = vld [vmem:[#allocation4 + $0x98] sm:$0xff]
    %v464 = vld [vmem:[#allocation4 + $0xa0] sm:$0xff]
    %v465 = vld [vmem:[#allocation4 + $0xa8] sm:$0xff]
    %v466 = vld [vmem:[#allocation4 + $0xb0] sm:$0xff]
    %v467 = vld [vmem:[#allocation4 + $0xb8] sm:$0xff]
    %v468 = vld [vmem:[#allocation4 + $0xc0] sm:$0xff]
    %v469 = vld [vmem:[#allocation4 + $0xc8] sm:$0xff]
    %v470 = vld [vmem:[#allocation4 + $0xd0] sm:$0xff]
    %v471 = vld [vmem:[#allocation4 + $0xd8] sm:$0xff]
    %v472 = vld [vmem:[#allocation4 + $0xe0] sm:$0xff]
    %v473 = vld [vmem:[#allocation4 + $0xe8] sm:$0xff]
    %v474 = vld [vmem:[#allocation4 + $0xf0] sm:$0xff]
    %v475 = vld [vmem:[#allocation4 + $0xf8] sm:$0xff]
    %v508 = vunpack.c.l.b16 %v444
    %v509 = vunpack.c.h.b16 %v444
    %v510 = vunpack.c.l.b16 %v445
    %v511 = vunpack.c.h.b16 %v445
    %v512 = vunpack.c.l.b16 %v446
    %v513 = vunpack.c.h.b16 %v446
    %v514 = vunpack.c.l.b16 %v447
    %v515 = vunpack.c.h.b16 %v447
    %v516 = vunpack.c.l.b16 %v448
    %v517 = vunpack.c.h.b16 %v448
    %v518 = vunpack.c.l.b16 %v449
    %v519 = vunpack.c.h.b16 %v449
    %v520 = vunpack.c.l.b16 %v450
    %v521 = vunpack.c.h.b16 %v450
    %v522 = vunpack.c.l.b16 %v451
    %v523 = vunpack.c.h.b16 %v451
    %v524 = vunpack.c.l.b16 %v452
    %v525 = vunpack.c.h.b16 %v452
    %v526 = vunpack.c.l.b16 %v453
    %v527 = vunpack.c.h.b16 %v453
    %v528 = vunpack.c.l.b16 %v454
    %v529 = vunpack.c.h.b16 %v454
    %v530 = vunpack.c.l.b16 %v455
    %v531 = vunpack.c.h.b16 %v455
    %v532 = vunpack.c.l.b16 %v456
    %v533 = vunpack.c.h.b16 %v456
    %v534 = vunpack.c.l.b16 %v457
    %v535 = vunpack.c.h.b16 %v457
    %v536 = vunpack.c.l.b16 %v458
    %v537 = vunpack.c.h.b16 %v458
    %v538 = vunpack.c.l.b16 %v459
    %v539 = vunpack.c.h.b16 %v459
    %v540 = vunpack.c.l.b16 %v460
    %v541 = vunpack.c.h.b16 %v460
    %v542 = vunpack.c.l.b16 %v461
    %v543 = vunpack.c.h.b16 %v461
    %v544 = vunpack.c.l.b16 %v462
    %v545 = vunpack.c.h.b16 %v462
    %v546 = vunpack.c.l.b16 %v463
    %v547 = vunpack.c.h.b16 %v463
    %v548 = vunpack.c.l.b16 %v464
    %v549 = vunpack.c.h.b16 %v464
    %v550 = vunpack.c.l.b16 %v465
    %v551 = vunpack.c.h.b16 %v465
    %v552 = vunpack.c.l.b16 %v466
    %v553 = vunpack.c.h.b16 %v466
    %v554 = vunpack.c.l.b16 %v467
    %v555 = vunpack.c.h.b16 %v467
    %v556 = vunpack.c.l.b16 %v468
    %v557 = vunpack.c.h.b16 %v468
    %v558 = vunpack.c.l.b16 %v469
    %v559 = vunpack.c.h.b16 %v469
    %v560 = vunpack.c.l.b16 %v470
    %v561 = vunpack.c.h.b16 %v470
    %v562 = vunpack.c.l.b16 %v471
    %v563 = vunpack.c.h.b16 %v471
    %v564 = vunpack.c.l.b16 %v472
    %v565 = vunpack.c.h.b16 %v472
    %v566 = vunpack.c.l.b16 %v473
    %v567 = vunpack.c.h.b16 %v473
    %v568 = vunpack.c.l.b16 %v474
    %v569 = vunpack.c.h.b16 %v474
    %v570 = vunpack.c.l.b16 %v475
    %v571 = vunpack.c.h.b16 %v475
    %v572 = vpack.c.b16 %v512, %v508
    %v573 = vpack.c.b16 %v513, %v509
    %v574 = vpack.c.b16 %v514, %v510
    %v575 = vpack.c.b16 %v515, %v511
    %v576 = vpack.c.b16 %v520, %v516
    %v577 = vpack.c.b16 %v521, %v517
    %v578 = vpack.c.b16 %v522, %v518
    %v579 = vpack.c.b16 %v523, %v519
    %v580 = vpack.c.b16 %v528, %v524
    %v581 = vpack.c.b16 %v529, %v525
    %v582 = vpack.c.b16 %v530, %v526
    %v583 = vpack.c.b16 %v531, %v527
    %v584 = vpack.c.b16 %v536, %v532
    %v585 = vpack.c.b16 %v537, %v533
    %v586 = vpack.c.b16 %v538, %v534
    %v587 = vpack.c.b16 %v539, %v535
    %v588 = vpack.c.b16 %v544, %v540
    %v589 = vpack.c.b16 %v545, %v541
    %v590 = vpack.c.b16 %v546, %v542
    %v591 = vpack.c.b16 %v547, %v543
    %v592 = vpack.c.b16 %v552, %v548
    %v593 = vpack.c.b16 %v553, %v549
    %v594 = vpack.c.b16 %v554, %v550
    %v595 = vpack.c.b16 %v555, %v551
    %v596 = vpack.c.b16 %v560, %v556
    %v597 = vpack.c.b16 %v561, %v557
    %v598 = vpack.c.b16 %v562, %v558
    %v599 = vpack.c.b16 %v563, %v559
    %v600 = vpack.c.b16 %v568, %v564
    %v601 = vpack.c.b16 %v569, %v565
    %v602 = vpack.c.b16 %v570, %v566
    %v603 = vpack.c.b16 %v571, %v567
    %636 = vmatpush.bf16.msra.mxu0 %v600
    %637 = vmatpush.bf16.msra.mxu0 %v596
    %638 = vmatpush.bf16.msra.mxu0 %v592
    %639 = vmatpush.bf16.msra.mxu0 %v588
    %640 = vmatpush.bf16.msra.mxu0 %v584
    %641 = vmatpush.bf16.msra.mxu0 %v580
    %642 = vmatpush.bf16.msra.mxu0 %v576
    %643 = vmatpush.bf16.msra.mxu0 %v572
    %644 = vmatmul.bf16.gmra.mxu0 %v443
    %v645 = vpop.f32.mrf.mxu0
    %v646 = vadd.f32 0.0, %v645
    %v647 = vpop.f32.mrf.mxu0
    %v648 = vadd.f32 0.0, %v647
    %649 = vdwg.mxu0
    %650 = vmatpush.bf16.msra.mxu0 %v601
    %651 = vmatpush.bf16.msra.mxu0 %v597
    %652 = vmatpush.bf16.msra.mxu0 %v593
    %653 = vmatpush.bf16.msra.mxu0 %v589
    %654 = vmatpush.bf16.msra.mxu0 %v585
    %655 = vmatpush.bf16.msra.mxu0 %v581
    %656 = vmatpush.bf16.msra.mxu0 %v577
    %657 = vmatpush.bf16.msra.mxu0 %v573
    %658 = vmatmul.bf16.gmra.mxu0 %v443
    %v659 = vpop.f32.mrf.mxu0
    %v660 = vadd.f32 0.0, %v659
    %v661 = vpop.f32.mrf.mxu0
    %v662 = vadd.f32 0.0, %v661
    %663 = vdwg.mxu0
    %664 = vmatpush.bf16.msra.mxu0 %v602
    %665 = vmatpush.bf16.msra.mxu0 %v598
    %666 = vmatpush.bf16.msra.mxu0 %v594
    %667 = vmatpush.bf16.msra.mxu0 %v590
    %668 = vmatpush.bf16.msra.mxu0 %v586
    %669 = vmatpush.bf16.msra.mxu0 %v582
    %670 = vmatpush.bf16.msra.mxu0 %v578
    %671 = vmatpush.bf16.msra.mxu0 %v574
    %672 = vmatmul.bf16.gmra.mxu0 %v443
    %v673 = vpop.f32.mrf.mxu0
    %v674 = vadd.f32 0.0, %v673
    %v675 = vpop.f32.mrf.mxu0
    %v676 = vadd.f32 0.0, %v675
    %677 = vdwg.mxu0
    %678 = vmatpush.bf16.msra.mxu0 %v603
    %679 = vmatpush.bf16.msra.mxu0 %v599
    %680 = vmatpush.bf16.msra.mxu0 %v595
    %681 = vmatpush.bf16.msra.mxu0 %v591
    %682 = vmatpush.bf16.msra.mxu0 %v587
    %683 = vmatpush.bf16.msra.mxu0 %v583
    %684 = vmatpush.bf16.msra.mxu0 %v579
    %685 = vmatpush.bf16.msra.mxu0 %v575
    %686 = vmatmul.bf16.gmra.mxu0 %v443
    %v687 = vpop.f32.mrf.mxu0
    %v688 = vadd.f32 0.0, %v687
    %v689 = vpop.f32.mrf.mxu0
    %v690 = vadd.f32 0.0, %v689
    %691 = vdwg.mxu0
    %v692 = vadd.f32 %v431, %v646
    %v693 = vadd.f32 %v432, %v660
    %v694 = vadd.f32 %v433, %v674
    %v695 = vadd.f32 %v434, %v688
    %v696 = vadd.f32 %v435, %v648
    %v697 = vadd.f32 %v436, %v662
    %v698 = vadd.f32 %v437, %v676
    %v699 = vadd.f32 %v438, %v690
    %v700 = vxor.u32 %v692, 2147483648
    %v701 = vxor.u32 %v696, 2147483648
    %v702 = vmul.f32 %v700, 1.442695
    %v703 = vpow.pop %v702
    %v704 = vmul.f32 %v701, 1.442695
    %v705 = vpow.pop %v704
    %v706 = vadd.f32 %v703, 1.0
    %v707 = vadd.f32 %v705, 1.0
    %v708 = vrcp.pop %v706
    %v709 = vmul.f32 %v706, %v708
    %v710 = vsub.f32 1.0, %v709
    %v711 = vmul.f32 %v708, %v710
    %v712 = vadd.f32 %v708, %v711
    %vm713 = vweird.f32 %v706
    %vm714 = vweird.f32 %v708
    %vm715 = vmor %vm713, %vm714
    %v716 = vsel %vm715, %v708, %v712
    %v717 = vand.u32 2147483647, %v706
    %vm718 = vcmp.eq.f32.partialorder %v717, 8.507059e+37
    %v719 = vand.u32 %v706, 2147483648
    %v720 = vor.u32 1.1754944e-38, %v719
    %v721 = vsel %vm718, %v720, %v716
    %v722 = vmul.f32 1.0, %v721
    %v723 = vrcp.pop %v707
    %v724 = vmul.f32 %v707, %v723
    %v725 = vsub.f32 1.0, %v724
    %v726 = vmul.f32 %v723, %v725
    %v727 = vadd.f32 %v723, %v726
    %vm728 = vweird.f32 %v707
    %vm729 = vweird.f32 %v723
    %vm730 = vmor %vm728, %vm729
    %v731 = vsel %vm730, %v723, %v727
    %v732 = vand.u32 2147483647, %v707
    %vm733 = vcmp.eq.f32.partialorder %v732, 8.507059e+37
    %v734 = vand.u32 %v707, 2147483648
    %v735 = vor.u32 1.1754944e-38, %v734
    %v736 = vsel %vm733, %v735, %v731
    %v737 = vmul.f32 1.0, %v736
    %v738 = vxor.u32 %v693, 2147483648
    %v739 = vxor.u32 %v697, 2147483648
    %v740 = vmul.f32 %v738, 1.442695
    %v741 = vpow.pop %v740
    %v742 = vmul.f32 %v739, 1.442695
    %v743 = vpow.pop %v742
    %v744 = vadd.f32 %v741, 1.0
    %v745 = vadd.f32 %v743, 1.0
    %v746 = vrcp.pop %v744
    %v747 = vmul.f32 %v744, %v746
    %v748 = vsub.f32 1.0, %v747
    %v749 = vmul.f32 %v746, %v748
    %v750 = vadd.f32 %v746, %v749
    %vm751 = vweird.f32 %v744
    %vm752 = vweird.f32 %v746
    %vm753 = vmor %vm751, %vm752
    %v754 = vsel %vm753, %v746, %v750
    %v755 = vand.u32 2147483647, %v744
    %vm756 = vcmp.eq.f32.partialorder %v755, 8.507059e+37
    %v757 = vand.u32 %v744, 2147483648
    %v758 = vor.u32 1.1754944e-38, %v757
    %v759 = vsel %vm756, %v758, %v754
    %v760 = vmul.f32 1.0, %v759
    %v761 = vrcp.pop %v745
    %v762 = vmul.f32 %v745, %v761
    %v763 = vsub.f32 1.0, %v762
    %v764 = vmul.f32 %v761, %v763
    %v765 = vadd.f32 %v761, %v764
    %vm766 = vweird.f32 %v745
    %vm767 = vweird.f32 %v761
    %vm768 = vmor %vm766, %vm767
    %v769 = vsel %vm768, %v761, %v765
    %v770 = vand.u32 2147483647, %v745
    %vm771 = vcmp.eq.f32.partialorder %v770, 8.507059e+37
    %v772 = vand.u32 %v745, 2147483648
    %v773 = vor.u32 1.1754944e-38, %v772
    %v774 = vsel %vm771, %v773, %v769
    %v775 = vmul.f32 1.0, %v774
    %v776 = vtanh.pop %v694
    %v777 = vtanh.pop %v698
    %v778 = vxor.u32 %v695, 2147483648
    %v779 = vxor.u32 %v699, 2147483648
    %v780 = vmul.f32 %v778, 1.442695
    %v781 = vpow.pop %v780
    %v782 = vmul.f32 %v779, 1.442695
    %v783 = vpow.pop %v782
    %v784 = vadd.f32 %v781, 1.0
    %v785 = vadd.f32 %v783, 1.0
    %v786 = vrcp.pop %v784
    %v787 = vmul.f32 %v784, %v786
    %v788 = vsub.f32 1.0, %v787
    %v789 = vmul.f32 %v786, %v788
    %v790 = vadd.f32 %v786, %v789
    %vm791 = vweird.f32 %v784
    %vm792 = vweird.f32 %v786
    %vm793 = vmor %vm791, %vm792
    %v794 = vsel %vm793, %v786, %v790
    %v795 = vand.u32 2147483647, %v784
    %vm796 = vcmp.eq.f32.partialorder %v795, 8.507059e+37
    %v797 = vand.u32 %v784, 2147483648
    %v798 = vor.u32 1.1754944e-38, %v797
    %v799 = vsel %vm796, %v798, %v794
    %v800 = vmul.f32 1.0, %v799
    %v801 = vrcp.pop %v785
    %v802 = vmul.f32 %v785, %v801
    %v803 = vsub.f32 1.0, %v802
    %v804 = vmul.f32 %v801, %v803
    %v805 = vadd.f32 %v801, %v804
    %vm806 = vweird.f32 %v785
    %vm807 = vweird.f32 %v801
    %vm808 = vmor %vm806, %vm807
    %v809 = vsel %vm808, %v801, %v805
    %v810 = vand.u32 2147483647, %v785
    %vm811 = vcmp.eq.f32.partialorder %v810, 8.507059e+37
    %v812 = vand.u32 %v785, 2147483648
    %v813 = vor.u32 1.1754944e-38, %v812
    %v814 = vsel %vm811, %v813, %v809
    %v815 = vmul.f32 1.0, %v814
    %v816 = vmul.f32 %v760, %v441
    %v817 = vmul.f32 %v775, %v442
    %v818 = vmul.f32 %v722, %v776
    %v819 = vmul.f32 %v737, %v777
    %v820 = vadd.f32 %v816, %v818
    %v821 = vadd.f32 %v817, %v819
    %v822 = vtanh.pop %v820
    %v823 = vtanh.pop %v821
    %v824 = vmul.f32 %v800, %v822
    %v825 = vmul.f32 %v815, %v823
    %826 = vst [vmem:[#allocation2] sm:$0xff] %v824
    %827 = vst [vmem:[#allocation2 + $0x8] sm:$0xff] %v825
    %828 = vst [vmem:[#allocation3] sm:$0xff] %v820
    %829 = vst [vmem:[#allocation3 + $0x8] sm:$0xff] %v821
    %s830 = scalar_lea.vmem %s0, 128
    %v831 = vld [vmem:[%s830] sm:$0xff]
    %v832 = vld [vmem:[%s830 + $0x8] sm:$0xff]
    %v833 = vld [vmem:[%s830 + $0x10] sm:$0xff]
    %v834 = vld [vmem:[%s830 + $0x18] sm:$0xff]
    %v835 = vld [vmem:[%s830 + $0x20] sm:$0xff]
    %v836 = vld [vmem:[%s830 + $0x28] sm:$0xff]
    %v837 = vld [vmem:[%s830 + $0x30] sm:$0xff]
    %v838 = vld [vmem:[%s830 + $0x38] sm:$0xff]
    %v839 = vld [vmem:[#allocation2] sm:$0xff]
    %v840 = vld [vmem:[#allocation2 + $0x8] sm:$0xff]
    %v841 = vld [vmem:[#allocation3] sm:$0xff]
    %v842 = vld [vmem:[#allocation3 + $0x8] sm:$0xff]
    %v843 = vpack.c.bf16 %v840, %v839
    %v844 = vld [vmem:[#allocation4] sm:$0xff]
    %v845 = vld [vmem:[#allocation4 + $0x8] sm:$0xff]
    %v846 = vld [vmem:[#allocation4 + $0x10] sm:$0xff]
    %v847 = vld [vmem:[#allocation4 + $0x18] sm:$0xff]
    %v848 = vld [vmem:[#allocation4 + $0x20] sm:$0xff]
    %v849 = vld [vmem:[#allocation4 + $0x28] sm:$0xff]
    %v850 = vld [vmem:[#allocation4 + $0x30] sm:$0xff]
    %v851 = vld [vmem:[#allocation4 + $0x38] sm:$0xff]
    %v852 = vld [vmem:[#allocation4 + $0x40] sm:$0xff]
    %v853 = vld [vmem:[#allocation4 + $0x48] sm:$0xff]
    %v854 = vld [vmem:[#allocation4 + $0x50] sm:$0xff]
    %v855 = vld [vmem:[#allocation4 + $0x58] sm:$0xff]
    %v856 = vld [vmem:[#allocation4 + $0x60] sm:$0xff]
    %v857 = vld [vmem:[#allocation4 + $0x68] sm:$0xff]
    %v858 = vld [vmem:[#allocation4 + $0x70] sm:$0xff]
    %v859 = vld [vmem:[#allocation4 + $0x78] sm:$0xff]
    %v860 = vld [vmem:[#allocation4 + $0x80] sm:$0xff]
    %v861 = vld [vmem:[#allocation4 + $0x88] sm:$0xff]
    %v862 = vld [vmem:[#allocation4 + $0x90] sm:$0xff]
    %v863 = vld [vmem:[#allocation4 + $0x98] sm:$0xff]
    %v864 = vld [vmem:[#allocation4 + $0xa0] sm:$0xff]
    %v865 = vld [vmem:[#allocation4 + $0xa8] sm:$0xff]
    %v866 = vld [vmem:[#allocation4 + $0xb0] sm:$0xff]
    %v867 = vld [vmem:[#allocation4 + $0xb8] sm:$0xff]
    %v868 = vld [vmem:[#allocation4 + $0xc0] sm:$0xff]
    %v869 = vld [vmem:[#allocation4 + $0xc8] sm:$0xff]
    %v870 = vld [vmem:[#allocation4 + $0xd0] sm:$0xff]
    %v871 = vld [vmem:[#allocation4 + $0xd8] sm:$0xff]
    %v872 = vld [vmem:[#allocation4 + $0xe0] sm:$0xff]
    %v873 = vld [vmem:[#allocation4 + $0xe8] sm:$0xff]
    %v874 = vld [vmem:[#allocation4 + $0xf0] sm:$0xff]
    %v875 = vld [vmem:[#allocation4 + $0xf8] sm:$0xff]
    %v908 = vunpack.c.l.b16 %v844
    %v909 = vunpack.c.h.b16 %v844
    %v910 = vunpack.c.l.b16 %v845
    %v911 = vunpack.c.h.b16 %v845
    %v912 = vunpack.c.l.b16 %v846
    %v913 = vunpack.c.h.b16 %v846
    %v914 = vunpack.c.l.b16 %v847
    %v915 = vunpack.c.h.b16 %v847
    %v916 = vunpack.c.l.b16 %v848
    %v917 = vunpack.c.h.b16 %v848
    %v918 = vunpack.c.l.b16 %v849
    %v919 = vunpack.c.h.b16 %v849
    %v920 = vunpack.c.l.b16 %v850
    %v921 = vunpack.c.h.b16 %v850
    %v922 = vunpack.c.l.b16 %v851
    %v923 = vunpack.c.h.b16 %v851
    %v924 = vunpack.c.l.b16 %v852
    %v925 = vunpack.c.h.b16 %v852
    %v926 = vunpack.c.l.b16 %v853
    %v927 = vunpack.c.h.b16 %v853
    %v928 = vunpack.c.l.b16 %v854
    %v929 = vunpack.c.h.b16 %v854
    %v930 = vunpack.c.l.b16 %v855
    %v931 = vunpack.c.h.b16 %v855
    %v932 = vunpack.c.l.b16 %v856
    %v933 = vunpack.c.h.b16 %v856
    %v934 = vunpack.c.l.b16 %v857
    %v935 = vunpack.c.h.b16 %v857
    %v936 = vunpack.c.l.b16 %v858
    %v937 = vunpack.c.h.b16 %v858
    %v938 = vunpack.c.l.b16 %v859
    %v939 = vunpack.c.h.b16 %v859
    %v940 = vunpack.c.l.b16 %v860
    %v941 = vunpack.c.h.b16 %v860
    %v942 = vunpack.c.l.b16 %v861
    %v943 = vunpack.c.h.b16 %v861
    %v944 = vunpack.c.l.b16 %v862
    %v945 = vunpack.c.h.b16 %v862
    %v946 = vunpack.c.l.b16 %v863
    %v947 = vunpack.c.h.b16 %v863
    %v948 = vunpack.c.l.b16 %v864
    %v949 = vunpack.c.h.b16 %v864
    %v950 = vunpack.c.l.b16 %v865
    %v951 = vunpack.c.h.b16 %v865
    %v952 = vunpack.c.l.b16 %v866
    %v953 = vunpack.c.h.b16 %v866
    %v954 = vunpack.c.l.b16 %v867
    %v955 = vunpack.c.h.b16 %v867
    %v956 = vunpack.c.l.b16 %v868
    %v957 = vunpack.c.h.b16 %v868
    %v958 = vunpack.c.l.b16 %v869
    %v959 = vunpack.c.h.b16 %v869
    %v960 = vunpack.c.l.b16 %v870
    %v961 = vunpack.c.h.b16 %v870
    %v962 = vunpack.c.l.b16 %v871
    %v963 = vunpack.c.h.b16 %v871
    %v964 = vunpack.c.l.b16 %v872
    %v965 = vunpack.c.h.b16 %v872
    %v966 = vunpack.c.l.b16 %v873
    %v967 = vunpack.c.h.b16 %v873
    %v968 = vunpack.c.l.b16 %v874
    %v969 = vunpack.c.h.b16 %v874
    %v970 = vunpack.c.l.b16 %v875
    %v971 = vunpack.c.h.b16 %v875
    %v972 = vpack.c.b16 %v912, %v908
    %v973 = vpack.c.b16 %v913, %v909
    %v974 = vpack.c.b16 %v914, %v910
    %v975 = vpack.c.b16 %v915, %v911
    %v976 = vpack.c.b16 %v920, %v916
    %v977 = vpack.c.b16 %v921, %v917
    %v978 = vpack.c.b16 %v922, %v918
    %v979 = vpack.c.b16 %v923, %v919
    %v980 = vpack.c.b16 %v928, %v924
    %v981 = vpack.c.b16 %v929, %v925
    %v982 = vpack.c.b16 %v930, %v926
    %v983 = vpack.c.b16 %v931, %v927
    %v984 = vpack.c.b16 %v936, %v932
    %v985 = vpack.c.b16 %v937, %v933
    %v986 = vpack.c.b16 %v938, %v934
    %v987 = vpack.c.b16 %v939, %v935
    %v988 = vpack.c.b16 %v944, %v940
    %v989 = vpack.c.b16 %v945, %v941
    %v990 = vpack.c.b16 %v946, %v942
    %v991 = vpack.c.b16 %v947, %v943
    %v992 = vpack.c.b16 %v952, %v948
    %v993 = vpack.c.b16 %v953, %v949
    %v994 = vpack.c.b16 %v954, %v950
    %v995 = vpack.c.b16 %v955, %v951
    %v996 = vpack.c.b16 %v960, %v956
    %v997 = vpack.c.b16 %v961, %v957
    %v998 = vpack.c.b16 %v962, %v958
    %v999 = vpack.c.b16 %v963, %v959
    %v1000 = vpack.c.b16 %v968, %v964
    %v1001 = vpack.c.b16 %v969, %v965
    %v1002 = vpack.c.b16 %v970, %v966
    %v1003 = vpack.c.b16 %v971, %v967
    %1036 = vmatpush.bf16.msra.mxu0 %v1000
    %1037 = vmatpush.bf16.msra.mxu0 %v996
    %1038 = vmatpush.bf16.msra.mxu0 %v992
    %1039 = vmatpush.bf16.msra.mxu0 %v988
    %1040 = vmatpush.bf16.msra.mxu0 %v984
    %1041 = vmatpush.bf16.msra.mxu0 %v980
    %1042 = vmatpush.bf16.msra.mxu0 %v976
    %1043 = vmatpush.bf16.msra.mxu0 %v972
    %1044 = vmatmul.bf16.gmra.mxu0 %v843
    %v1045 = vpop.f32.mrf.mxu0
    %v1046 = vadd.f32 0.0, %v1045
    %v1047 = vpop.f32.mrf.mxu0
    %v1048 = vadd.f32 0.0, %v1047
    %1049 = vdwg.mxu0
    %1050 = vmatpush.bf16.msra.mxu0 %v1001
    %1051 = vmatpush.bf16.msra.mxu0 %v997
    %1052 = vmatpush.bf16.msra.mxu0 %v993
    %1053 = vmatpush.bf16.msra.mxu0 %v989
    %1054 = vmatpush.bf16.msra.mxu0 %v985
    %1055 = vmatpush.bf16.msra.mxu0 %v981
    %1056 = vmatpush.bf16.msra.mxu0 %v977
    %1057 = vmatpush.bf16.msra.mxu0 %v973
    %1058 = vmatmul.bf16.gmra.mxu0 %v843
    %v1059 = vpop.f32.mrf.mxu0
    %v1060 = vadd.f32 0.0, %v1059
    %v1061 = vpop.f32.mrf.mxu0
    %v1062 = vadd.f32 0.0, %v1061
    %1063 = vdwg.mxu0
    %1064 = vmatpush.bf16.msra.mxu0 %v1002
    %1065 = vmatpush.bf16.msra.mxu0 %v998
    %1066 = vmatpush.bf16.msra.mxu0 %v994
    %1067 = vmatpush.bf16.msra.mxu0 %v990
    %1068 = vmatpush.bf16.msra.mxu0 %v986
    %1069 = vmatpush.bf16.msra.mxu0 %v982
    %1070 = vmatpush.bf16.msra.mxu0 %v978
    %1071 = vmatpush.bf16.msra.mxu0 %v974
    %1072 = vmatmul.bf16.gmra.mxu0 %v843
    %v1073 = vpop.f32.mrf.mxu0
    %v1074 = vadd.f32 0.0, %v1073
    %v1075 = vpop.f32.mrf.mxu0
    %v1076 = vadd.f32 0.0, %v1075
    %1077 = vdwg.mxu0
    %1078 = vmatpush.bf16.msra.mxu0 %v1003
    %1079 = vmatpush.bf16.msra.mxu0 %v999
    %1080 = vmatpush.bf16.msra.mxu0 %v995
    %1081 = vmatpush.bf16.msra.mxu0 %v991
    %1082 = vmatpush.bf16.msra.mxu0 %v987
    %1083 = vmatpush.bf16.msra.mxu0 %v983
    %1084 = vmatpush.bf16.msra.mxu0 %v979
    %1085 = vmatpush.bf16.msra.mxu0 %v975
    %1086 = vmatmul.bf16.gmra.mxu0 %v843
    %v1087 = vpop.f32.mrf.mxu0
    %v1088 = vadd.f32 0.0, %v1087
    %v1089 = vpop.f32.mrf.mxu0
    %v1090 = vadd.f32 0.0, %v1089
    %1091 = vdwg.mxu0
    %v1092 = vadd.f32 %v831, %v1046
    %v1093 = vadd.f32 %v832, %v1060
    %v1094 = vadd.f32 %v833, %v1074
    %v1095 = vadd.f32 %v834, %v1088
    %v1096 = vadd.f32 %v835, %v1048
    %v1097 = vadd.f32 %v836, %v1062
    %v1098 = vadd.f32 %v837, %v1076
    %v1099 = vadd.f32 %v838, %v1090
    %v1100 = vxor.u32 %v1092, 2147483648
    %v1101 = vxor.u32 %v1096, 2147483648
    %v1102 = vmul.f32 %v1100, 1.442695
    %v1103 = vpow.pop %v1102
    %v1104 = vmul.f32 %v1101, 1.442695
    %v1105 = vpow.pop %v1104
    %v1106 = vadd.f32 %v1103, 1.0
    %v1107 = vadd.f32 %v1105, 1.0
    %v1108 = vrcp.pop %v1106
    %v1109 = vmul.f32 %v1106, %v1108
    %v1110 = vsub.f32 1.0, %v1109
    %v1111 = vmul.f32 %v1108, %v1110
    %v1112 = vadd.f32 %v1108, %v1111
    %vm1113 = vweird.f32 %v1106
    %vm1114 = vweird.f32 %v1108
    %vm1115 = vmor %vm1113, %vm1114
    %v1116 = vsel %vm1115, %v1108, %v1112
    %v1117 = vand.u32 2147483647, %v1106
    %vm1118 = vcmp.eq.f32.partialorder %v1117, 8.507059e+37
    %v1119 = vand.u32 %v1106, 2147483648
    %v1120 = vor.u32 1.1754944e-38, %v1119
    %v1121 = vsel %vm1118, %v1120, %v1116
    %v1122 = vmul.f32 1.0, %v1121
    %v1123 = vrcp.pop %v1107
    %v1124 = vmul.f32 %v1107, %v1123
    %v1125 = vsub.f32 1.0, %v1124
    %v1126 = vmul.f32 %v1123, %v1125
    %v1127 = vadd.f32 %v1123, %v1126
    %vm1128 = vweird.f32 %v1107
    %vm1129 = vweird.f32 %v1123
    %vm1130 = vmor %vm1128, %vm1129
    %v1131 = vsel %vm1130, %v1123, %v1127
    %v1132 = vand.u32 2147483647, %v1107
    %vm1133 = vcmp.eq.f32.partialorder %v1132, 8.507059e+37
    %v1134 = vand.u32 %v1107, 2147483648
    %v1135 = vor.u32 1.1754944e-38, %v1134
    %v1136 = vsel %vm1133, %v1135, %v1131
    %v1137 = vmul.f32 1.0, %v1136
    %v1138 = vxor.u32 %v1093, 2147483648
    %v1139 = vxor.u32 %v1097, 2147483648
    %v1140 = vmul.f32 %v1138, 1.442695
    %v1141 = vpow.pop %v1140
    %v1142 = vmul.f32 %v1139, 1.442695
    %v1143 = vpow.pop %v1142
    %v1144 = vadd.f32 %v1141, 1.0
    %v1145 = vadd.f32 %v1143, 1.0
    %v1146 = vrcp.pop %v1144
    %v1147 = vmul.f32 %v1144, %v1146
    %v1148 = vsub.f32 1.0, %v1147
    %v1149 = vmul.f32 %v1146, %v1148
    %v1150 = vadd.f32 %v1146, %v1149
    %vm1151 = vweird.f32 %v1144
    %vm1152 = vweird.f32 %v1146
    %vm1153 = vmor %vm1151, %vm1152
    %v1154 = vsel %vm1153, %v1146, %v1150
    %v1155 = vand.u32 2147483647, %v1144
    %vm1156 = vcmp.eq.f32.partialorder %v1155, 8.507059e+37
    %v1157 = vand.u32 %v1144, 2147483648
    %v1158 = vor.u32 1.1754944e-38, %v1157
    %v1159 = vsel %vm1156, %v1158, %v1154
    %v1160 = vmul.f32 1.0, %v1159
    %v1161 = vrcp.pop %v1145
    %v1162 = vmul.f32 %v1145, %v1161
    %v1163 = vsub.f32 1.0, %v1162
    %v1164 = vmul.f32 %v1161, %v1163
    %v1165 = vadd.f32 %v1161, %v1164
    %vm1166 = vweird.f32 %v1145
    %vm1167 = vweird.f32 %v1161
    %vm1168 = vmor %vm1166, %vm1167
    %v1169 = vsel %vm1168, %v1161, %v1165
    %v1170 = vand.u32 2147483647, %v1145
    %vm1171 = vcmp.eq.f32.partialorder %v1170, 8.507059e+37
    %v1172 = vand.u32 %v1145, 2147483648
    %v1173 = vor.u32 1.1754944e-38, %v1172
    %v1174 = vsel %vm1171, %v1173, %v1169
    %v1175 = vmul.f32 1.0, %v1174
    %v1176 = vtanh.pop %v1094
    %v1177 = vtanh.pop %v1098
    %v1178 = vxor.u32 %v1095, 2147483648
    %v1179 = vxor.u32 %v1099, 2147483648
    %v1180 = vmul.f32 %v1178, 1.442695
    %v1181 = vpow.pop %v1180
    %v1182 = vmul.f32 %v1179, 1.442695
    %v1183 = vpow.pop %v1182
    %v1184 = vadd.f32 %v1181, 1.0
    %v1185 = vadd.f32 %v1183, 1.0
    %v1186 = vrcp.pop %v1184
    %v1187 = vmul.f32 %v1184, %v1186
    %v1188 = vsub.f32 1.0, %v1187
    %v1189 = vmul.f32 %v1186, %v1188
    %v1190 = vadd.f32 %v1186, %v1189
    %vm1191 = vweird.f32 %v1184
    %vm1192 = vweird.f32 %v1186
    %vm1193 = vmor %vm1191, %vm1192
    %v1194 = vsel %vm1193, %v1186, %v1190
    %v1195 = vand.u32 2147483647, %v1184
    %vm1196 = vcmp.eq.f32.partialorder %v1195, 8.507059e+37
    %v1197 = vand.u32 %v1184, 2147483648
    %v1198 = vor.u32 1.1754944e-38, %v1197
    %v1199 = vsel %vm1196, %v1198, %v1194
    %v1200 = vmul.f32 1.0, %v1199
    %v1201 = vrcp.pop %v1185
    %v1202 = vmul.f32 %v1185, %v1201
    %v1203 = vsub.f32 1.0, %v1202
    %v1204 = vmul.f32 %v1201, %v1203
    %v1205 = vadd.f32 %v1201, %v1204
    %vm1206 = vweird.f32 %v1185
    %vm1207 = vweird.f32 %v1201
    %vm1208 = vmor %vm1206, %vm1207
    %v1209 = vsel %vm1208, %v1201, %v1205
    %v1210 = vand.u32 2147483647, %v1185
    %vm1211 = vcmp.eq.f32.partialorder %v1210, 8.507059e+37
    %v1212 = vand.u32 %v1185, 2147483648
    %v1213 = vor.u32 1.1754944e-38, %v1212
    %v1214 = vsel %vm1211, %v1213, %v1209
    %v1215 = vmul.f32 1.0, %v1214
    %v1216 = vmul.f32 %v1160, %v841
    %v1217 = vmul.f32 %v1175, %v842
    %v1218 = vmul.f32 %v1122, %v1176
    %v1219 = vmul.f32 %v1137, %v1177
    %v1220 = vadd.f32 %v1216, %v1218
    %v1221 = vadd.f32 %v1217, %v1219
    %v1222 = vtanh.pop %v1220
    %v1223 = vtanh.pop %v1221
    %v1224 = vmul.f32 %v1200, %v1222
    %v1225 = vmul.f32 %v1215, %v1223
    %1226 = vst [vmem:[#allocation2] sm:$0xff] %v1224
    %1227 = vst [vmem:[#allocation2 + $0x8] sm:$0xff] %v1225
    %1228 = vst [vmem:[#allocation3] sm:$0xff] %v1220
    %1229 = vst [vmem:[#allocation3 + $0x8] sm:$0xff] %v1221
    %s1230 = scalar_lea.vmem %s0, 192
    %v1231 = vld [vmem:[%s1230] sm:$0xff]
    %v1232 = vld [vmem:[%s1230 + $0x8] sm:$0xff]
    %v1233 = vld [vmem:[%s1230 + $0x10] sm:$0xff]
    %v1234 = vld [vmem:[%s1230 + $0x18] sm:$0xff]
    %v1235 = vld [vmem:[%s1230 + $0x20] sm:$0xff]
    %v1236 = vld [vmem:[%s1230 + $0x28] sm:$0xff]
    %v1237 = vld [vmem:[%s1230 + $0x30] sm:$0xff]
    %v1238 = vld [vmem:[%s1230 + $0x38] sm:$0xff]
    %v1239 = vld [vmem:[#allocation2] sm:$0xff]
    %v1240 = vld [vmem:[#allocation2 + $0x8] sm:$0xff]
    %v1241 = vld [vmem:[#allocation3] sm:$0xff]
    %v1242 = vld [vmem:[#allocation3 + $0x8] sm:$0xff]
    %v1243 = vpack.c.bf16 %v1240, %v1239
    %v1244 = vld [vmem:[#allocation4] sm:$0xff]
    %v1245 = vld [vmem:[#allocation4 + $0x8] sm:$0xff]
    %v1246 = vld [vmem:[#allocation4 + $0x10] sm:$0xff]
    %v1247 = vld [vmem:[#allocation4 + $0x18] sm:$0xff]
    %v1248 = vld [vmem:[#allocation4 + $0x20] sm:$0xff]
    %v1249 = vld [vmem:[#allocation4 + $0x28] sm:$0xff]
    %v1250 = vld [vmem:[#allocation4 + $0x30] sm:$0xff]
    %v1251 = vld [vmem:[#allocation4 + $0x38] sm:$0xff]
    %v1252 = vld [vmem:[#allocation4 + $0x40] sm:$0xff]
    %v1253 = vld [vmem:[#allocation4 + $0x48] sm:$0xff]
    %v1254 = vld [vmem:[#allocation4 + $0x50] sm:$0xff]
    %v1255 = vld [vmem:[#allocation4 + $0x58] sm:$0xff]
    %v1256 = vld [vmem:[#allocation4 + $0x60] sm:$0xff]
    %v1257 = vld [vmem:[#allocation4 + $0x68] sm:$0xff]
    %v1258 = vld [vmem:[#allocation4 + $0x70] sm:$0xff]
    %v1259 = vld [vmem:[#allocation4 + $0x78] sm:$0xff]
    %v1260 = vld [vmem:[#allocation4 + $0x80] sm:$0xff]
    %v1261 = vld [vmem:[#allocation4 + $0x88] sm:$0xff]
    %v1262 = vld [vmem:[#allocation4 + $0x90] sm:$0xff]
    %v1263 = vld [vmem:[#allocation4 + $0x98] sm:$0xff]
    %v1264 = vld [vmem:[#allocation4 + $0xa0] sm:$0xff]
    %v1265 = vld [vmem:[#allocation4 + $0xa8] sm:$0xff]
    %v1266 = vld [vmem:[#allocation4 + $0xb0] sm:$0xff]
    %v1267 = vld [vmem:[#allocation4 + $0xb8] sm:$0xff]
    %v1268 = vld [vmem:[#allocation4 + $0xc0] sm:$0xff]
    %v1269 = vld [vmem:[#allocation4 + $0xc8] sm:$0xff]
    %v1270 = vld [vmem:[#allocation4 + $0xd0] sm:$0xff]
    %v1271 = vld [vmem:[#allocation4 + $0xd8] sm:$0xff]
    %v1272 = vld [vmem:[#allocation4 + $0xe0] sm:$0xff]
    %v1273 = vld [vmem:[#allocation4 + $0xe8] sm:$0xff]
    %v1274 = vld [vmem:[#allocation4 + $0xf0] sm:$0xff]
    %v1275 = vld [vmem:[#allocation4 + $0xf8] sm:$0xff]
    %v1308 = vunpack.c.l.b16 %v1244
    %v1309 = vunpack.c.h.b16 %v1244
    %v1310 = vunpack.c.l.b16 %v1245
    %v1311 = vunpack.c.h.b16 %v1245
    %v1312 = vunpack.c.l.b16 %v1246
    %v1313 = vunpack.c.h.b16 %v1246
    %v1314 = vunpack.c.l.b16 %v1247
    %v1315 = vunpack.c.h.b16 %v1247
    %v1316 = vunpack.c.l.b16 %v1248
    %v1317 = vunpack.c.h.b16 %v1248
    %v1318 = vunpack.c.l.b16 %v1249
    %v1319 = vunpack.c.h.b16 %v1249
    %v1320 = vunpack.c.l.b16 %v1250
    %v1321 = vunpack.c.h.b16 %v1250
    %v1322 = vunpack.c.l.b16 %v1251
    %v1323 = vunpack.c.h.b16 %v1251
    %v1324 = vunpack.c.l.b16 %v1252
    %v1325 = vunpack.c.h.b16 %v1252
    %v1326 = vunpack.c.l.b16 %v1253
    %v1327 = vunpack.c.h.b16 %v1253
    %v1328 = vunpack.c.l.b16 %v1254
    %v1329 = vunpack.c.h.b16 %v1254
    %v1330 = vunpack.c.l.b16 %v1255
    %v1331 = vunpack.c.h.b16 %v1255
    %v1332 = vunpack.c.l.b16 %v1256
    %v1333 = vunpack.c.h.b16 %v1256
    %v1334 = vunpack.c.l.b16 %v1257
    %v1335 = vunpack.c.h.b16 %v1257
    %v1336 = vunpack.c.l.b16 %v1258
    %v1337 = vunpack.c.h.b16 %v1258
    %v1338 = vunpack.c.l.b16 %v1259
    %v1339 = vunpack.c.h.b16 %v1259
    %v1340 = vunpack.c.l.b16 %v1260
    %v1341 = vunpack.c.h.b16 %v1260
    %v1342 = vunpack.c.l.b16 %v1261
    %v1343 = vunpack.c.h.b16 %v1261
    %v1344 = vunpack.c.l.b16 %v1262
    %v1345 = vunpack.c.h.b16 %v1262
    %v1346 = vunpack.c.l.b16 %v1263
    %v1347 = vunpack.c.h.b16 %v1263
    %v1348 = vunpack.c.l.b16 %v1264
    %v1349 = vunpack.c.h.b16 %v1264
    %v1350 = vunpack.c.l.b16 %v1265
    %v1351 = vunpack.c.h.b16 %v1265
    %v1352 = vunpack.c.l.b16 %v1266
    %v1353 = vunpack.c.h.b16 %v1266
    %v1354 = vunpack.c.l.b16 %v1267
    %v1355 = vunpack.c.h.b16 %v1267
    %v1356 = vunpack.c.l.b16 %v1268
    %v1357 = vunpack.c.h.b16 %v1268
    %v1358 = vunpack.c.l.b16 %v1269
    %v1359 = vunpack.c.h.b16 %v1269
    %v1360 = vunpack.c.l.b16 %v1270
    %v1361 = vunpack.c.h.b16 %v1270
    %v1362 = vunpack.c.l.b16 %v1271
    %v1363 = vunpack.c.h.b16 %v1271
    %v1364 = vunpack.c.l.b16 %v1272
    %v1365 = vunpack.c.h.b16 %v1272
    %v1366 = vunpack.c.l.b16 %v1273
    %v1367 = vunpack.c.h.b16 %v1273
    %v1368 = vunpack.c.l.b16 %v1274
    %v1369 = vunpack.c.h.b16 %v1274
    %v1370 = vunpack.c.l.b16 %v1275
    %v1371 = vunpack.c.h.b16 %v1275
    %v1372 = vpack.c.b16 %v1312, %v1308
    %v1373 = vpack.c.b16 %v1313, %v1309
    %v1374 = vpack.c.b16 %v1314, %v1310
    %v1375 = vpack.c.b16 %v1315, %v1311
    %v1376 = vpack.c.b16 %v1320, %v1316
    %v1377 = vpack.c.b16 %v1321, %v1317
    %v1378 = vpack.c.b16 %v1322, %v1318
    %v1379 = vpack.c.b16 %v1323, %v1319
    %v1380 = vpack.c.b16 %v1328, %v1324
    %v1381 = vpack.c.b16 %v1329, %v1325
    %v1382 = vpack.c.b16 %v1330, %v1326
    %v1383 = vpack.c.b16 %v1331, %v1327
    %v1384 = vpack.c.b16 %v1336, %v1332
    %v1385 = vpack.c.b16 %v1337, %v1333
    %v1386 = vpack.c.b16 %v1338, %v1334
    %v1387 = vpack.c.b16 %v1339, %v1335
    %v1388 = vpack.c.b16 %v1344, %v1340
    %v1389 = vpack.c.b16 %v1345, %v1341
    %v1390 = vpack.c.b16 %v1346, %v1342
    %v1391 = vpack.c.b16 %v1347, %v1343
    %v1392 = vpack.c.b16 %v1352, %v1348
    %v1393 = vpack.c.b16 %v1353, %v1349
    %v1394 = vpack.c.b16 %v1354, %v1350
    %v1395 = vpack.c.b16 %v1355, %v1351
    %v1396 = vpack.c.b16 %v1360, %v1356
    %v1397 = vpack.c.b16 %v1361, %v1357
    %v1398 = vpack.c.b16 %v1362, %v1358
    %v1399 = vpack.c.b16 %v1363, %v1359
    %v1400 = vpack.c.b16 %v1368, %v1364
    %v1401 = vpack.c.b16 %v1369, %v1365
    %v1402 = vpack.c.b16 %v1370, %v1366
    %v1403 = vpack.c.b16 %v1371, %v1367
    %1436 = vmatpush.bf16.msra.mxu0 %v1400
    %1437 = vmatpush.bf16.msra.mxu0 %v1396
    %1438 = vmatpush.bf16.msra.mxu0 %v1392
    %1439 = vmatpush.bf16.msra.mxu0 %v1388
    %1440 = vmatpush.bf16.msra.mxu0 %v1384
    %1441 = vmatpush.bf16.msra.mxu0 %v1380
    %1442 = vmatpush.bf16.msra.mxu0 %v1376
    %1443 = vmatpush.bf16.msra.mxu0 %v1372
    %1444 = vmatmul.bf16.gmra.mxu0 %v1243
    %v1445 = vpop.f32.mrf.mxu0
    %v1446 = vadd.f32 0.0, %v1445
    %v1447 = vpop.f32.mrf.mxu0
    %v1448 = vadd.f32 0.0, %v1447
    %1449 = vdwg.mxu0
    %1450 = vmatpush.bf16.msra.mxu0 %v1401
    %1451 = vmatpush.bf16.msra.mxu0 %v1397
    %1452 = vmatpush.bf16.msra.mxu0 %v1393
    %1453 = vmatpush.bf16.msra.mxu0 %v1389
    %1454 = vmatpush.bf16.msra.mxu0 %v1385
    %1455 = vmatpush.bf16.msra.mxu0 %v1381
    %1456 = vmatpush.bf16.msra.mxu0 %v1377
    %1457 = vmatpush.bf16.msra.mxu0 %v1373
    %1458 = vmatmul.bf16.gmra.mxu0 %v1243
    %v1459 = vpop.f32.mrf.mxu0
    %v1460 = vadd.f32 0.0, %v1459
    %v1461 = vpop.f32.mrf.mxu0
    %v1462 = vadd.f32 0.0, %v1461
    %1463 = vdwg.mxu0
    %1464 = vmatpush.bf16.msra.mxu0 %v1402
    %1465 = vmatpush.bf16.msra.mxu0 %v1398
    %1466 = vmatpush.bf16.msra.mxu0 %v1394
    %1467 = vmatpush.bf16.msra.mxu0 %v1390
    %1468 = vmatpush.bf16.msra.mxu0 %v1386
    %1469 = vmatpush.bf16.msra.mxu0 %v1382
    %1470 = vmatpush.bf16.msra.mxu0 %v1378
    %1471 = vmatpush.bf16.msra.mxu0 %v1374
    %1472 = vmatmul.bf16.gmra.mxu0 %v1243
    %v1473 = vpop.f32.mrf.mxu0
    %v1474 = vadd.f32 0.0, %v1473
    %v1475 = vpop.f32.mrf.mxu0
    %v1476 = vadd.f32 0.0, %v1475
    %1477 = vdwg.mxu0
    %1478 = vmatpush.bf16.msra.mxu0 %v1403
    %1479 = vmatpush.bf16.msra.mxu0 %v1399
    %1480 = vmatpush.bf16.msra.mxu0 %v1395
    %1481 = vmatpush.bf16.msra.mxu0 %v1391
    %1482 = vmatpush.bf16.msra.mxu0 %v1387
    %1483 = vmatpush.bf16.msra.mxu0 %v1383
    %1484 = vmatpush.bf16.msra.mxu0 %v1379
    %1485 = vmatpush.bf16.msra.mxu0 %v1375
    %1486 = vmatmul.bf16.gmra.mxu0 %v1243
    %v1487 = vpop.f32.mrf.mxu0
    %v1488 = vadd.f32 0.0, %v1487
    %v1489 = vpop.f32.mrf.mxu0
    %v1490 = vadd.f32 0.0, %v1489
    %1491 = vdwg.mxu0
    %v1492 = vadd.f32 %v1231, %v1446
    %v1493 = vadd.f32 %v1232, %v1460
    %v1494 = vadd.f32 %v1233, %v1474
    %v1495 = vadd.f32 %v1234, %v1488
    %v1496 = vadd.f32 %v1235, %v1448
    %v1497 = vadd.f32 %v1236, %v1462
    %v1498 = vadd.f32 %v1237, %v1476
    %v1499 = vadd.f32 %v1238, %v1490
    %v1500 = vxor.u32 %v1492, 2147483648
    %v1501 = vxor.u32 %v1496, 2147483648
    %v1502 = vmul.f32 %v1500, 1.442695
    %v1503 = vpow.pop %v1502
    %v1504 = vmul.f32 %v1501, 1.442695
    %v1505 = vpow.pop %v1504
    %v1506 = vadd.f32 %v1503, 1.0
    %v1507 = vadd.f32 %v1505, 1.0
    %v1508 = vrcp.pop %v1506
    %v1509 = vmul.f32 %v1506, %v1508
    %v1510 = vsub.f32 1.0, %v1509
    %v1511 = vmul.f32 %v1508, %v1510
    %v1512 = vadd.f32 %v1508, %v1511
    %vm1513 = vweird.f32 %v1506
    %vm1514 = vweird.f32 %v1508
    %vm1515 = vmor %vm1513, %vm1514
    %v1516 = vsel %vm1515, %v1508, %v1512
    %v1517 = vand.u32 2147483647, %v1506
    %vm1518 = vcmp.eq.f32.partialorder %v1517, 8.507059e+37
    %v1519 = vand.u32 %v1506, 2147483648
    %v1520 = vor.u32 1.1754944e-38, %v1519
    %v1521 = vsel %vm1518, %v1520, %v1516
    %v1522 = vmul.f32 1.0, %v1521
    %v1523 = vrcp.pop %v1507
    %v1524 = vmul.f32 %v1507, %v1523
    %v1525 = vsub.f32 1.0, %v1524
    %v1526 = vmul.f32 %v1523, %v1525
    %v1527 = vadd.f32 %v1523, %v1526
    %vm1528 = vweird.f32 %v1507
    %vm1529 = vweird.f32 %v1523
    %vm1530 = vmor %vm1528, %vm1529
    %v1531 = vsel %vm1530, %v1523, %v1527
    %v1532 = vand.u32 2147483647, %v1507
    %vm1533 = vcmp.eq.f32.partialorder %v1532, 8.507059e+37
    %v1534 = vand.u32 %v1507, 2147483648
    %v1535 = vor.u32 1.1754944e-38, %v1534
    %v1536 = vsel %vm1533, %v1535, %v1531
    %v1537 = vmul.f32 1.0, %v1536
    %v1538 = vxor.u32 %v1493, 2147483648
    %v1539 = vxor.u32 %v1497, 2147483648
    %v1540 = vmul.f32 %v1538, 1.442695
    %v1541 = vpow.pop %v1540
    %v1542 = vmul.f32 %v1539, 1.442695
    %v1543 = vpow.pop %v1542
    %v1544 = vadd.f32 %v1541, 1.0
    %v1545 = vadd.f32 %v1543, 1.0
    %v1546 = vrcp.pop %v1544
    %v1547 = vmul.f32 %v1544, %v1546
    %v1548 = vsub.f32 1.0, %v1547
    %v1549 = vmul.f32 %v1546, %v1548
    %v1550 = vadd.f32 %v1546, %v1549
    %vm1551 = vweird.f32 %v1544
    %vm1552 = vweird.f32 %v1546
    %vm1553 = vmor %vm1551, %vm1552
    %v1554 = vsel %vm1553, %v1546, %v1550
    %v1555 = vand.u32 2147483647, %v1544
    %vm1556 = vcmp.eq.f32.partialorder %v1555, 8.507059e+37
    %v1557 = vand.u32 %v1544, 2147483648
    %v1558 = vor.u32 1.1754944e-38, %v1557
    %v1559 = vsel %vm1556, %v1558, %v1554
    %v1560 = vmul.f32 1.0, %v1559
    %v1561 = vrcp.pop %v1545
    %v1562 = vmul.f32 %v1545, %v1561
    %v1563 = vsub.f32 1.0, %v1562
    %v1564 = vmul.f32 %v1561, %v1563
    %v1565 = vadd.f32 %v1561, %v1564
    %vm1566 = vweird.f32 %v1545
    %vm1567 = vweird.f32 %v1561
    %vm1568 = vmor %vm1566, %vm1567
    %v1569 = vsel %vm1568, %v1561, %v1565
    %v1570 = vand.u32 2147483647, %v1545
    %vm1571 = vcmp.eq.f32.partialorder %v1570, 8.507059e+37
    %v1572 = vand.u32 %v1545, 2147483648
    %v1573 = vor.u32 1.1754944e-38, %v1572
    %v1574 = vsel %vm1571, %v1573, %v1569
    %v1575 = vmul.f32 1.0, %v1574
    %v1576 = vtanh.pop %v1494
    %v1577 = vtanh.pop %v1498
    %v1578 = vxor.u32 %v1495, 2147483648
    %v1579 = vxor.u32 %v1499, 2147483648
    %v1580 = vmul.f32 %v1578, 1.442695
    %v1581 = vpow.pop %v1580
    %v1582 = vmul.f32 %v1579, 1.442695
    %v1583 = vpow.pop %v1582
    %v1584 = vadd.f32 %v1581, 1.0
    %v1585 = vadd.f32 %v1583, 1.0
    %v1586 = vrcp.pop %v1584
    %v1587 = vmul.f32 %v1584, %v1586
    %v1588 = vsub.f32 1.0, %v1587
    %v1589 = vmul.f32 %v1586, %v1588
    %v1590 = vadd.f32 %v1586, %v1589
    %vm1591 = vweird.f32 %v1584
    %vm1592 = vweird.f32 %v1586
    %vm1593 = vmor %vm1591, %vm1592
    %v1594 = vsel %vm1593, %v1586, %v1590
    %v1595 = vand.u32 2147483647, %v1584
    %vm1596 = vcmp.eq.f32.partialorder %v1595, 8.507059e+37
    %v1597 = vand.u32 %v1584, 2147483648
    %v1598 = vor.u32 1.1754944e-38, %v1597
    %v1599 = vsel %vm1596, %v1598, %v1594
    %v1600 = vmul.f32 1.0, %v1599
    %v1601 = vrcp.pop %v1585
    %v1602 = vmul.f32 %v1585, %v1601
    %v1603 = vsub.f32 1.0, %v1602
    %v1604 = vmul.f32 %v1601, %v1603
    %v1605 = vadd.f32 %v1601, %v1604
    %vm1606 = vweird.f32 %v1585
    %vm1607 = vweird.f32 %v1601
    %vm1608 = vmor %vm1606, %vm1607
    %v1609 = vsel %vm1608, %v1601, %v1605
    %v1610 = vand.u32 2147483647, %v1585
    %vm1611 = vcmp.eq.f32.partialorder %v1610, 8.507059e+37
    %v1612 = vand.u32 %v1585, 2147483648
    %v1613 = vor.u32 1.1754944e-38, %v1612
    %v1614 = vsel %vm1611, %v1613, %v1609
    %v1615 = vmul.f32 1.0, %v1614
    %v1616 = vmul.f32 %v1560, %v1241
    %v1617 = vmul.f32 %v1575, %v1242
    %v1618 = vmul.f32 %v1522, %v1576
    %v1619 = vmul.f32 %v1537, %v1577
    %v1620 = vadd.f32 %v1616, %v1618
    %v1621 = vadd.f32 %v1617, %v1619
    %v1622 = vtanh.pop %v1620
    %v1623 = vtanh.pop %v1621
    %v1624 = vmul.f32 %v1600, %v1622
    %v1625 = vmul.f32 %v1615, %v1623
    %1626 = vst [vmem:[#allocation2] sm:$0xff] %v1624
    %1627 = vst [vmem:[#allocation2 + $0x8] sm:$0xff] %v1625
    %1628 = vst [vmem:[#allocation3] sm:$0xff] %v1620
    %1629 = vst [vmem:[#allocation3 + $0x8] sm:$0xff] %v1621
    %s1630 = scalar_lea.vmem %s0, 256
    %v1631 = vld [vmem:[%s1630] sm:$0xff]
    %v1632 = vld [vmem:[%s1630 + $0x8] sm:$0xff]
    %v1633 = vld [vmem:[%s1630 + $0x10] sm:$0xff]
    %v1634 = vld [vmem:[%s1630 + $0x18] sm:$0xff]
    %v1635 = vld [vmem:[%s1630 + $0x20] sm:$0xff]
    %v1636 = vld [vmem:[%s1630 + $0x28] sm:$0xff]
    %v1637 = vld [vmem:[%s1630 + $0x30] sm:$0xff]
    %v1638 = vld [vmem:[%s1630 + $0x38] sm:$0xff]
    %v1639 = vld [vmem:[#allocation2] sm:$0xff]
    %v1640 = vld [vmem:[#allocation2 + $0x8] sm:$0xff]
    %v1641 = vld [vmem:[#allocation3] sm:$0xff]
    %v1642 = vld [vmem:[#allocation3 + $0x8] sm:$0xff]
    %v1643 = vpack.c.bf16 %v1640, %v1639
    %v1644 = vld [vmem:[#allocation4] sm:$0xff]
    %v1645 = vld [vmem:[#allocation4 + $0x8] sm:$0xff]
    %v1646 = vld [vmem:[#allocation4 + $0x10] sm:$0xff]
    %v1647 = vld [vmem:[#allocation4 + $0x18] sm:$0xff]
    %v1648 = vld [vmem:[#allocation4 + $0x20] sm:$0xff]
    %v1649 = vld [vmem:[#allocation4 + $0x28] sm:$0xff]
    %v1650 = vld [vmem:[#allocation4 + $0x30] sm:$0xff]
    %v1651 = vld [vmem:[#allocation4 + $0x38] sm:$0xff]
    %v1652 = vld [vmem:[#allocation4 + $0x40] sm:$0xff]
    %v1653 = vld [vmem:[#allocation4 + $0x48] sm:$0xff]
    %v1654 = vld [vmem:[#allocation4 + $0x50] sm:$0xff]
    %v1655 = vld [vmem:[#allocation4 + $0x58] sm:$0xff]
    %v1656 = vld [vmem:[#allocation4 + $0x60] sm:$0xff]
    %v1657 = vld [vmem:[#allocation4 + $0x68] sm:$0xff]
    %v1658 = vld [vmem:[#allocation4 + $0x70] sm:$0xff]
    %v1659 = vld [vmem:[#allocation4 + $0x78] sm:$0xff]
    %v1660 = vld [vmem:[#allocation4 + $0x80] sm:$0xff]
    %v1661 = vld [vmem:[#allocation4 + $0x88] sm:$0xff]
    %v1662 = vld [vmem:[#allocation4 + $0x90] sm:$0xff]
    %v1663 = vld [vmem:[#allocation4 + $0x98] sm:$0xff]
    %v1664 = vld [vmem:[#allocation4 + $0xa0] sm:$0xff]
    %v1665 = vld [vmem:[#allocation4 + $0xa8] sm:$0xff]
    %v1666 = vld [vmem:[#allocation4 + $0xb0] sm:$0xff]
    %v1667 = vld [vmem:[#allocation4 + $0xb8] sm:$0xff]
    %v1668 = vld [vmem:[#allocation4 + $0xc0] sm:$0xff]
    %v1669 = vld [vmem:[#allocation4 + $0xc8] sm:$0xff]
    %v1670 = vld [vmem:[#allocation4 + $0xd0] sm:$0xff]
    %v1671 = vld [vmem:[#allocation4 + $0xd8] sm:$0xff]
    %v1672 = vld [vmem:[#allocation4 + $0xe0] sm:$0xff]
    %v1673 = vld [vmem:[#allocation4 + $0xe8] sm:$0xff]
    %v1674 = vld [vmem:[#allocation4 + $0xf0] sm:$0xff]
    %v1675 = vld [vmem:[#allocation4 + $0xf8] sm:$0xff]
    %v1708 = vunpack.c.l.b16 %v1644
    %v1709 = vunpack.c.h.b16 %v1644
    %v1710 = vunpack.c.l.b16 %v1645
    %v1711 = vunpack.c.h.b16 %v1645
    %v1712 = vunpack.c.l.b16 %v1646
    %v1713 = vunpack.c.h.b16 %v1646
    %v1714 = vunpack.c.l.b16 %v1647
    %v1715 = vunpack.c.h.b16 %v1647
    %v1716 = vunpack.c.l.b16 %v1648
    %v1717 = vunpack.c.h.b16 %v1648
    %v1718 = vunpack.c.l.b16 %v1649
    %v1719 = vunpack.c.h.b16 %v1649
    %v1720 = vunpack.c.l.b16 %v1650
    %v1721 = vunpack.c.h.b16 %v1650
    %v1722 = vunpack.c.l.b16 %v1651
    %v1723 = vunpack.c.h.b16 %v1651
    %v1724 = vunpack.c.l.b16 %v1652
    %v1725 = vunpack.c.h.b16 %v1652
    %v1726 = vunpack.c.l.b16 %v1653
    %v1727 = vunpack.c.h.b16 %v1653
    %v1728 = vunpack.c.l.b16 %v1654
    %v1729 = vunpack.c.h.b16 %v1654
    %v1730 = vunpack.c.l.b16 %v1655
    %v1731 = vunpack.c.h.b16 %v1655
    %v1732 = vunpack.c.l.b16 %v1656
    %v1733 = vunpack.c.h.b16 %v1656
    %v1734 = vunpack.c.l.b16 %v1657
    %v1735 = vunpack.c.h.b16 %v1657
    %v1736 = vunpack.c.l.b16 %v1658
    %v1737 = vunpack.c.h.b16 %v1658
    %v1738 = vunpack.c.l.b16 %v1659
    %v1739 = vunpack.c.h.b16 %v1659
    %v1740 = vunpack.c.l.b16 %v1660
    %v1741 = vunpack.c.h.b16 %v1660
    %v1742 = vunpack.c.l.b16 %v1661
    %v1743 = vunpack.c.h.b16 %v1661
    %v1744 = vunpack.c.l.b16 %v1662
    %v1745 = vunpack.c.h.b16 %v1662
    %v1746 = vunpack.c.l.b16 %v1663
    %v1747 = vunpack.c.h.b16 %v1663
    %v1748 = vunpack.c.l.b16 %v1664
    %v1749 = vunpack.c.h.b16 %v1664
    %v1750 = vunpack.c.l.b16 %v1665
    %v1751 = vunpack.c.h.b16 %v1665
    %v1752 = vunpack.c.l.b16 %v1666
    %v1753 = vunpack.c.h.b16 %v1666
    %v1754 = vunpack.c.l.b16 %v1667
    %v1755 = vunpack.c.h.b16 %v1667
    %v1756 = vunpack.c.l.b16 %v1668
    %v1757 = vunpack.c.h.b16 %v1668
    %v1758 = vunpack.c.l.b16 %v1669
    %v1759 = vunpack.c.h.b16 %v1669
    %v1760 = vunpack.c.l.b16 %v1670
    %v1761 = vunpack.c.h.b16 %v1670
    %v1762 = vunpack.c.l.b16 %v1671
    %v1763 = vunpack.c.h.b16 %v1671
    %v1764 = vunpack.c.l.b16 %v1672
    %v1765 = vunpack.c.h.b16 %v1672
    %v1766 = vunpack.c.l.b16 %v1673
    %v1767 = vunpack.c.h.b16 %v1673
    %v1768 = vunpack.c.l.b16 %v1674
    %v1769 = vunpack.c.h.b16 %v1674
    %v1770 = vunpack.c.l.b16 %v1675
    %v1771 = vunpack.c.h.b16 %v1675
    %v1772 = vpack.c.b16 %v1712, %v1708
    %v1773 = vpack.c.b16 %v1713, %v1709
    %v1774 = vpack.c.b16 %v1714, %v1710
    %v1775 = vpack.c.b16 %v1715, %v1711
    %v1776 = vpack.c.b16 %v1720, %v1716
    %v1777 = vpack.c.b16 %v1721, %v1717
    %v1778 = vpack.c.b16 %v1722, %v1718
    %v1779 = vpack.c.b16 %v1723, %v1719
    %v1780 = vpack.c.b16 %v1728, %v1724
    %v1781 = vpack.c.b16 %v1729, %v1725
    %v1782 = vpack.c.b16 %v1730, %v1726
    %v1783 = vpack.c.b16 %v1731, %v1727
    %v1784 = vpack.c.b16 %v1736, %v1732
    %v1785 = vpack.c.b16 %v1737, %v1733
    %v1786 = vpack.c.b16 %v1738, %v1734
    %v1787 = vpack.c.b16 %v1739, %v1735
    %v1788 = vpack.c.b16 %v1744, %v1740
    %v1789 = vpack.c.b16 %v1745, %v1741
    %v1790 = vpack.c.b16 %v1746, %v1742
    %v1791 = vpack.c.b16 %v1747, %v1743
    %v1792 = vpack.c.b16 %v1752, %v1748
    %v1793 = vpack.c.b16 %v1753, %v1749
    %v1794 = vpack.c.b16 %v1754, %v1750
    %v1795 = vpack.c.b16 %v1755, %v1751
    %v1796 = vpack.c.b16 %v1760, %v1756
    %v1797 = vpack.c.b16 %v1761, %v1757
    %v1798 = vpack.c.b16 %v1762, %v1758
    %v1799 = vpack.c.b16 %v1763, %v1759
    %v1800 = vpack.c.b16 %v1768, %v1764
    %v1801 = vpack.c.b16 %v1769, %v1765
    %v1802 = vpack.c.b16 %v1770, %v1766
    %v1803 = vpack.c.b16 %v1771, %v1767
    %1836 = vmatpush.bf16.msra.mxu0 %v1800
    %1837 = vmatpush.bf16.msra.mxu0 %v1796
    %1838 = vmatpush.bf16.msra.mxu0 %v1792
    %1839 = vmatpush.bf16.msra.mxu0 %v1788
    %1840 = vmatpush.bf16.msra.mxu0 %v1784
    %1841 = vmatpush.bf16.msra.mxu0 %v1780
    %1842 = vmatpush.bf16.msra.mxu0 %v1776
    %1843 = vmatpush.bf16.msra.mxu0 %v1772
    %1844 = vmatmul.bf16.gmra.mxu0 %v1643
    %v1845 = vpop.f32.mrf.mxu0
    %v1846 = vadd.f32 0.0, %v1845
    %v1847 = vpop.f32.mrf.mxu0
    %v1848 = vadd.f32 0.0, %v1847
    %1849 = vdwg.mxu0
    %1850 = vmatpush.bf16.msra.mxu0 %v1801
    %1851 = vmatpush.bf16.msra.mxu0 %v1797
    %1852 = vmatpush.bf16.msra.mxu0 %v1793
    %1853 = vmatpush.bf16.msra.mxu0 %v1789
    %1854 = vmatpush.bf16.msra.mxu0 %v1785
    %1855 = vmatpush.bf16.msra.mxu0 %v1781
    %1856 = vmatpush.bf16.msra.mxu0 %v1777
    %1857 = vmatpush.bf16.msra.mxu0 %v1773
    %1858 = vmatmul.bf16.gmra.mxu0 %v1643
    %v1859 = vpop.f32.mrf.mxu0
    %v1860 = vadd.f32 0.0, %v1859
    %v1861 = vpop.f32.mrf.mxu0
    %v1862 = vadd.f32 0.0, %v1861
    %1863 = vdwg.mxu0
    %1864 = vmatpush.bf16.msra.mxu0 %v1802
    %1865 = vmatpush.bf16.msra.mxu0 %v1798
    %1866 = vmatpush.bf16.msra.mxu0 %v1794
    %1867 = vmatpush.bf16.msra.mxu0 %v1790
    %1868 = vmatpush.bf16.msra.mxu0 %v1786
    %1869 = vmatpush.bf16.msra.mxu0 %v1782
    %1870 = vmatpush.bf16.msra.mxu0 %v1778
    %1871 = vmatpush.bf16.msra.mxu0 %v1774
    %1872 = vmatmul.bf16.gmra.mxu0 %v1643
    %v1873 = vpop.f32.mrf.mxu0
    %v1874 = vadd.f32 0.0, %v1873
    %v1875 = vpop.f32.mrf.mxu0
    %v1876 = vadd.f32 0.0, %v1875
    %1877 = vdwg.mxu0
    %1878 = vmatpush.bf16.msra.mxu0 %v1803
    %1879 = vmatpush.bf16.msra.mxu0 %v1799
    %1880 = vmatpush.bf16.msra.mxu0 %v1795
    %1881 = vmatpush.bf16.msra.mxu0 %v1791
    %1882 = vmatpush.bf16.msra.mxu0 %v1787
    %1883 = vmatpush.bf16.msra.mxu0 %v1783
    %1884 = vmatpush.bf16.msra.mxu0 %v1779
    %1885 = vmatpush.bf16.msra.mxu0 %v1775
    %1886 = vmatmul.bf16.gmra.mxu0 %v1643
    %v1887 = vpop.f32.mrf.mxu0
    %v1888 = vadd.f32 0.0, %v1887
    %v1889 = vpop.f32.mrf.mxu0
    %v1890 = vadd.f32 0.0, %v1889
    %1891 = vdwg.mxu0
    %v1892 = vadd.f32 %v1631, %v1846
    %v1893 = vadd.f32 %v1632, %v1860
    %v1894 = vadd.f32 %v1633, %v1874
    %v1895 = vadd.f32 %v1634, %v1888
    %v1896 = vadd.f32 %v1635, %v1848
    %v1897 = vadd.f32 %v1636, %v1862
    %v1898 = vadd.f32 %v1637, %v1876
    %v1899 = vadd.f32 %v1638, %v1890
    %v1900 = vxor.u32 %v1892, 2147483648
    %v1901 = vxor.u32 %v1896, 2147483648
    %v1902 = vmul.f32 %v1900, 1.442695
    %v1903 = vpow.pop %v1902
    %v1904 = vmul.f32 %v1901, 1.442695
    %v1905 = vpow.pop %v1904
    %v1906 = vadd.f32 %v1903, 1.0
    %v1907 = vadd.f32 %v1905, 1.0
    %v1908 = vrcp.pop %v1906
    %v1909 = vmul.f32 %v1906, %v1908
    %v1910 = vsub.f32 1.0, %v1909
    %v1911 = vmul.f32 %v1908, %v1910
    %v1912 = vadd.f32 %v1908, %v1911
    %vm1913 = vweird.f32 %v1906
    %vm1914 = vweird.f32 %v1908
    %vm1915 = vmor %vm1913, %vm1914
    %v1916 = vsel %vm1915, %v1908, %v1912
    %v1917 = vand.u32 2147483647, %v1906
    %vm1918 = vcmp.eq.f32.partialorder %v1917, 8.507059e+37
    %v1919 = vand.u32 %v1906, 2147483648
    %v1920 = vor.u32 1.1754944e-38, %v1919
    %v1921 = vsel %vm1918, %v1920, %v1916
    %v1922 = vmul.f32 1.0, %v1921
    %v1923 = vrcp.pop %v1907
    %v1924 = vmul.f32 %v1907, %v1923
    %v1925 = vsub.f32 1.0, %v1924
    %v1926 = vmul.f32 %v1923, %v1925
    %v1927 = vadd.f32 %v1923, %v1926
    %vm1928 = vweird.f32 %v1907
    %vm1929 = vweird.f32 %v1923
    %vm1930 = vmor %vm1928, %vm1929
    %v1931 = vsel %vm1930, %v1923, %v1927
    %v1932 = vand.u32 2147483647, %v1907
    %vm1933 = vcmp.eq.f32.partialorder %v1932, 8.507059e+37
    %v1934 = vand.u32 %v1907, 2147483648
    %v1935 = vor.u32 1.1754944e-38, %v1934
    %v1936 = vsel %vm1933, %v1935, %v1931
    %v1937 = vmul.f32 1.0, %v1936
    %v1938 = vxor.u32 %v1893, 2147483648
    %v1939 = vxor.u32 %v1897, 2147483648
    %v1940 = vmul.f32 %v1938, 1.442695
    %v1941 = vpow.pop %v1940
    %v1942 = vmul.f32 %v1939, 1.442695
    %v1943 = vpow.pop %v1942
    %v1944 = vadd.f32 %v1941, 1.0
    %v1945 = vadd.f32 %v1943, 1.0
    %v1946 = vrcp.pop %v1944
    %v1947 = vmul.f32 %v1944, %v1946
    %v1948 = vsub.f32 1.0, %v1947
    %v1949 = vmul.f32 %v1946, %v1948
    %v1950 = vadd.f32 %v1946, %v1949
    %vm1951 = vweird.f32 %v1944
    %vm1952 = vweird.f32 %v1946
    %vm1953 = vmor %vm1951, %vm1952
    %v1954 = vsel %vm1953, %v1946, %v1950
    %v1955 = vand.u32 2147483647, %v1944
    %vm1956 = vcmp.eq.f32.partialorder %v1955, 8.507059e+37
    %v1957 = vand.u32 %v1944, 2147483648
    %v1958 = vor.u32 1.1754944e-38, %v1957
    %v1959 = vsel %vm1956, %v1958, %v1954
    %v1960 = vmul.f32 1.0, %v1959
    %v1961 = vrcp.pop %v1945
    %v1962 = vmul.f32 %v1945, %v1961
    %v1963 = vsub.f32 1.0, %v1962
    %v1964 = vmul.f32 %v1961, %v1963
    %v1965 = vadd.f32 %v1961, %v1964
    %vm1966 = vweird.f32 %v1945
    %vm1967 = vweird.f32 %v1961
    %vm1968 = vmor %vm1966, %vm1967
    %v1969 = vsel %vm1968, %v1961, %v1965
    %v1970 = vand.u32 2147483647, %v1945
    %vm1971 = vcmp.eq.f32.partialorder %v1970, 8.507059e+37
    %v1972 = vand.u32 %v1945, 2147483648
    %v1973 = vor.u32 1.1754944e-38, %v1972
    %v1974 = vsel %vm1971, %v1973, %v1969
    %v1975 = vmul.f32 1.0, %v1974
    %v1976 = vtanh.pop %v1894
    %v1977 = vtanh.pop %v1898
    %v1978 = vxor.u32 %v1895, 2147483648
    %v1979 = vxor.u32 %v1899, 2147483648
    %v1980 = vmul.f32 %v1978, 1.442695
    %v1981 = vpow.pop %v1980
    %v1982 = vmul.f32 %v1979, 1.442695
    %v1983 = vpow.pop %v1982
    %v1984 = vadd.f32 %v1981, 1.0
    %v1985 = vadd.f32 %v1983, 1.0
    %v1986 = vrcp.pop %v1984
    %v1987 = vmul.f32 %v1984, %v1986
    %v1988 = vsub.f32 1.0, %v1987
    %v1989 = vmul.f32 %v1986, %v1988
    %v1990 = vadd.f32 %v1986, %v1989
    %vm1991 = vweird.f32 %v1984
    %vm1992 = vweird.f32 %v1986
    %vm1993 = vmor %vm1991, %vm1992
    %v1994 = vsel %vm1993, %v1986, %v1990
    %v1995 = vand.u32 2147483647, %v1984
    %vm1996 = vcmp.eq.f32.partialorder %v1995, 8.507059e+37
    %v1997 = vand.u32 %v1984, 2147483648
    %v1998 = vor.u32 1.1754944e-38, %v1997
    %v1999 = vsel %vm1996, %v1998, %v1994
    %v2000 = vmul.f32 1.0, %v1999
    %v2001 = vrcp.pop %v1985
    %v2002 = vmul.f32 %v1985, %v2001
    %v2003 = vsub.f32 1.0, %v2002
    %v2004 = vmul.f32 %v2001, %v2003
    %v2005 = vadd.f32 %v2001, %v2004
    %vm2006 = vweird.f32 %v1985
    %vm2007 = vweird.f32 %v2001
    %vm2008 = vmor %vm2006, %vm2007
    %v2009 = vsel %vm2008, %v2001, %v2005
    %v2010 = vand.u32 2147483647, %v1985
    %vm2011 = vcmp.eq.f32.partialorder %v2010, 8.507059e+37
    %v2012 = vand.u32 %v1985, 2147483648
    %v2013 = vor.u32 1.1754944e-38, %v2012
    %v2014 = vsel %vm2011, %v2013, %v2009
    %v2015 = vmul.f32 1.0, %v2014
    %v2016 = vmul.f32 %v1960, %v1641
    %v2017 = vmul.f32 %v1975, %v1642
    %v2018 = vmul.f32 %v1922, %v1976
    %v2019 = vmul.f32 %v1937, %v1977
    %v2020 = vadd.f32 %v2016, %v2018
    %v2021 = vadd.f32 %v2017, %v2019
    %v2022 = vtanh.pop %v2020
    %v2023 = vtanh.pop %v2021
    %v2024 = vmul.f32 %v2000, %v2022
    %v2025 = vmul.f32 %v2015, %v2023
    %2026 = vst [vmem:[#allocation2] sm:$0xff] %v2024
    %2027 = vst [vmem:[#allocation2 + $0x8] sm:$0xff] %v2025
    %2028 = vst [vmem:[#allocation3] sm:$0xff] %v2020
    %2029 = vst [vmem:[#allocation3 + $0x8] sm:$0xff] %v2021
    %s2030 = scalar_lea.vmem %s0, 320
    %v2031 = vld [vmem:[%s2030] sm:$0xff]
    %v2032 = vld [vmem:[%s2030 + $0x8] sm:$0xff]
    %v2033 = vld [vmem:[%s2030 + $0x10] sm:$0xff]
    %v2034 = vld [vmem:[%s2030 + $0x18] sm:$0xff]
    %v2035 = vld [vmem:[%s2030 + $0x20] sm:$0xff]
    %v2036 = vld [vmem:[%s2030 + $0x28] sm:$0xff]
    %v2037 = vld [vmem:[%s2030 + $0x30] sm:$0xff]
    %v2038 = vld [vmem:[%s2030 + $0x38] sm:$0xff]
    %v2039 = vld [vmem:[#allocation2] sm:$0xff]
    %v2040 = vld [vmem:[#allocation2 + $0x8] sm:$0xff]
    %v2041 = vld [vmem:[#allocation3] sm:$0xff]
    %v2042 = vld [vmem:[#allocation3 + $0x8] sm:$0xff]
    %v2043 = vpack.c.bf16 %v2040, %v2039
    %v2044 = vld [vmem:[#allocation4] sm:$0xff]
    %v2045 = vld [vmem:[#allocation4 + $0x8] sm:$0xff]
    %v2046 = vld [vmem:[#allocation4 + $0x10] sm:$0xff]
    %v2047 = vld [vmem:[#allocation4 + $0x18] sm:$0xff]
    %v2048 = vld [vmem:[#allocation4 + $0x20] sm:$0xff]
    %v2049 = vld [vmem:[#allocation4 + $0x28] sm:$0xff]
    %v2050 = vld [vmem:[#allocation4 + $0x30] sm:$0xff]
    %v2051 = vld [vmem:[#allocation4 + $0x38] sm:$0xff]
    %v2052 = vld [vmem:[#allocation4 + $0x40] sm:$0xff]
    %v2053 = vld [vmem:[#allocation4 + $0x48] sm:$0xff]
    %v2054 = vld [vmem:[#allocation4 + $0x50] sm:$0xff]
    %v2055 = vld [vmem:[#allocation4 + $0x58] sm:$0xff]
    %v2056 = vld [vmem:[#allocation4 + $0x60] sm:$0xff]
    %v2057 = vld [vmem:[#allocation4 + $0x68] sm:$0xff]
    %v2058 = vld [vmem:[#allocation4 + $0x70] sm:$0xff]
    %v2059 = vld [vmem:[#allocation4 + $0x78] sm:$0xff]
    %v2060 = vld [vmem:[#allocation4 + $0x80] sm:$0xff]
    %v2061 = vld [vmem:[#allocation4 + $0x88] sm:$0xff]
    %v2062 = vld [vmem:[#allocation4 + $0x90] sm:$0xff]
    %v2063 = vld [vmem:[#allocation4 + $0x98] sm:$0xff]
    %v2064 = vld [vmem:[#allocation4 + $0xa0] sm:$0xff]
    %v2065 = vld [vmem:[#allocation4 + $0xa8] sm:$0xff]
    %v2066 = vld [vmem:[#allocation4 + $0xb0] sm:$0xff]
    %v2067 = vld [vmem:[#allocation4 + $0xb8] sm:$0xff]
    %v2068 = vld [vmem:[#allocation4 + $0xc0] sm:$0xff]
    %v2069 = vld [vmem:[#allocation4 + $0xc8] sm:$0xff]
    %v2070 = vld [vmem:[#allocation4 + $0xd0] sm:$0xff]
    %v2071 = vld [vmem:[#allocation4 + $0xd8] sm:$0xff]
    %v2072 = vld [vmem:[#allocation4 + $0xe0] sm:$0xff]
    %v2073 = vld [vmem:[#allocation4 + $0xe8] sm:$0xff]
    %v2074 = vld [vmem:[#allocation4 + $0xf0] sm:$0xff]
    %v2075 = vld [vmem:[#allocation4 + $0xf8] sm:$0xff]
    %v2108 = vunpack.c.l.b16 %v2044
    %v2109 = vunpack.c.h.b16 %v2044
    %v2110 = vunpack.c.l.b16 %v2045
    %v2111 = vunpack.c.h.b16 %v2045
    %v2112 = vunpack.c.l.b16 %v2046
    %v2113 = vunpack.c.h.b16 %v2046
    %v2114 = vunpack.c.l.b16 %v2047
    %v2115 = vunpack.c.h.b16 %v2047
    %v2116 = vunpack.c.l.b16 %v2048
    %v2117 = vunpack.c.h.b16 %v2048
    %v2118 = vunpack.c.l.b16 %v2049
    %v2119 = vunpack.c.h.b16 %v2049
    %v2120 = vunpack.c.l.b16 %v2050
    %v2121 = vunpack.c.h.b16 %v2050
    %v2122 = vunpack.c.l.b16 %v2051
    %v2123 = vunpack.c.h.b16 %v2051
    %v2124 = vunpack.c.l.b16 %v2052
    %v2125 = vunpack.c.h.b16 %v2052
    %v2126 = vunpack.c.l.b16 %v2053
    %v2127 = vunpack.c.h.b16 %v2053
    %v2128 = vunpack.c.l.b16 %v2054
    %v2129 = vunpack.c.h.b16 %v2054
    %v2130 = vunpack.c.l.b16 %v2055
    %v2131 = vunpack.c.h.b16 %v2055
    %v2132 = vunpack.c.l.b16 %v2056
    %v2133 = vunpack.c.h.b16 %v2056
    %v2134 = vunpack.c.l.b16 %v2057
    %v2135 = vunpack.c.h.b16 %v2057
    %v2136 = vunpack.c.l.b16 %v2058
    %v2137 = vunpack.c.h.b16 %v2058
    %v2138 = vunpack.c.l.b16 %v2059
    %v2139 = vunpack.c.h.b16 %v2059
    %v2140 = vunpack.c.l.b16 %v2060
    %v2141 = vunpack.c.h.b16 %v2060
    %v2142 = vunpack.c.l.b16 %v2061
    %v2143 = vunpack.c.h.b16 %v2061
    %v2144 = vunpack.c.l.b16 %v2062
    %v2145 = vunpack.c.h.b16 %v2062
    %v2146 = vunpack.c.l.b16 %v2063
    %v2147 = vunpack.c.h.b16 %v2063
    %v2148 = vunpack.c.l.b16 %v2064
    %v2149 = vunpack.c.h.b16 %v2064
    %v2150 = vunpack.c.l.b16 %v2065
    %v2151 = vunpack.c.h.b16 %v2065
    %v2152 = vunpack.c.l.b16 %v2066
    %v2153 = vunpack.c.h.b16 %v2066
    %v2154 = vunpack.c.l.b16 %v2067
    %v2155 = vunpack.c.h.b16 %v2067
    %v2156 = vunpack.c.l.b16 %v2068
    %v2157 = vunpack.c.h.b16 %v2068
    %v2158 = vunpack.c.l.b16 %v2069
    %v2159 = vunpack.c.h.b16 %v2069
    %v2160 = vunpack.c.l.b16 %v2070
    %v2161 = vunpack.c.h.b16 %v2070
    %v2162 = vunpack.c.l.b16 %v2071
    %v2163 = vunpack.c.h.b16 %v2071
    %v2164 = vunpack.c.l.b16 %v2072
    %v2165 = vunpack.c.h.b16 %v2072
    %v2166 = vunpack.c.l.b16 %v2073
    %v2167 = vunpack.c.h.b16 %v2073
    %v2168 = vunpack.c.l.b16 %v2074
    %v2169 = vunpack.c.h.b16 %v2074
    %v2170 = vunpack.c.l.b16 %v2075
    %v2171 = vunpack.c.h.b16 %v2075
    %v2172 = vpack.c.b16 %v2112, %v2108
    %v2173 = vpack.c.b16 %v2113, %v2109
    %v2174 = vpack.c.b16 %v2114, %v2110
    %v2175 = vpack.c.b16 %v2115, %v2111
    %v2176 = vpack.c.b16 %v2120, %v2116
    %v2177 = vpack.c.b16 %v2121, %v2117
    %v2178 = vpack.c.b16 %v2122, %v2118
    %v2179 = vpack.c.b16 %v2123, %v2119
    %v2180 = vpack.c.b16 %v2128, %v2124
    %v2181 = vpack.c.b16 %v2129, %v2125
    %v2182 = vpack.c.b16 %v2130, %v2126
    %v2183 = vpack.c.b16 %v2131, %v2127
    %v2184 = vpack.c.b16 %v2136, %v2132
    %v2185 = vpack.c.b16 %v2137, %v2133
    %v2186 = vpack.c.b16 %v2138, %v2134
    %v2187 = vpack.c.b16 %v2139, %v2135
    %v2188 = vpack.c.b16 %v2144, %v2140
    %v2189 = vpack.c.b16 %v2145, %v2141
    %v2190 = vpack.c.b16 %v2146, %v2142
    %v2191 = vpack.c.b16 %v2147, %v2143
    %v2192 = vpack.c.b16 %v2152, %v2148
    %v2193 = vpack.c.b16 %v2153, %v2149
    %v2194 = vpack.c.b16 %v2154, %v2150
    %v2195 = vpack.c.b16 %v2155, %v2151
    %v2196 = vpack.c.b16 %v2160, %v2156
    %v2197 = vpack.c.b16 %v2161, %v2157
    %v2198 = vpack.c.b16 %v2162, %v2158
    %v2199 = vpack.c.b16 %v2163, %v2159
    %v2200 = vpack.c.b16 %v2168, %v2164
    %v2201 = vpack.c.b16 %v2169, %v2165
    %v2202 = vpack.c.b16 %v2170, %v2166
    %v2203 = vpack.c.b16 %v2171, %v2167
    %2236 = vmatpush.bf16.msra.mxu0 %v2200
    %2237 = vmatpush.bf16.msra.mxu0 %v2196
    %2238 = vmatpush.bf16.msra.mxu0 %v2192
    %2239 = vmatpush.bf16.msra.mxu0 %v2188
    %2240 = vmatpush.bf16.msra.mxu0 %v2184
    %2241 = vmatpush.bf16.msra.mxu0 %v2180
    %2242 = vmatpush.bf16.msra.mxu0 %v2176
    %2243 = vmatpush.bf16.msra.mxu0 %v2172
    %2244 = vmatmul.bf16.gmra.mxu0 %v2043
    %v2245 = vpop.f32.mrf.mxu0
    %v2246 = vadd.f32 0.0, %v2245
    %v2247 = vpop.f32.mrf.mxu0
    %v2248 = vadd.f32 0.0, %v2247
    %2249 = vdwg.mxu0
    %2250 = vmatpush.bf16.msra.mxu0 %v2201
    %2251 = vmatpush.bf16.msra.mxu0 %v2197
    %2252 = vmatpush.bf16.msra.mxu0 %v2193
    %2253 = vmatpush.bf16.msra.mxu0 %v2189
    %2254 = vmatpush.bf16.msra.mxu0 %v2185
    %2255 = vmatpush.bf16.msra.mxu0 %v2181
    %2256 = vmatpush.bf16.msra.mxu0 %v2177
    %2257 = vmatpush.bf16.msra.mxu0 %v2173
    %2258 = vmatmul.bf16.gmra.mxu0 %v2043
    %v2259 = vpop.f32.mrf.mxu0
    %v2260 = vadd.f32 0.0, %v2259
    %v2261 = vpop.f32.mrf.mxu0
    %v2262 = vadd.f32 0.0, %v2261
    %2263 = vdwg.mxu0
    %2264 = vmatpush.bf16.msra.mxu0 %v2202
    %2265 = vmatpush.bf16.msra.mxu0 %v2198
    %2266 = vmatpush.bf16.msra.mxu0 %v2194
    %2267 = vmatpush.bf16.msra.mxu0 %v2190
    %2268 = vmatpush.bf16.msra.mxu0 %v2186
    %2269 = vmatpush.bf16.msra.mxu0 %v2182
    %2270 = vmatpush.bf16.msra.mxu0 %v2178
    %2271 = vmatpush.bf16.msra.mxu0 %v2174
    %2272 = vmatmul.bf16.gmra.mxu0 %v2043
    %v2273 = vpop.f32.mrf.mxu0
    %v2274 = vadd.f32 0.0, %v2273
    %v2275 = vpop.f32.mrf.mxu0
    %v2276 = vadd.f32 0.0, %v2275
    %2277 = vdwg.mxu0
    %2278 = vmatpush.bf16.msra.mxu0 %v2203
    %2279 = vmatpush.bf16.msra.mxu0 %v2199
    %2280 = vmatpush.bf16.msra.mxu0 %v2195
    %2281 = vmatpush.bf16.msra.mxu0 %v2191
    %2282 = vmatpush.bf16.msra.mxu0 %v2187
    %2283 = vmatpush.bf16.msra.mxu0 %v2183
    %2284 = vmatpush.bf16.msra.mxu0 %v2179
    %2285 = vmatpush.bf16.msra.mxu0 %v2175
    %2286 = vmatmul.bf16.gmra.mxu0 %v2043
    %v2287 = vpop.f32.mrf.mxu0
    %v2288 = vadd.f32 0.0, %v2287
    %v2289 = vpop.f32.mrf.mxu0
    %v2290 = vadd.f32 0.0, %v2289
    %2291 = vdwg.mxu0
    %v2292 = vadd.f32 %v2031, %v2246
    %v2293 = vadd.f32 %v2032, %v2260
    %v2294 = vadd.f32 %v2033, %v2274
    %v2295 = vadd.f32 %v2034, %v2288
    %v2296 = vadd.f32 %v2035, %v2248
    %v2297 = vadd.f32 %v2036, %v2262
    %v2298 = vadd.f32 %v2037, %v2276
    %v2299 = vadd.f32 %v2038, %v2290
    %v2300 = vxor.u32 %v2292, 2147483648
    %v2301 = vxor.u32 %v2296, 2147483648
    %v2302 = vmul.f32 %v2300, 1.442695
    %v2303 = vpow.pop %v2302
    %v2304 = vmul.f32 %v2301, 1.442695
    %v2305 = vpow.pop %v2304
    %v2306 = vadd.f32 %v2303, 1.0
    %v2307 = vadd.f32 %v2305, 1.0
    %v2308 = vrcp.pop %v2306
    %v2309 = vmul.f32 %v2306, %v2308
    %v2310 = vsub.f32 1.0, %v2309
    %v2311 = vmul.f32 %v2308, %v2310
    %v2312 = vadd.f32 %v2308, %v2311
    %vm2313 = vweird.f32 %v2306
    %vm2314 = vweird.f32 %v2308
    %vm2315 = vmor %vm2313, %vm2314
    %v2316 = vsel %vm2315, %v2308, %v2312
    %v2317 = vand.u32 2147483647, %v2306
    %vm2318 = vcmp.eq.f32.partialorder %v2317, 8.507059e+37
    %v2319 = vand.u32 %v2306, 2147483648
    %v2320 = vor.u32 1.1754944e-38, %v2319
    %v2321 = vsel %vm2318, %v2320, %v2316
    %v2322 = vmul.f32 1.0, %v2321
    %v2323 = vrcp.pop %v2307
    %v2324 = vmul.f32 %v2307, %v2323
    %v2325 = vsub.f32 1.0, %v2324
    %v2326 = vmul.f32 %v2323, %v2325
    %v2327 = vadd.f32 %v2323, %v2326
    %vm2328 = vweird.f32 %v2307
    %vm2329 = vweird.f32 %v2323
    %vm2330 = vmor %vm2328, %vm2329
    %v2331 = vsel %vm2330, %v2323, %v2327
    %v2332 = vand.u32 2147483647, %v2307
    %vm2333 = vcmp.eq.f32.partialorder %v2332, 8.507059e+37
    %v2334 = vand.u32 %v2307, 2147483648
    %v2335 = vor.u32 1.1754944e-38, %v2334
    %v2336 = vsel %vm2333, %v2335, %v2331
    %v2337 = vmul.f32 1.0, %v2336
    %v2338 = vxor.u32 %v2293, 2147483648
    %v2339 = vxor.u32 %v2297, 2147483648
    %v2340 = vmul.f32 %v2338, 1.442695
    %v2341 = vpow.pop %v2340
    %v2342 = vmul.f32 %v2339, 1.442695
    %v2343 = vpow.pop %v2342
    %v2344 = vadd.f32 %v2341, 1.0
    %v2345 = vadd.f32 %v2343, 1.0
    %v2346 = vrcp.pop %v2344
    %v2347 = vmul.f32 %v2344, %v2346
    %v2348 = vsub.f32 1.0, %v2347
    %v2349 = vmul.f32 %v2346, %v2348
    %v2350 = vadd.f32 %v2346, %v2349
    %vm2351 = vweird.f32 %v2344
    %vm2352 = vweird.f32 %v2346
    %vm2353 = vmor %vm2351, %vm2352
    %v2354 = vsel %vm2353, %v2346, %v2350
    %v2355 = vand.u32 2147483647, %v2344
    %vm2356 = vcmp.eq.f32.partialorder %v2355, 8.507059e+37
    %v2357 = vand.u32 %v2344, 2147483648
    %v2358 = vor.u32 1.1754944e-38, %v2357
    %v2359 = vsel %vm2356, %v2358, %v2354
    %v2360 = vmul.f32 1.0, %v2359
    %v2361 = vrcp.pop %v2345
    %v2362 = vmul.f32 %v2345, %v2361
    %v2363 = vsub.f32 1.0, %v2362
    %v2364 = vmul.f32 %v2361, %v2363
    %v2365 = vadd.f32 %v2361, %v2364
    %vm2366 = vweird.f32 %v2345
    %vm2367 = vweird.f32 %v2361
    %vm2368 = vmor %vm2366, %vm2367
    %v2369 = vsel %vm2368, %v2361, %v2365
    %v2370 = vand.u32 2147483647, %v2345
    %vm2371 = vcmp.eq.f32.partialorder %v2370, 8.507059e+37
    %v2372 = vand.u32 %v2345, 2147483648
    %v2373 = vor.u32 1.1754944e-38, %v2372
    %v2374 = vsel %vm2371, %v2373, %v2369
    %v2375 = vmul.f32 1.0, %v2374
    %v2376 = vtanh.pop %v2294
    %v2377 = vtanh.pop %v2298
    %v2378 = vxor.u32 %v2295, 2147483648
    %v2379 = vxor.u32 %v2299, 2147483648
    %v2380 = vmul.f32 %v2378, 1.442695
    %v2381 = vpow.pop %v2380
    %v2382 = vmul.f32 %v2379, 1.442695
    %v2383 = vpow.pop %v2382
    %v2384 = vadd.f32 %v2381, 1.0
    %v2385 = vadd.f32 %v2383, 1.0
    %v2386 = vrcp.pop %v2384
    %v2387 = vmul.f32 %v2384, %v2386
    %v2388 = vsub.f32 1.0, %v2387
    %v2389 = vmul.f32 %v2386, %v2388
    %v2390 = vadd.f32 %v2386, %v2389
    %vm2391 = vweird.f32 %v2384
    %vm2392 = vweird.f32 %v2386
    %vm2393 = vmor %vm2391, %vm2392
    %v2394 = vsel %vm2393, %v2386, %v2390
    %v2395 = vand.u32 2147483647, %v2384
    %vm2396 = vcmp.eq.f32.partialorder %v2395, 8.507059e+37
    %v2397 = vand.u32 %v2384, 2147483648
    %v2398 = vor.u32 1.1754944e-38, %v2397
    %v2399 = vsel %vm2396, %v2398, %v2394
    %v2400 = vmul.f32 1.0, %v2399
    %v2401 = vrcp.pop %v2385
    %v2402 = vmul.f32 %v2385, %v2401
    %v2403 = vsub.f32 1.0, %v2402
    %v2404 = vmul.f32 %v2401, %v2403
    %v2405 = vadd.f32 %v2401, %v2404
    %vm2406 = vweird.f32 %v2385
    %vm2407 = vweird.f32 %v2401
    %vm2408 = vmor %vm2406, %vm2407
    %v2409 = vsel %vm2408, %v2401, %v2405
    %v2410 = vand.u32 2147483647, %v2385
    %vm2411 = vcmp.eq.f32.partialorder %v2410, 8.507059e+37
    %v2412 = vand.u32 %v2385, 2147483648
    %v2413 = vor.u32 1.1754944e-38, %v2412
    %v2414 = vsel %vm2411, %v2413, %v2409
    %v2415 = vmul.f32 1.0, %v2414
    %v2416 = vmul.f32 %v2360, %v2041
    %v2417 = vmul.f32 %v2375, %v2042
    %v2418 = vmul.f32 %v2322, %v2376
    %v2419 = vmul.f32 %v2337, %v2377
    %v2420 = vadd.f32 %v2416, %v2418
    %v2421 = vadd.f32 %v2417, %v2419
    %v2422 = vtanh.pop %v2420
    %v2423 = vtanh.pop %v2421
    %v2424 = vmul.f32 %v2400, %v2422
    %v2425 = vmul.f32 %v2415, %v2423
    %2426 = vst [vmem:[#allocation2] sm:$0xff] %v2424
    %2427 = vst [vmem:[#allocation2 + $0x8] sm:$0xff] %v2425
    %2428 = vst [vmem:[#allocation3] sm:$0xff] %v2420
    %2429 = vst [vmem:[#allocation3 + $0x8] sm:$0xff] %v2421
    %v2430 = vld [vmem:[#allocation2] sm:$0xff]
    %v2431 = vld [vmem:[#allocation2 + $0x8] sm:$0xff]
    %2432 = vst [vmem:[%s2] sm:$0xff] %v2430
    %2433 = vst [vmem:[%s2 + $0x8] sm:$0xff] %v2431
    // Predicated region
    $region14: #{tagger_forward.2} parent=1 // pred_check
      _
    $region15: #{tagger_forward.2} parent=1 // pred_check_branch
      %2435 = sbr.rel (0) target = $region17
    $region16: #{tagger_forward.2} parent=1 // pred_region
      _
    $region17: #{tagger_forward.2} parent=1 // pred_fallthru
      _
    // Predicated region
    $region18: #{tagger_forward.2} parent=1 // pred_check
      _
    $region19: #{tagger_forward.2} parent=1 // pred_check_branch
      %2437 = sbr.rel (0) target = $region21
    $region20: #{tagger_forward.2} parent=1 // pred_region
      _
    $region21: #{tagger_forward.2} parent=1 // pred_fallthru
      _
    %2438 = vsyncpa [#allocation5], 1

// kernel: tagger_forward.3
$region0: #{tagger_forward.3}
  #allocation0 [shape = 'u32[]', space=smem, size = 0x4, offset = 0x4, fixed_abs, tag = 'smem constant byte address 0x4 - core index']
  #allocation1 [shape = 'u32[72,128]{1,0:T(1,128)}', space=vmem, size = 0x9000, scoped, tag = 'internal scratch']
  #allocation2 [shape = 'f32[64,512]{1,0:T(8,128)}', space=vmem, size = 0x20000, scoped, tag = 'scratch operand']
  #allocation3 [shape = 'f32[8,256]{1,0:T(8,128)}', space=vmem, size = 0x2000, scoped, tag = 'scratch operand']
  #allocation4 [shape = 'f32[8,256]{1,0:T(8,128)}', space=vmem, size = 0x2000, scoped, tag = 'scratch operand']
  #allocation5 [shape = 'f32[8,256]{1,0:T(8,128)}', space=vmem, size = 0x2000, scoped, tag = 'scratch operand']
  #allocation6 [shape = 'f32[8,256]{1,0:T(8,128)}', space=vmem, size = 0x2000, scoped, tag = 'scratch operand']
  %s0 = inlined_call_operand.vmem [shape: f32[8,8,2048], index: 0, kind: input, shape index: {}, may-alias: {0,1}]
  %s1 = inlined_call_operand.vmem [shape: f32[8,8,2048], index: 1, kind: input, shape index: {}, may-alias: {0,1}]
  %s2 = inlined_call_operand.vmem [shape: bf16[256,1024], index: 2, kind: input, shape index: {}]
  %s3 = inlined_call_operand.vmem [shape: bf16[256,1024], index: 3, kind: input, shape index: {}]
  %s4 = inlined_call_operand.vmem [shape: s32[8,1], index: 4, kind: input, shape index: {}]
  %s5 = inlined_call_operand.vmem [shape: f32[512,128], index: 5, kind: input, shape index: {}]
  %s6 = inlined_call_operand.vmem [shape: f32[1,128], index: 6, kind: input, shape index: {}]
  %s7 = inlined_call_operand.vmem [shape: s32[64,1], index: 7, kind: input, shape index: {}]
  %s8 = inlined_call_operand.hbm [shape: f32[1,1], index: 8, kind: output, shape index: {0}]
  %s9 = inlined_call_operand.vmem [shape: s32[64,1], index: 9, kind: output, shape index: {1}]
  %10 = xla_tuple %s8, %s9
  %s11 = sld [smem:[#allocation0]]
  $region81: #{tagger_forward.3} parent=0
    _
  %s13 = ssub.s32 1, %s11
  %s14 = scalar_select 0, %s13, %s11
  $region1: #{tagger_forward.3} parent=0
    #allocation7 [shape = 'u8[512]{0}', space=vmem, size = 0x400, scoped, tag = 'output window, operand 0, single buffered']
    #allocation8 [shape = 's32[2]{0}', space=sflag, size = 0x8, scoped, tag = 'scoped memory for tagger_forward.3']
    %15 = vsyncpa [#allocation8], 0
    loop: start=0, step=1, limit=10
    $region2: #{tagger_forward.3} parent=1 // loop_pre_header
      _
    $region3: #{tagger_forward.3} parent=1 // loop_header
      %s17 = sphi 0, %s21
      %p18 = scmp.ge.s32.totalorder %s17, 10
      %s27 = sphi 0, %s29
      %s30 = sphi 0, %s27
      %s31 = sphi 0, %s30
      %s47 = sphi 0, %s31
      %s55 = sphi 0, %s57
      %s58 = sphi 0, %s55
      %s59 = sphi 0, %s58
      %s75 = sphi 0, %s59
      %s79 = sphi 0, %s79
      %s81 = sphi 0, %s79
      %s82 = sphi 0, %s81
      %s96 = sphi 0, %s82
      %s100 = sphi 0, %s100
      %s102 = sphi 0, %s100
      %s103 = sphi 0, %s102
      %s117 = sphi 0, %s103
      %s121 = sphi 0, %s121
      %s123 = sphi 0, %s121
      %s124 = sphi 0, %s123
      %s138 = sphi 0, %s124
      %s142 = sphi 0, %s142
      %s144 = sphi 0, %s142
      %s145 = sphi 0, %s144
      %s159 = sphi 0, %s145
      %s163 = sphi 0, %s163
      %s165 = sphi 0, %s163
      %s166 = sphi 0, %s165
      %s180 = sphi 0, %s166
      %s184 = sphi 0, %s184
      %s186 = sphi 0, %s184
      %s187 = sphi 0, %s186
      %s201 = sphi 0, %s187
      %s205 = sphi 0, %s205
      %s207 = sphi 0, %s205
      %s208 = sphi 0, %s207
      %s222 = sphi 0, %s208
      %s226 = sphi 0, %s226
      %s228 = sphi 0, %s226
      %s229 = sphi 0, %s228
      %s243 = sphi 0, %s229
    $region4: #{tagger_forward.3} parent=1 // loop_header_branch
      %20 = sbr.rel (%p18) target = $region8
    $region5: #{tagger_forward.3} parent=1 // loop_body
      %s22 = ssub.s32 %s17, 1
      %s23 = ssub.s32 %s17, 2
      %s24 = sadd.s32 %s17, 1
      %s25 = ssub.s32 %s17, %s24
      %p26 = scmp.eq.s32.totalorder %s25, 0
      %s28 = sadd.s32 %s27, 1
      %s29 = scalar_select %p26, %s27, %s28
      %p32 = pneg %p26
      %p33 = scmp.eq.s32.totalorder %s17, 7
      %p34 = por %p32, %p33
      %p35 = scmp.ne.s32.totalorder %s27, %s30
      %p36 = scmp.eq.s32.totalorder %s17, 0
      %p37 = por %p35, %p36
      %p38 = scmp.ne.s32.totalorder %s27, %s30
      %p39 = scmp.eq.s32.totalorder %s22, 7
      %p40 = por %p38, %p39
      %p41 = scmp.ne.s32.totalorder %s30, %s31
      %p42 = scmp.eq.s32.totalorder %s22, 0
      %p43 = por %p41, %p42
      %p44 = scmp.ne.s32.totalorder %s30, %s31
      %p45 = scmp.eq.s32.totalorder %s23, 7
      %p46 = por %p44, %p45
      %p48 = scmp.ne.s32.totalorder %s31, %s47
      %p49 = scmp.eq.s32.totalorder %s23, 0
      %p50 = por %p48, %p49
      %s51 = ssub.s32 7, %s17
      %s52 = ssub.s32 7, %s24
      %s53 = ssub.s32 %s51, %s52
      %p54 = scmp.eq.s32.totalorder %s53, 0
      %s56 = sadd.s32 %s55, 1
      %s57 = scalar_select %p54, %s55, %s56
      %p60 = pneg %p54
      %p61 = scmp.eq.s32.totalorder %s17, 7
      %p62 = por %p60, %p61
      %p63 = scmp.ne.s32.totalorder %s55, %s58
      %p64 = scmp.eq.s32.totalorder %s17, 0
      %p65 = por %p63, %p64
      %p66 = scmp.ne.s32.totalorder %s55, %s58
      %p67 = scmp.eq.s32.totalorder %s22, 7
      %p68 = por %p66, %p67
      %p69 = scmp.ne.s32.totalorder %s58, %s59
      %p70 = scmp.eq.s32.totalorder %s22, 0
      %p71 = por %p69, %p70
      %p72 = scmp.ne.s32.totalorder %s58, %s59
      %p73 = scmp.eq.s32.totalorder %s23, 7
      %p74 = por %p72, %p73
      %p76 = scmp.ne.s32.totalorder %s59, %s75
      %p77 = scmp.eq.s32.totalorder %s23, 0
      %p78 = por %p76, %p77
      %s80 = sadd.s32 %s79, 1
      %p83 = scmp.eq.s32.totalorder %s17, 7
      %p84 = scmp.ne.s32.totalorder %s79, %s81
      %p85 = scmp.eq.s32.totalorder %s17, 0
      %p86 = por %p84, %p85
      %p87 = scmp.ne.s32.totalorder %s79, %s81
      %p88 = scmp.eq.s32.totalorder %s22, 7
      %p89 = por %p87, %p88
      %p90 = scmp.ne.s32.totalorder %s81, %s82
      %p91 = scmp.eq.s32.totalorder %s22, 0
      %p92 = por %p90, %p91
      %p93 = scmp.ne.s32.totalorder %s81, %s82
      %p94 = scmp.eq.s32.totalorder %s23, 7
      %p95 = por %p93, %p94
      %p97 = scmp.ne.s32.totalorder %s82, %s96
      %p98 = scmp.eq.s32.totalorder %s23, 0
      %p99 = por %p97, %p98
      %s101 = sadd.s32 %s100, 1
      %p104 = scmp.eq.s32.totalorder %s17, 7
      %p105 = scmp.ne.s32.totalorder %s100, %s102
      %p106 = scmp.eq.s32.totalorder %s17, 0
      %p107 = por %p105, %p106
      %p108 = scmp.ne.s32.totalorder %s100, %s102
      %p109 = scmp.eq.s32.totalorder %s22, 7
      %p110 = por %p108, %p109
      %p111 = scmp.ne.s32.totalorder %s102, %s103
      %p112 = scmp.eq.s32.totalorder %s22, 0
      %p113 = por %p111, %p112
      %p114 = scmp.ne.s32.totalorder %s102, %s103
      %p115 = scmp.eq.s32.totalorder %s23, 7
      %p116 = por %p114, %p115
      %p118 = scmp.ne.s32.totalorder %s103, %s117
      %p119 = scmp.eq.s32.totalorder %s23, 0
      %p120 = por %p118, %p119
      %s122 = sadd.s32 %s121, 1
      %p125 = scmp.eq.s32.totalorder %s17, 7
      %p126 = scmp.ne.s32.totalorder %s121, %s123
      %p127 = scmp.eq.s32.totalorder %s17, 0
      %p128 = por %p126, %p127
      %p129 = scmp.ne.s32.totalorder %s121, %s123
      %p130 = scmp.eq.s32.totalorder %s22, 7
      %p131 = por %p129, %p130
      %p132 = scmp.ne.s32.totalorder %s123, %s124
      %p133 = scmp.eq.s32.totalorder %s22, 0
      %p134 = por %p132, %p133
      %p135 = scmp.ne.s32.totalorder %s123, %s124
      %p136 = scmp.eq.s32.totalorder %s23, 7
      %p137 = por %p135, %p136
      %p139 = scmp.ne.s32.totalorder %s124, %s138
      %p140 = scmp.eq.s32.totalorder %s23, 0
      %p141 = por %p139, %p140
      %s143 = sadd.s32 %s142, 1
      %p146 = scmp.eq.s32.totalorder %s17, 7
      %p147 = scmp.ne.s32.totalorder %s142, %s144
      %p148 = scmp.eq.s32.totalorder %s17, 0
      %p149 = por %p147, %p148
      %p150 = scmp.ne.s32.totalorder %s142, %s144
      %p151 = scmp.eq.s32.totalorder %s22, 7
      %p152 = por %p150, %p151
      %p153 = scmp.ne.s32.totalorder %s144, %s145
      %p154 = scmp.eq.s32.totalorder %s22, 0
      %p155 = por %p153, %p154
      %p156 = scmp.ne.s32.totalorder %s144, %s145
      %p157 = scmp.eq.s32.totalorder %s23, 7
      %p158 = por %p156, %p157
      %p160 = scmp.ne.s32.totalorder %s145, %s159
      %p161 = scmp.eq.s32.totalorder %s23, 0
      %p162 = por %p160, %p161
      %s164 = sadd.s32 %s163, 1
      %p167 = scmp.eq.s32.totalorder %s17, 7
      %p168 = scmp.ne.s32.totalorder %s163, %s165
      %p169 = scmp.eq.s32.totalorder %s17, 0
      %p170 = por %p168, %p169
      %p171 = scmp.ne.s32.totalorder %s163, %s165
      %p172 = scmp.eq.s32.totalorder %s22, 7
      %p173 = por %p171, %p172
      %p174 = scmp.ne.s32.totalorder %s165, %s166
      %p175 = scmp.eq.s32.totalorder %s22, 0
      %p176 = por %p174, %p175
      %p177 = scmp.ne.s32.totalorder %s165, %s166
      %p178 = scmp.eq.s32.totalorder %s23, 7
      %p179 = por %p177, %p178
      %p181 = scmp.ne.s32.totalorder %s166, %s180
      %p182 = scmp.eq.s32.totalorder %s23, 0
      %p183 = por %p181, %p182
      %s185 = sadd.s32 %s184, 1
      %p188 = scmp.eq.s32.totalorder %s17, 7
      %p189 = scmp.ne.s32.totalorder %s184, %s186
      %p190 = scmp.eq.s32.totalorder %s17, 0
      %p191 = por %p189, %p190
      %p192 = scmp.ne.s32.totalorder %s184, %s186
      %p193 = scmp.eq.s32.totalorder %s22, 7
      %p194 = por %p192, %p193
      %p195 = scmp.ne.s32.totalorder %s186, %s187
      %p196 = scmp.eq.s32.totalorder %s22, 0
      %p197 = por %p195, %p196
      %p198 = scmp.ne.s32.totalorder %s186, %s187
      %p199 = scmp.eq.s32.totalorder %s23, 7
      %p200 = por %p198, %p199
      %p202 = scmp.ne.s32.totalorder %s187, %s201
      %p203 = scmp.eq.s32.totalorder %s23, 0
      %p204 = por %p202, %p203
      %s206 = sadd.s32 %s205, 1
      %p209 = scmp.eq.s32.totalorder %s17, 7
      %p210 = scmp.ne.s32.totalorder %s205, %s207
      %p211 = scmp.eq.s32.totalorder %s17, 0
      %p212 = por %p210, %p211
      %p213 = scmp.ne.s32.totalorder %s205, %s207
      %p214 = scmp.eq.s32.totalorder %s22, 7
      %p215 = por %p213, %p214
      %p216 = scmp.ne.s32.totalorder %s207, %s208
      %p217 = scmp.eq.s32.totalorder %s22, 0
      %p218 = por %p216, %p217
      %p219 = scmp.ne.s32.totalorder %s207, %s208
      %p220 = scmp.eq.s32.totalorder %s23, 7
      %p221 = por %p219, %p220
      %p223 = scmp.ne.s32.totalorder %s208, %s222
      %p224 = scmp.eq.s32.totalorder %s23, 0
      %p225 = por %p223, %p224
      %s227 = sadd.s32 %s226, 1
      %p230 = scmp.eq.s32.totalorder %s17, 7
      %p231 = scmp.ne.s32.totalorder %s226, %s228
      %p232 = scmp.eq.s32.totalorder %s17, 0
      %p233 = por %p231, %p232
      %p234 = scmp.ne.s32.totalorder %s226, %s228
      %p235 = scmp.eq.s32.totalorder %s22, 7
      %p236 = por %p234, %p235
      %p237 = scmp.ne.s32.totalorder %s228, %s229
      %p238 = scmp.eq.s32.totalorder %s22, 0
      %p239 = por %p237, %p238
      %p240 = scmp.ne.s32.totalorder %s228, %s229
      %p241 = scmp.eq.s32.totalorder %s23, 7
      %p242 = por %p240, %p241
      %p244 = scmp.ne.s32.totalorder %s229, %s243
      %p245 = scmp.eq.s32.totalorder %s23, 0
      %p246 = por %p244, %p245
      %p247 = scmp.le.s32.totalorder 1, %s17
      %p248 = scmp.lt.s32.totalorder %s17, 9
      %p249 = pnand %p247, %p248
      %p250 = pneg %p249
      // Predicated region
      $region9: #{tagger_forward.3} parent=5 // pred_check
        _
      $region10: #{tagger_forward.3} parent=5 // pred_check_branch
        %252 = sbr.rel (%p249) target = $region12
      $region11: #{tagger_forward.3} parent=5 // pred_region
        %s253 = ssub.s32 %s17, 1
        // Predicated region
        $region13: #{tagger_forward.3} parent=11 // pred_check
          %p254 = pneg %p92
        $region14: #{tagger_forward.3} parent=11 // pred_check_branch
          %256 = sbr.rel (%p254) target = $region16
        $region15: #{tagger_forward.3} parent=11 // pred_region
          _
        $region16: #{tagger_forward.3} parent=11 // pred_fallthru
          _
        // Predicated region
        $region17: #{tagger_forward.3} parent=11 // pred_check
          %p257 = pneg %p113
        $region18: #{tagger_forward.3} parent=11 // pred_check_branch
          %259 = sbr.rel (%p257) target = $region20
        $region19: #{tagger_forward.3} parent=11 // pred_region
          _
        $region20: #{tagger_forward.3} parent=11 // pred_fallthru
          _
        // Predicated region
        $region21: #{tagger_forward.3} parent=11 // pred_check
          %p260 = pneg %p134
        $region22: #{tagger_forward.3} parent=11 // pred_check_branch
          %262 = sbr.rel (%p260) target = $region24
        $region23: #{tagger_forward.3} parent=11 // pred_region
          _
        $region24: #{tagger_forward.3} parent=11 // pred_fallthru
          _
        // Predicated region
        $region25: #{tagger_forward.3} parent=11 // pred_check
          %p263 = pneg %p155
        $region26: #{tagger_forward.3} parent=11 // pred_check_branch
          %265 = sbr.rel (%p263) target = $region28
        $region27: #{tagger_forward.3} parent=11 // pred_region
          _
        $region28: #{tagger_forward.3} parent=11 // pred_fallthru
          _
        // Predicated region
        $region29: #{tagger_forward.3} parent=11 // pred_check
          %p266 = pneg %p176
        $region30: #{tagger_forward.3} parent=11 // pred_check_branch
          %268 = sbr.rel (%p266) target = $region32
        $region31: #{tagger_forward.3} parent=11 // pred_region
          _
        $region32: #{tagger_forward.3} parent=11 // pred_fallthru
          _
        // Predicated region
        $region33: #{tagger_forward.3} parent=11 // pred_check
          %p269 = pneg %p197
        $region34: #{tagger_forward.3} parent=11 // pred_check_branch
          %271 = sbr.rel (%p269) target = $region36
        $region35: #{tagger_forward.3} parent=11 // pred_region
          _
        $region36: #{tagger_forward.3} parent=11 // pred_fallthru
          _
      $region12: #{tagger_forward.3} parent=5 // pred_fallthru
        _
      %p272 = scmp.lt.s32.totalorder %s17, 8
      // Predicated region
      $region37: #{tagger_forward.3} parent=5 // pred_check
        %p273 = pneg %p272
      $region38: #{tagger_forward.3} parent=5 // pred_check_branch
        %275 = sbr.rel (%p273) target = $region40
      $region39: #{tagger_forward.3} parent=5 // pred_region
        // Predicated region
        $region41: #{tagger_forward.3} parent=39 // pred_check
          %p276 = pneg %p37
        $region42: #{tagger_forward.3} parent=39 // pred_check_branch
          %278 = sbr.rel (%p276) target = $region44
        $region43: #{tagger_forward.3} parent=39 // pred_region
          %p279 = scmp.lt.s32.totalorder %s17, 7
          %s280 = scalar_select %p279, %s17, 7
          %s281 = smul.addr %s280, 16
          %s282 = smul.addr %s281, 8
          %s283 = scalar_lea.vmem %s0, %s282
        $region44: #{tagger_forward.3} parent=39 // pred_fallthru
          _
        // Predicated region
        $region45: #{tagger_forward.3} parent=39 // pred_check
          %p284 = pneg %p65
        $region46: #{tagger_forward.3} parent=39 // pred_check_branch
          %286 = sbr.rel (%p284) target = $region48
        $region47: #{tagger_forward.3} parent=39 // pred_region
          %s287 = ssub.s32 7, %s17
          %p288 = scmp.lt.s32.totalorder %s287, 7
          %s289 = scalar_select %p288, %s287, 7
          %s290 = smul.addr %s289, 16
          %s291 = sadd.s32 8, %s290
          %s292 = smul.addr %s291, 8
          %s293 = scalar_lea.vmem %s1, %s292
          %s294 = ssub.s32 7, %s17
        $region48: #{tagger_forward.3} parent=39 // pred_fallthru
          _
      $region40: #{tagger_forward.3} parent=5 // pred_fallthru
        _
      %p295 = scmp.le.s32.totalorder 1, %s17
      %p296 = scmp.lt.s32.totalorder %s17, 9
      %p297 = pnand %p295, %p296
      %p298 = pneg %p297
      // Predicated region
      $region49: #{tagger_forward.3} parent=5 // pred_check
        _
      $region50: #{tagger_forward.3} parent=5 // pred_check_branch
        %300 = sbr.rel (%p297) target = $region52
      $region51: #{tagger_forward.3} parent=5 // pred_region
        %s301 = ssub.s32 %s17, 1
        %p302 = scmp.lt.s32.totalorder %s22, 7
        %s303 = scalar_select %p302, %s22, 7
        %s304 = smul.addr %s303, 16
        %s305 = smul.addr %s304, 8
        %s306 = scalar_lea.vmem %s0, %s305
        %p307 = pneg %p43
        %p308 = pneg %p40
        %s309 = ssub.s32 7, %s22
        %p310 = scmp.lt.s32.totalorder %s309, 7
        %s311 = scalar_select %p310, %s309, 7
        %s312 = smul.addr %s311, 16
        %s313 = sadd.s32 8, %s312
        %s314 = smul.addr %s313, 8
        %s315 = scalar_lea.vmem %s1, %s314
        %p316 = pneg %p71
        %p317 = pneg %p68
        %p318 = pneg %p92
        %p319 = pneg %p89
        %p320 = pneg %p113
        %p321 = pneg %p110
        %p322 = pneg %p134
        %p323 = pneg %p131
        %p324 = pneg %p155
        %p325 = pneg %p152
        %p326 = pneg %p176
        %p327 = pneg %p173
        %p328 = pneg %p197
        %p329 = pneg %p194
        %p330 = pneg %p218
        %p331 = pneg %p215
        %p332 = pneg %p239
        %p333 = pneg %p236
        %p334 = scmp.lt.s32.totalorder %s22, 7
        %s335 = scalar_select %p334, %s22, 7
        %s336 = smul.addr %s335, 16
        %s337 = smul.addr %s336, 8
        %s338 = scalar_lea.vmem %s0, %s337
        %s339 = ssub.s32 7, %s22
        %p340 = scmp.lt.s32.totalorder %s339, 7
        %s341 = scalar_select %p340, %s339, 7
        %s342 = smul.addr %s341, 16
        %s343 = sadd.s32 8, %s342
        %s344 = smul.addr %s343, 8
        %s345 = scalar_lea.vmem %s1, %s344
        %s346 = ssub.s32 7, %s22
        %p347 = scmp.eq.s32.totalorder %s22, 0
        // Predicated region
        $region53: #{tagger_forward.3} parent=51 // pred_check
          %p348 = pneg %p347
        $region54: #{tagger_forward.3} parent=51 // pred_check_branch
          %350 = sbr.rel (%p348) target = $region56
        $region55: #{tagger_forward.3} parent=51 // pred_region
          %351 = vst [vmem:[#allocation3] sm:$0xff] 0.0
          %352 = vst [vmem:[#allocation3 + $0x8] sm:$0xff] 0.0
          %353 = vst [vmem:[#allocation4] sm:$0xff] 0.0
          %354 = vst [vmem:[#allocation4 + $0x8] sm:$0xff] 0.0
          %355 = vst [vmem:[#allocation5] sm:$0xff] 0.0
          %356 = vst [vmem:[#allocation5 + $0x8] sm:$0xff] 0.0
          %357 = vst [vmem:[#allocation6] sm:$0xff] 0.0
          %358 = vst [vmem:[#allocation6 + $0x8] sm:$0xff] 0.0
        $region56: #{tagger_forward.3} parent=51 // pred_fallthru
          _
        %v359 = vld [vmem:[%s4] sm:$0xff]
        %v360 = vstv %s22
        %vm361 = vcmp.lt.s32.totalorder %v360, %v359
        %v362 = vsel %vm361, 1, 0
        %v363 = vcvt.s32.f32 %v362
        %v364 = vld [vmem:[#allocation3] sm:$0xff]
        %v365 = vld [vmem:[#allocation3 + $0x8] sm:$0xff]
        %v366 = vld [vmem:[#allocation4] sm:$0xff]
        %v367 = vld [vmem:[#allocation4 + $0x8] sm:$0xff]
        %v368 = vld [vmem:[%s338] sm:$0xff]
        %v369 = vld [vmem:[%s338 + $0x8] sm:$0xff]
        %v370 = vld [vmem:[%s338 + $0x10] sm:$0xff]
        %v371 = vld [vmem:[%s338 + $0x18] sm:$0xff]
        %v372 = vld [vmem:[%s338 + $0x20] sm:$0xff]
        %v373 = vld [vmem:[%s338 + $0x28] sm:$0xff]
        %v374 = vld [vmem:[%s338 + $0x30] sm:$0xff]
        %v375 = vld [vmem:[%s338 + $0x38] sm:$0xff]
        %v376 = vpack.c.bf16 %v364, %v364
        %v377 = vpack.c.bf16 %v365, %v365
        %v378 = vld [vmem:[%s2] sm:$0xff]
        %v379 = vld [vmem:[%s2 + $0x8] sm:$0xff]
        %v380 = vld [vmem:[%s2 + $0x10] sm:$0xff]
        %v381 = vld [vmem:[%s2 + $0x18] sm:$0xff]
        %v382 = vld [vmem:[%s2 + $0x20] sm:$0xff]
        %v383 = vld [vmem:[%s2 + $0x28] sm:$0xff]
        %v384 = vld [vmem:[%s2 + $0x30] sm:$0xff]
        %v385 = vld [vmem:[%s2 + $0x38] sm:$0xff]
        %v386 = vld [vmem:[%s2 + $0x40] sm:$0xff]
        %v387 = vld [vmem:[%s2 + $0x48] sm:$0xff]
        %v388 = vld [vmem:[%s2 + $0x50] sm:$0xff]
        %v389 = vld [vmem:[%s2 + $0x58] sm:$0xff]
        %v390 = vld [vmem:[%s2 + $0x60] sm:$0xff]
        %v391 = vld [vmem:[%s2 + $0x68] sm:$0xff]
        %v392 = vld [vmem:[%s2 + $0x70] sm:$0xff]
        %v393 = vld [vmem:[%s2 + $0x78] sm:$0xff]
        %v394 = vld [vmem:[%s2 + $0x80] sm:$0xff]
        %v395 = vld [vmem:[%s2 + $0x88] sm:$0xff]
        %v396 = vld [vmem:[%s2 + $0x90] sm:$0xff]
        %v397 = vld [vmem:[%s2 + $0x98] sm:$0xff]
        %v398 = vld [vmem:[%s2 + $0xa0] sm:$0xff]
        %v399 = vld [vmem:[%s2 + $0xa8] sm:$0xff]
        %v400 = vld [vmem:[%s2 + $0xb0] sm:$0xff]
        %v401 = vld [vmem:[%s2 + $0xb8] sm:$0xff]
        %v402 = vld [vmem:[%s2 + $0xc0] sm:$0xff]
        %v403 = vld [vmem:[%s2 + $0xc8] sm:$0xff]
        %v404 = vld [vmem:[%s2 + $0xd0] sm:$0xff]
        %v405 = vld [vmem:[%s2 + $0xd8] sm:$0xff]
        %v406 = vld [vmem:[%s2 + $0xe0] sm:$0xff]
        %v407 = vld [vmem:[%s2 + $0xe8] sm:$0xff]
        %v408 = vld [vmem:[%s2 + $0xf0] sm:$0xff]
        %v409 = vld [vmem:[%s2 + $0xf8] sm:$0xff]
        %v410 = vld [vmem:[%s2 + $0x100] sm:$0xff]
        %v411 = vld [vmem:[%s2 + $0x108] sm:$0xff]
        %v412 = vld [vmem:[%s2 + $0x110] sm:$0xff]
        %v413 = vld [vmem:[%s2 + $0x118] sm:$0xff]
        %v414 = vld [vmem:[%s2 + $0x120] sm:$0xff]
        %v415 = vld [vmem:[%s2 + $0x128] sm:$0xff]
        %v416 = vld [vmem:[%s2 + $0x130] sm:$0xff]
        %v417 = vld [vmem:[%s2 + $0x138] sm:$0xff]
        %v418 = vld [vmem:[%s2 + $0x140] sm:$0xff]
        %v419 = vld [vmem:[%s2 + $0x148] sm:$0xff]
        %v420 = vld [vmem:[%s2 + $0x150] sm:$0xff]
        %v421 = vld [vmem:[%s2 + $0x158] sm:$0xff]
        %v422 = vld [vmem:[%s2 + $0x160] sm:$0xff]
        %v423 = vld [vmem:[%s2 + $0x168] sm:$0xff]
        %v424 = vld [vmem:[%s2 + $0x170] sm:$0xff]
        %v425 = vld [vmem:[%s2 + $0x178] sm:$0xff]
        %v426 = vld [vmem:[%s2 + $0x180] sm:$0xff]
        %v427 = vld [vmem:[%s2 + $0x188] sm:$0xff]
        %v428 = vld [vmem:[%s2 + $0x190] sm:$0xff]
        %v429 = vld [vmem:[%s2 + $0x198] sm:$0xff]
        %v430 = vld [vmem:[%s2 + $0x1a0] sm:$0xff]
        %v431 = vld [vmem:[%s2 + $0x1a8] sm:$0xff]
        %v432 = vld [vmem:[%s2 + $0x1b0] sm:$0xff]
        %v433 = vld [vmem:[%s2 + $0x1b8] sm:$0xff]
        %v434 = vld [vmem:[%s2 + $0x1c0] sm:$0xff]
        %v435 = vld [vmem:[%s2 + $0x1c8] sm:$0xff]
        %v436 = vld [vmem:[%s2 + $0x1d0] sm:$0xff]
        %v437 = vld [vmem:[%s2 + $0x1d8] sm:$0xff]
        %v438 = vld [vmem:[%s2 + $0x1e0] sm:$0xff]
        %v439 = vld [vmem:[%s2 + $0x1e8] sm:$0xff]
        %v440 = vld [vmem:[%s2 + $0x1f0] sm:$0xff]
        %v441 = vld [vmem:[%s2 + $0x1f8] sm:$0xff]
        %v442 = vld [vmem:[%s2 + $0x200] sm:$0xff]
        %v443 = vld [vmem:[%s2 + $0x208] sm:$0xff]
        %v444 = vld [vmem:[%s2 + $0x210] sm:$0xff]
        %v445 = vld [vmem:[%s2 + $0x218] sm:$0xff]
        %v446 = vld [vmem:[%s2 + $0x220] sm:$0xff]
        %v447 = vld [vmem:[%s2 + $0x228] sm:$0xff]
        %v448 = vld [vmem:[%s2 + $0x230] sm:$0xff]
        %v449 = vld [vmem:[%s2 + $0x238] sm:$0xff]
        %v450 = vld [vmem:[%s2 + $0x240] sm:$0xff]
        %v451 = vld [vmem:[%s2 + $0x248] sm:$0xff]
        %v452 = vld [vmem:[%s2 + $0x250] sm:$0xff]
        %v453 = vld [vmem:[%s2 + $0x258] sm:$0xff]
        %v454 = vld [vmem:[%s2 + $0x260] sm:$0xff]
        %v455 = vld [vmem:[%s2 + $0x268] sm:$0xff]
        %v456 = vld [vmem:[%s2 + $0x270] sm:$0xff]
        %v457 = vld [vmem:[%s2 + $0x278] sm:$0xff]
        %v458 = vld [vmem:[%s2 + $0x280] sm:$0xff]
        %v459 = vld [vmem:[%s2 + $0x288] sm:$0xff]
        %v460 = vld [vmem:[%s2 + $0x290] sm:$0xff]
        %v461 = vld [vmem:[%s2 + $0x298] sm:$0xff]
        %v462 = vld [vmem:[%s2 + $0x2a0] sm:$0xff]
        %v463 = vld [vmem:[%s2 + $0x2a8] sm:$0xff]
        %v464 = vld [vmem:[%s2 + $0x2b0] sm:$0xff]
        %v465 = vld [vmem:[%s2 + $0x2b8] sm:$0xff]
        %v466 = vld [vmem:[%s2 + $0x2c0] sm:$0xff]
        %v467 = vld [vmem:[%s2 + $0x2c8] sm:$0xff]
        %v468 = vld [vmem:[%s2 + $0x2d0] sm:$0xff]
        %v469 = vld [vmem:[%s2 + $0x2d8] sm:$0xff]
        %v470 = vld [vmem:[%s2 + $0x2e0] sm:$0xff]
        %v471 = vld [vmem:[%s2 + $0x2e8] sm:$0xff]
        %v472 = vld [vmem:[%s2 + $0x2f0] sm:$0xff]
        %v473 = vld [vmem:[%s2 + $0x2f8] sm:$0xff]
        %v474 = vld [vmem:[%s2 + $0x300] sm:$0xff]
        %v475 = vld [vmem:[%s2 + $0x308] sm:$0xff]
        %v476 = vld [vmem:[%s2 + $0x310] sm:$0xff]
        %v477 = vld [vmem:[%s2 + $0x318] sm:$0xff]
        %v478 = vld [vmem:[%s2 + $0x320] sm:$0xff]
        %v479 = vld [vmem:[%s2 + $0x328] sm:$0xff]
        %v480 = vld [vmem:[%s2 + $0x330] sm:$0xff]
        %v481 = vld [vmem:[%s2 + $0x338] sm:$0xff]
        %v482 = vld [vmem:[%s2 + $0x340] sm:$0xff]
        %v483 = vld [vmem:[%s2 + $0x348] sm:$0xff]
        %v484 = vld [vmem:[%s2 + $0x350] sm:$0xff]
        %v485 = vld [vmem:[%s2 + $0x358] sm:$0xff]
        %v486 = vld [vmem:[%s2 + $0x360] sm:$0xff]
        %v487 = vld [vmem:[%s2 + $0x368] sm:$0xff]
        %v488 = vld [vmem:[%s2 + $0x370] sm:$0xff]
        %v489 = vld [vmem:[%s2 + $0x378] sm:$0xff]
        %v490 = vld [vmem:[%s2 + $0x380] sm:$0xff]
        %v491 = vld [vmem:[%s2 + $0x388] sm:$0xff]
        %v492 = vld [vmem:[%s2 + $0x390] sm:$0xff]
        %v493 = vld [vmem:[%s2 + $0x398] sm:$0xff]
        %v494 = vld [vmem:[%s2 + $0x3a0] sm:$0xff]
        %v495 = vld [vmem:[%s2 + $0x3a8] sm:$0xff]
        %v496 = vld [vmem:[%s2 + $0x3b0] sm:$0xff]
        %v497 = vld [vmem:[%s2 + $0x3b8] sm:$0xff]
        %v498 = vld [vmem:[%s2 + $0x3c0] sm:$0xff]
        %v499 = vld [vmem:[%s2 + $0x3c8] sm:$0xff]
        %v500 = vld [vmem:[%s2 + $0x3d0] sm:$0xff]
        %v501 = vld [vmem:[%s2 + $0x3d8] sm:$0xff]
        %v502 = vld [vmem:[%s2 + $0x3e0] sm:$0xff]
        %v503 = vld [vmem:[%s2 + $0x3e8] sm:$0xff]
        %v504 = vld [vmem:[%s2 + $0x3f0] sm:$0xff]
        %v505 = vld [vmem:[%s2 + $0x3f8] sm:$0xff]
        %v634 = vunpack.c.l.b16 %v378
        %v635 = vunpack.c.h.b16 %v378
        %v636 = vunpack.c.l.b16 %v379
        %v637 = vunpack.c.h.b16 %v379
        %v638 = vunpack.c.l.b16 %v380
        %v639 = vunpack.c.h.b16 %v380
        %v640 = vunpack.c.l.b16 %v381
        %v641 = vunpack.c.h.b16 %v381
        %v642 = vunpack.c.l.b16 %v382
        %v643 = vunpack.c.h.b16 %v382
        %v644 = vunpack.c.l.b16 %v383
        %v645 = vunpack.c.h.b16 %v383
        %v646 = vunpack.c.l.b16 %v384
        %v647 = vunpack.c.h.b16 %v384
        %v648 = vunpack.c.l.b16 %v385
        %v649 = vunpack.c.h.b16 %v385
        %v650 = vunpack.c.l.b16 %v386
        %v651 = vunpack.c.h.b16 %v386
        %v652 = vunpack.c.l.b16 %v387
        %v653 = vunpack.c.h.b16 %v387
        %v654 = vunpack.c.l.b16 %v388
        %v655 = vunpack.c.h.b16 %v388
        %v656 = vunpack.c.l.b16 %v389
        %v657 = vunpack.c.h.b16 %v389
        %v658 = vunpack.c.l.b16 %v390
        %v659 = vunpack.c.h.b16 %v390
        %v660 = vunpack.c.l.b16 %v391
        %v661 = vunpack.c.h.b16 %v391
        %v662 = vunpack.c.l.b16 %v392
        %v663 = vunpack.c.h.b16 %v392
        %v664 = vunpack.c.l.b16 %v393
        %v665 = vunpack.c.h.b16 %v393
        %v666 = vunpack.c.l.b16 %v394
        %v667 = vunpack.c.h.b16 %v394
        %v668 = vunpack.c.l.b16 %v395
        %v669 = vunpack.c.h.b16 %v395
        %v670 = vunpack.c.l.b16 %v396
        %v671 = vunpack.c.h.b16 %v396
        %v672 = vunpack.c.l.b16 %v397
        %v673 = vunpack.c.h.b16 %v397
        %v674 = vunpack.c.l.b16 %v398
        %v675 = vunpack.c.h.b16 %v398
        %v676 = vunpack.c.l.b16 %v399
        %v677 = vunpack.c.h.b16 %v399
        %v678 = vunpack.c.l.b16 %v400
        %v679 = vunpack.c.h.b16 %v400
        %v680 = vunpack.c.l.b16 %v401
        %v681 = vunpack.c.h.b16 %v401
        %v682 = vunpack.c.l.b16 %v402
        %v683 = vunpack.c.h.b16 %v402
        %v684 = vunpack.c.l.b16 %v403
        %v685 = vunpack.c.h.b16 %v403
        %v686 = vunpack.c.l.b16 %v404
        %v687 = vunpack.c.h.b16 %v404
        %v688 = vunpack.c.l.b16 %v405
        %v689 = vunpack.c.h.b16 %v405
        %v690 = vunpack.c.l.b16 %v406
        %v691 = vunpack.c.h.b16 %v406
        %v692 = vunpack.c.l.b16 %v407
        %v693 = vunpack.c.h.b16 %v407
        %v694 = vunpack.c.l.b16 %v408
        %v695 = vunpack.c.h.b16 %v408
        %v696 = vunpack.c.l.b16 %v409
        %v697 = vunpack.c.h.b16 %v409
        %v698 = vunpack.c.l.b16 %v410
        %v699 = vunpack.c.h.b16 %v410
        %v700 = vunpack.c.l.b16 %v411
        %v701 = vunpack.c.h.b16 %v411
        %v702 = vunpack.c.l.b16 %v412
        %v703 = vunpack.c.h.b16 %v412
        %v704 = vunpack.c.l.b16 %v413
        %v705 = vunpack.c.h.b16 %v413
        %v706 = vunpack.c.l.b16 %v414
        %v707 = vunpack.c.h.b16 %v414
        %v708 = vunpack.c.l.b16 %v415
        %v709 = vunpack.c.h.b16 %v415
        %v710 = vunpack.c.l.b16 %v416
        %v711 = vunpack.c.h.b16 %v416
        %v712 = vunpack.c.l.b16 %v417
        %v713 = vunpack.c.h.b16 %v417
        %v714 = vunpack.c.l.b16 %v418
        %v715 = vunpack.c.h.b16 %v418
        %v716 = vunpack.c.l.b16 %v419
        %v717 = vunpack.c.h.b16 %v419
        %v718 = vunpack.c.l.b16 %v420
        %v719 = vunpack.c.h.b16 %v420
        %v720 = vunpack.c.l.b16 %v421
        %v721 = vunpack.c.h.b16 %v421
        %v722 = vunpack.c.l.b16 %v422
        %v723 = vunpack.c.h.b16 %v422
        %v724 = vunpack.c.l.b16 %v423
        %v725 = vunpack.c.h.b16 %v423
        %v726 = vunpack.c.l.b16 %v424
        %v727 = vunpack.c.h.b16 %v424
        %v728 = vunpack.c.l.b16 %v425
        %v729 = vunpack.c.h.b16 %v425
        %v730 = vunpack.c.l.b16 %v426
        %v731 = vunpack.c.h.b16 %v426
        %v732 = vunpack.c.l.b16 %v427
        %v733 = vunpack.c.h.b16 %v427
        %v734 = vunpack.c.l.b16 %v428
        %v735 = vunpack.c.h.b16 %v428
        %v736 = vunpack.c.l.b16 %v429
        %v737 = vunpack.c.h.b16 %v429
        %v738 = vunpack.c.l.b16 %v430
        %v739 = vunpack.c.h.b16 %v430
        %v740 = vunpack.c.l.b16 %v431
        %v741 = vunpack.c.h.b16 %v431
        %v742 = vunpack.c.l.b16 %v432
        %v743 = vunpack.c.h.b16 %v432
        %v744 = vunpack.c.l.b16 %v433
        %v745 = vunpack.c.h.b16 %v433
        %v746 = vunpack.c.l.b16 %v434
        %v747 = vunpack.c.h.b16 %v434
        %v748 = vunpack.c.l.b16 %v435
        %v749 = vunpack.c.h.b16 %v435
        %v750 = vunpack.c.l.b16 %v436
        %v751 = vunpack.c.h.b16 %v436
        %v752 = vunpack.c.l.b16 %v437
        %v753 = vunpack.c.h.b16 %v437
        %v754 = vunpack.c.l.b16 %v438
        %v755 = vunpack.c.h.b16 %v438
        %v756 = vunpack.c.l.b16 %v439
        %v757 = vunpack.c.h.b16 %v439
        %v758 = vunpack.c.l.b16 %v440
        %v759 = vunpack.c.h.b16 %v440
        %v760 = vunpack.c.l.b16 %v441
        %v761 = vunpack.c.h.b16 %v441
        %v762 = vunpack.c.l.b16 %v442
        %v763 = vunpack.c.h.b16 %v442
        %v764 = vunpack.c.l.b16 %v443
        %v765 = vunpack.c.h.b16 %v443
        %v766 = vunpack.c.l.b16 %v444
        %v767 = vunpack.c.h.b16 %v444
        %v768 = vunpack.c.l.b16 %v445
        %v769 = vunpack.c.h.b16 %v445
        %v770 = vunpack.c.l.b16 %v446
        %v771 = vunpack.c.h.b16 %v446
        %v772 = vunpack.c.l.b16 %v447
        %v773 = vunpack.c.h.b16 %v447
        %v774 = vunpack.c.l.b16 %v448
        %v775 = vunpack.c.h.b16 %v448
        %v776 = vunpack.c.l.b16 %v449
        %v777 = vunpack.c.h.b16 %v449
        %v778 = vunpack.c.l.b16 %v450
        %v779 = vunpack.c.h.b16 %v450
        %v780 = vunpack.c.l.b16 %v451
        %v781 = vunpack.c.h.b16 %v451
        %v782 = vunpack.c.l.b16 %v452
        %v783 = vunpack.c.h.b16 %v452
        %v784 = vunpack.c.l.b16 %v453
        %v785 = vunpack.c.h.b16 %v453
        %v786 = vunpack.c.l.b16 %v454
        %v787 = vunpack.c.h.b16 %v454
        %v788 = vunpack.c.l.b16 %v455
        %v789 = vunpack.c.h.b16 %v455
        %v790 = vunpack.c.l.b16 %v456
        %v791 = vunpack.c.h.b16 %v456
        %v792 = vunpack.c.l.b16 %v457
        %v793 = vunpack.c.h.b16 %v457
        %v794 = vunpack.c.l.b16 %v458
        %v795 = vunpack.c.h.b16 %v458
        %v796 = vunpack.c.l.b16 %v459
        %v797 = vunpack.c.h.b16 %v459
        %v798 = vunpack.c.l.b16 %v460
        %v799 = vunpack.c.h.b16 %v460
        %v800 = vunpack.c.l.b16 %v461
        %v801 = vunpack.c.h.b16 %v461
        %v802 = vunpack.c.l.b16 %v462
        %v803 = vunpack.c.h.b16 %v462
        %v804 = vunpack.c.l.b16 %v463
        %v805 = vunpack.c.h.b16 %v463
        %v806 = vunpack.c.l.b16 %v464
        %v807 = vunpack.c.h.b16 %v464
        %v808 = vunpack.c.l.b16 %v465
        %v809 = vunpack.c.h.b16 %v465
        %v810 = vunpack.c.l.b16 %v466
        %v811 = vunpack.c.h.b16 %v466
        %v812 = vunpack.c.l.b16 %v467
        %v813 = vunpack.c.h.b16 %v467
        %v814 = vunpack.c.l.b16 %v468
        %v815 = vunpack.c.h.b16 %v468
        %v816 = vunpack.c.l.b16 %v469
        %v817 = vunpack.c.h.b16 %v469
        %v818 = vunpack.c.l.b16 %v470
        %v819 = vunpack.c.h.b16 %v470
        %v820 = vunpack.c.l.b16 %v471
        %v821 = vunpack.c.h.b16 %v471
        %v822 = vunpack.c.l.b16 %v472
        %v823 = vunpack.c.h.b16 %v472
        %v824 = vunpack.c.l.b16 %v473
        %v825 = vunpack.c.h.b16 %v473
        %v826 = vunpack.c.l.b16 %v474
        %v827 = vunpack.c.h.b16 %v474
        %v828 = vunpack.c.l.b16 %v475
        %v829 = vunpack.c.h.b16 %v475
        %v830 = vunpack.c.l.b16 %v476
        %v831 = vunpack.c.h.b16 %v476
        %v832 = vunpack.c.l.b16 %v477
        %v833 = vunpack.c.h.b16 %v477
        %v834 = vunpack.c.l.b16 %v478
        %v835 = vunpack.c.h.b16 %v478
        %v836 = vunpack.c.l.b16 %v479
        %v837 = vunpack.c.h.b16 %v479
        %v838 = vunpack.c.l.b16 %v480
        %v839 = vunpack.c.h.b16 %v480
        %v840 = vunpack.c.l.b16 %v481
        %v841 = vunpack.c.h.b16 %v481
        %v842 = vunpack.c.l.b16 %v482
        %v843 = vunpack.c.h.b16 %v482
        %v844 = vunpack.c.l.b16 %v483
        %v845 = vunpack.c.h.b16 %v483
        %v846 = vunpack.c.l.b16 %v484
        %v847 = vunpack.c.h.b16 %v484
        %v848 = vunpack.c.l.b16 %v485
        %v849 = vunpack.c.h.b16 %v485
        %v850 = vunpack.c.l.b16 %v486
        %v851 = vunpack.c.h.b16 %v486
        %v852 = vunpack.c.l.b16 %v487
        %v853 = vunpack.c.h.b16 %v487
        %v854 = vunpack.c.l.b16 %v488
        %v855 = vunpack.c.h.b16 %v488
        %v856 = vunpack.c.l.b16 %v489
        %v857 = vunpack.c.h.b16 %v489
        %v858 = vunpack.c.l.b16 %v490
        %v859 = vunpack.c.h.b16 %v490
        %v860 = vunpack.c.l.b16 %v491
        %v861 = vunpack.c.h.b16 %v491
        %v862 = vunpack.c.l.b16 %v492
        %v863 = vunpack.c.h.b16 %v492
        %v864 = vunpack.c.l.b16 %v493
        %v865 = vunpack.c.h.b16 %v493
        %v866 = vunpack.c.l.b16 %v494
        %v867 = vunpack.c.h.b16 %v494
        %v868 = vunpack.c.l.b16 %v495
        %v869 = vunpack.c.h.b16 %v495
        %v870 = vunpack.c.l.b16 %v496
        %v871 = vunpack.c.h.b16 %v496
        %v872 = vunpack.c.l.b16 %v497
        %v873 = vunpack.c.h.b16 %v497
        %v874 = vunpack.c.l.b16 %v498
        %v875 = vunpack.c.h.b16 %v498
        %v876 = vunpack.c.l.b16 %v499
        %v877 = vunpack.c.h.b16 %v499
        %v878 = vunpack.c.l.b16 %v500
        %v879 = vunpack.c.h.b16 %v500
        %v880 = vunpack.c.l.b16 %v501
        %v881 = vunpack.c.h.b16 %v501
        %v882 = vunpack.c.l.b16 %v502
        %v883 = vunpack.c.h.b16 %v502
        %v884 = vunpack.c.l.b16 %v503
        %v885 = vunpack.c.h.b16 %v503
        %v886 = vunpack.c.l.b16 %v504
        %v887 = vunpack.c.h.b16 %v504
        %v888 = vunpack.c.l.b16 %v505
        %v889 = vunpack.c.h.b16 %v505
        %v890 = vpack.c.b16 %v642, %v634
        %v891 = vpack.c.b16 %v643, %v635
        %v892 = vpack.c.b16 %v644, %v636
        %v893 = vpack.c.b16 %v645, %v637
        %v894 = vpack.c.b16 %v646, %v638
        %v895 = vpack.c.b16 %v647, %v639
        %v896 = vpack.c.b16 %v648, %v640
        %v897 = vpack.c.b16 %v649, %v641
        %v898 = vpack.c.b16 %v658, %v650
        %v899 = vpack.c.b16 %v659, %v651
        %v900 = vpack.c.b16 %v660, %v652
        %v901 = vpack.c.b16 %v661, %v653
        %v902 = vpack.c.b16 %v662, %v654
        %v903 = vpack.c.b16 %v663, %v655
        %v904 = vpack.c.b16 %v664, %v656
        %v905 = vpack.c.b16 %v665, %v657
        %v906 = vpack.c.b16 %v674, %v666
        %v907 = vpack.c.b16 %v675, %v667
        %v908 = vpack.c.b16 %v676, %v668
        %v909 = vpack.c.b16 %v677, %v669
        %v910 = vpack.c.b16 %v678, %v670
        %v911 = vpack.c.b16 %v679, %v671
        %v912 = vpack.c.b16 %v680, %v672
        %v913 = vpack.c.b16 %v681, %v673
        %v914 = vpack.c.b16 %v690, %v682
        %v915 = vpack.c.b16 %v691, %v683
        %v916 = vpack.c.b16 %v692, %v684
        %v917 = vpack.c.b16 %v693, %v685
        %v918 = vpack.c.b16 %v694, %v686
        %v919 = vpack.c.b16 %v695, %v687
        %v920 = vpack.c.b16 %v696, %v688
        %v921 = vpack.c.b16 %v697, %v689
        %v922 = vpack.c.b16 %v706, %v698
        %v923 = vpack.c.b16 %v707, %v699
        %v924 = vpack.c.b16 %v708, %v700
        %v925 = vpack.c.b16 %v709, %v701
        %v926 = vpack.c.b16 %v710, %v702
        %v927 = vpack.c.b16 %v711, %v703
        %v928 = vpack.c.b16 %v712, %v704
        %v929 = vpack.c.b16 %v713, %v705
        %v930 = vpack.c.b16 %v722, %v714
        %v931 = vpack.c.b16 %v723, %v715
        %v932 = vpack.c.b16 %v724, %v716
        %v933 = vpack.c.b16 %v725, %v717
        %v934 = vpack.c.b16 %v726, %v718
        %v935 = vpack.c.b16 %v727, %v719
        %v936 = vpack.c.b16 %v728, %v720
        %v937 = vpack.c.b16 %v729, %v721
        %v938 = vpack.c.b16 %v738, %v730
        %v939 = vpack.c.b16 %v739, %v731
        %v940 = vpack.c.b16 %v740, %v732
        %v941 = vpack.c.b16 %v741, %v733
        %v942 = vpack.c.b16 %v742, %v734
        %v943 = vpack.c.b16 %v743, %v735
        %v944 = vpack.c.b16 %v744, %v736
        %v945 = vpack.c.b16 %v745, %v737
        %v946 = vpack.c.b16 %v754, %v746
        %v947 = vpack.c.b16 %v755, %v747
        %v948 = vpack.c.b16 %v756, %v748
        %v949 = vpack.c.b16 %v757, %v749
        %v950 = vpack.c.b16 %v758, %v750
        %v951 = vpack.c.b16 %v759, %v751
        %v952 = vpack.c.b16 %v760, %v752
        %v953 = vpack.c.b16 %v761, %v753
        %v954 = vpack.c.b16 %v770, %v762
        %v955 = vpack.c.b16 %v771, %v763
        %v956 = vpack.c.b16 %v772, %v764
        %v957 = vpack.c.b16 %v773, %v765
        %v958 = vpack.c.b16 %v774, %v766
        %v959 = vpack.c.b16 %v775, %v767
        %v960 = vpack.c.b16 %v776, %v768
        %v961 = vpack.c.b16 %v777, %v769
        %v962 = vpack.c.b16 %v786, %v778
        %v963 = vpack.c.b16 %v787, %v779
        %v964 = vpack.c.b16 %v788, %v780
        %v965 = vpack.c.b16 %v789, %v781
        %v966 = vpack.c.b16 %v790, %v782
        %v967 = vpack.c.b16 %v791, %v783
        %v968 = vpack.c.b16 %v792, %v784
        %v969 = vpack.c.b16 %v793, %v785
        %v970 = vpack.c.b16 %v802, %v794
        %v971 = vpack.c.b16 %v803, %v795
        %v972 = vpack.c.b16 %v804, %v796
        %v973 = vpack.c.b16 %v805, %v797
        %v974 = vpack.c.b16 %v806, %v798
        %v975 = vpack.c.b16 %v807, %v799
        %v976 = vpack.c.b16 %v808, %v800
        %v977 = vpack.c.b16 %v809, %v801
        %v978 = vpack.c.b16 %v818, %v810
        %v979 = vpack.c.b16 %v819, %v811
        %v980 = vpack.c.b16 %v820, %v812
        %v981 = vpack.c.b16 %v821, %v813
        %v982 = vpack.c.b16 %v822, %v814
        %v983 = vpack.c.b16 %v823, %v815
        %v984 = vpack.c.b16 %v824, %v816
        %v985 = vpack.c.b16 %v825, %v817
        %v986 = vpack.c.b16 %v834, %v826
        %v987 = vpack.c.b16 %v835, %v827
        %v988 = vpack.c.b16 %v836, %v828
        %v989 = vpack.c.b16 %v837, %v829
        %v990 = vpack.c.b16 %v838, %v830
        %v991 = vpack.c.b16 %v839, %v831
        %v992 = vpack.c.b16 %v840, %v832
        %v993 = vpack.c.b16 %v841, %v833
        %v994 = vpack.c.b16 %v850, %v842
        %v995 = vpack.c.b16 %v851, %v843
        %v996 = vpack.c.b16 %v852, %v844
        %v997 = vpack.c.b16 %v853, %v845
        %v998 = vpack.c.b16 %v854, %v846
        %v999 = vpack.c.b16 %v855, %v847
        %v1000 = vpack.c.b16 %v856, %v848
        %v1001 = vpack.c.b16 %v857, %v849
        %v1002 = vpack.c.b16 %v866, %v858
        %v1003 = vpack.c.b16 %v867, %v859
        %v1004 = vpack.c.b16 %v868, %v860
        %v1005 = vpack.c.b16 %v869, %v861
        %v1006 = vpack.c.b16 %v870, %v862
        %v1007 = vpack.c.b16 %v871, %v863
        %v1008 = vpack.c.b16 %v872, %v864
        %v1009 = vpack.c.b16 %v873, %v865
        %v1010 = vpack.c.b16 %v882, %v874
        %v1011 = vpack.c.b16 %v883, %v875
        %v1012 = vpack.c.b16 %v884, %v876
        %v1013 = vpack.c.b16 %v885, %v877
        %v1014 = vpack.c.b16 %v886, %v878
        %v1015 = vpack.c.b16 %v887, %v879
        %v1016 = vpack.c.b16 %v888, %v880
        %v1017 = vpack.c.b16 %v889, %v881
        %1146 = vmatpush.bf16.msra.mxu0 %v946
        %1147 = vmatpush.bf16.msra.mxu0 %v938
        %1148 = vmatpush.bf16.msra.mxu0 %v930
        %1149 = vmatpush.bf16.msra.mxu0 %v922
        %1150 = vmatpush.bf16.msra.mxu0 %v914
        %1151 = vmatpush.bf16.msra.mxu0 %v906
        %1152 = vmatpush.bf16.msra.mxu0 %v898
        %1153 = vmatpush.bf16.msra.mxu0 %v890
        %1154 = vmatmul.bf16.gmra.mxu0 %v376
        %v1155 = vpop.f32.mrf.mxu0
        %v1156 = vadd.f32 0.0, %v1155
        %v1157 = vpop.f32.mrf.mxu0
        %1158 = vdwg.mxu0
        %1159 = vmatpush.bf16.msra.mxu0 %v1010
        %1160 = vmatpush.bf16.msra.mxu0 %v1002
        %1161 = vmatpush.bf16.msra.mxu0 %v994
        %1162 = vmatpush.bf16.msra.mxu0 %v986
        %1163 = vmatpush.bf16.msra.mxu0 %v978
        %1164 = vmatpush.bf16.msra.mxu0 %v970
        %1165 = vmatpush.bf16.msra.mxu0 %v962
        %1166 = vmatpush.bf16.msra.mxu0 %v954
        %1167 = vmatmul.bf16.gmra.mxu0 %v377
        %v1168 = vpop.f32.mrf.mxu0
        %v1169 = vadd.f32 %v1156, %v1168
        %v1170 = vpop.f32.mrf.mxu0
        %1171 = vdwg.mxu0
        %1172 = vmatpush.bf16.msra.mxu0 %v947
        %1173 = vmatpush.bf16.msra.mxu0 %v939
        %1174 = vmatpush.bf16.msra.mxu0 %v931
        %1175 = vmatpush.bf16.msra.mxu0 %v923
        %1176 = vmatpush.bf16.msra.mxu0 %v915
        %1177 = vmatpush.bf16.msra.mxu0 %v907
        %1178 = vmatpush.bf16.msra.mxu0 %v899
        %1179 = vmatpush.bf16.msra.mxu0 %v891
        %1180 = vmatmul.bf16.gmra.mxu0 %v376
        %v1181 = vpop.f32.mrf.mxu0
        %v1182 = vadd.f32 0.0, %v1181
        %v1183 = vpop.f32.mrf.mxu0
        %1184 = vdwg.mxu0
        %1185 = vmatpush.bf16.msra.mxu0 %v1011
        %1186 = vmatpush.bf16.msra.mxu0 %v1003
        %1187 = vmatpush.bf16.msra.mxu0 %v995
        %1188 = vmatpush.bf16.msra.mxu0 %v987
        %1189 = vmatpush.bf16.msra.mxu0 %v979
        %1190 = vmatpush.bf16.msra.mxu0 %v971
        %1191 = vmatpush.bf16.msra.mxu0 %v963
        %1192 = vmatpush.bf16.msra.mxu0 %v955
        %1193 = vmatmul.bf16.gmra.mxu0 %v377
        %v1194 = vpop.f32.mrf.mxu0
        %v1195 = vadd.f32 %v1182, %v1194
        %v1196 = vpop.f32.mrf.mxu0
        %1197 = vdwg.mxu0
        %1198 = vmatpush.bf16.msra.mxu0 %v948
        %1199 = vmatpush.bf16.msra.mxu0 %v940
        %1200 = vmatpush.bf16.msra.mxu0 %v932
        %1201 = vmatpush.bf16.msra.mxu0 %v924
        %1202 = vmatpush.bf16.msra.mxu0 %v916
        %1203 = vmatpush.bf16.msra.mxu0 %v908
        %1204 = vmatpush.bf16.msra.mxu0 %v900
        %1205 = vmatpush.bf16.msra.mxu0 %v892
        %1206 = vmatmul.bf16.gmra.mxu0 %v376
        %v1207 = vpop.f32.mrf.mxu0
        %v1208 = vadd.f32 0.0, %v1207
        %v1209 = vpop.f32.mrf.mxu0
        %1210 = vdwg.mxu0
        %1211 = vmatpush.bf16.msra.mxu0 %v1012
        %1212 = vmatpush.bf16.msra.mxu0 %v1004
        %1213 = vmatpush.bf16.msra.mxu0 %v996
        %1214 = vmatpush.bf16.msra.mxu0 %v988
        %1215 = vmatpush.bf16.msra.mxu0 %v980
        %1216 = vmatpush.bf16.msra.mxu0 %v972
        %1217 = vmatpush.bf16.msra.mxu0 %v964
        %1218 = vmatpush.bf16.msra.mxu0 %v956
        %1219 = vmatmul.bf16.gmra.mxu0 %v377
        %v1220 = vpop.f32.mrf.mxu0
        %v1221 = vadd.f32 %v1208, %v1220
        %v1222 = vpop.f32.mrf.mxu0
        %1223 = vdwg.mxu0
        %1224 = vmatpush.bf16.msra.mxu0 %v949
        %1225 = vmatpush.bf16.msra.mxu0 %v941
        %1226 = vmatpush.bf16.msra.mxu0 %v933
        %1227 = vmatpush.bf16.msra.mxu0 %v925
        %1228 = vmatpush.bf16.msra.mxu0 %v917
        %1229 = vmatpush.bf16.msra.mxu0 %v909
        %1230 = vmatpush.bf16.msra.mxu0 %v901
        %1231 = vmatpush.bf16.msra.mxu0 %v893
        %1232 = vmatmul.bf16.gmra.mxu0 %v376
        %v1233 = vpop.f32.mrf.mxu0
        %v1234 = vadd.f32 0.0, %v1233
        %v1235 = vpop.f32.mrf.mxu0
        %1236 = vdwg.mxu0
        %1237 = vmatpush.bf16.msra.mxu0 %v1013
        %1238 = vmatpush.bf16.msra.mxu0 %v1005
        %1239 = vmatpush.bf16.msra.mxu0 %v997
        %1240 = vmatpush.bf16.msra.mxu0 %v989
        %1241 = vmatpush.bf16.msra.mxu0 %v981
        %1242 = vmatpush.bf16.msra.mxu0 %v973
        %1243 = vmatpush.bf16.msra.mxu0 %v965
        %1244 = vmatpush.bf16.msra.mxu0 %v957
        %1245 = vmatmul.bf16.gmra.mxu0 %v377
        %v1246 = vpop.f32.mrf.mxu0
        %v1247 = vadd.f32 %v1234, %v1246
        %v1248 = vpop.f32.mrf.mxu0
        %1249 = vdwg.mxu0
        %1250 = vmatpush.bf16.msra.mxu0 %v950
        %1251 = vmatpush.bf16.msra.mxu0 %v942
        %1252 = vmatpush.bf16.msra.mxu0 %v934
        %1253 = vmatpush.bf16.msra.mxu0 %v926
        %1254 = vmatpush.bf16.msra.mxu0 %v918
        %1255 = vmatpush.bf16.msra.mxu0 %v910
        %1256 = vmatpush.bf16.msra.mxu0 %v902
        %1257 = vmatpush.bf16.msra.mxu0 %v894
        %1258 = vmatmul.bf16.gmra.mxu0 %v376
        %v1259 = vpop.f32.mrf.mxu0
        %v1260 = vadd.f32 0.0, %v1259
        %v1261 = vpop.f32.mrf.mxu0
        %1262 = vdwg.mxu0
        %1263 = vmatpush.bf16.msra.mxu0 %v1014
        %1264 = vmatpush.bf16.msra.mxu0 %v1006
        %1265 = vmatpush.bf16.msra.mxu0 %v998
        %1266 = vmatpush.bf16.msra.mxu0 %v990
        %1267 = vmatpush.bf16.msra.mxu0 %v982
        %1268 = vmatpush.bf16.msra.mxu0 %v974
        %1269 = vmatpush.bf16.msra.mxu0 %v966
        %1270 = vmatpush.bf16.msra.mxu0 %v958
        %1271 = vmatmul.bf16.gmra.mxu0 %v377
        %v1272 = vpop.f32.mrf.mxu0
        %v1273 = vadd.f32 %v1260, %v1272
        %v1274 = vpop.f32.mrf.mxu0
        %1275 = vdwg.mxu0
        %1276 = vmatpush.bf16.msra.mxu0 %v951
        %1277 = vmatpush.bf16.msra.mxu0 %v943
        %1278 = vmatpush.bf16.msra.mxu0 %v935
        %1279 = vmatpush.bf16.msra.mxu0 %v927
        %1280 = vmatpush.bf16.msra.mxu0 %v919
        %1281 = vmatpush.bf16.msra.mxu0 %v911
        %1282 = vmatpush.bf16.msra.mxu0 %v903
        %1283 = vmatpush.bf16.msra.mxu0 %v895
        %1284 = vmatmul.bf16.gmra.mxu0 %v376
        %v1285 = vpop.f32.mrf.mxu0
        %v1286 = vadd.f32 0.0, %v1285
        %v1287 = vpop.f32.mrf.mxu0
        %1288 = vdwg.mxu0
        %1289 = vmatpush.bf16.msra.mxu0 %v1015
        %1290 = vmatpush.bf16.msra.mxu0 %v1007
        %1291 = vmatpush.bf16.msra.mxu0 %v999
        %1292 = vmatpush.bf16.msra.mxu0 %v991
        %1293 = vmatpush.bf16.msra.mxu0 %v983
        %1294 = vmatpush.bf16.msra.mxu0 %v975
        %1295 = vmatpush.bf16.msra.mxu0 %v967
        %1296 = vmatpush.bf16.msra.mxu0 %v959
        %1297 = vmatmul.bf16.gmra.mxu0 %v377
        %v1298 = vpop.f32.mrf.mxu0
        %v1299 = vadd.f32 %v1286, %v1298
        %v1300 = vpop.f32.mrf.mxu0
        %1301 = vdwg.mxu0
        %1302 = vmatpush.bf16.msra.mxu0 %v952
        %1303 = vmatpush.bf16.msra.mxu0 %v944
        %1304 = vmatpush.bf16.msra.mxu0 %v936
        %1305 = vmatpush.bf16.msra.mxu0 %v928
        %1306 = vmatpush.bf16.msra.mxu0 %v920
        %1307 = vmatpush.bf16.msra.mxu0 %v912
        %1308 = vmatpush.bf16.msra.mxu0 %v904
        %1309 = vmatpush.bf16.msra.mxu0 %v896
        %1310 = vmatmul.bf16.gmra.mxu0 %v376
        %v1311 = vpop.f32.mrf.mxu0
        %v1312 = vadd.f32 0.0, %v1311
        %v1313 = vpop.f32.mrf.mxu0
        %1314 = vdwg.mxu0
        %1315 = vmatpush.bf16.msra.mxu0 %v1016
        %1316 = vmatpush.bf16.msra.mxu0 %v1008
        %1317 = vmatpush.bf16.msra.mxu0 %v1000
        %1318 = vmatpush.bf16.msra.mxu0 %v992
        %1319 = vmatpush.bf16.msra.mxu0 %v984
        %1320 = vmatpush.bf16.msra.mxu0 %v976
        %1321 = vmatpush.bf16.msra.mxu0 %v968
        %1322 = vmatpush.bf16.msra.mxu0 %v960
        %1323 = vmatmul.bf16.gmra.mxu0 %v377
        %v1324 = vpop.f32.mrf.mxu0
        %v1325 = vadd.f32 %v1312, %v1324
        %v1326 = vpop.f32.mrf.mxu0
        %1327 = vdwg.mxu0
        %1328 = vmatpush.bf16.msra.mxu0 %v953
        %1329 = vmatpush.bf16.msra.mxu0 %v945
        %1330 = vmatpush.bf16.msra.mxu0 %v937
        %1331 = vmatpush.bf16.msra.mxu0 %v929
        %1332 = vmatpush.bf16.msra.mxu0 %v921
        %1333 = vmatpush.bf16.msra.mxu0 %v913
        %1334 = vmatpush.bf16.msra.mxu0 %v905
        %1335 = vmatpush.bf16.msra.mxu0 %v897
        %1336 = vmatmul.bf16.gmra.mxu0 %v376
        %v1337 = vpop.f32.mrf.mxu0
        %v1338 = vadd.f32 0.0, %v1337
        %v1339 = vpop.f32.mrf.mxu0
        %1340 = vdwg.mxu0
        %1341 = vmatpush.bf16.msra.mxu0 %v1017
        %1342 = vmatpush.bf16.msra.mxu0 %v1009
        %1343 = vmatpush.bf16.msra.mxu0 %v1001
        %1344 = vmatpush.bf16.msra.mxu0 %v993
        %1345 = vmatpush.bf16.msra.mxu0 %v985
        %1346 = vmatpush.bf16.msra.mxu0 %v977
        %1347 = vmatpush.bf16.msra.mxu0 %v969
        %1348 = vmatpush.bf16.msra.mxu0 %v961
        %1349 = vmatmul.bf16.gmra.mxu0 %v377
        %v1350 = vpop.f32.mrf.mxu0
        %v1351 = vadd.f32 %v1338, %v1350
        %v1352 = vpop.f32.mrf.mxu0
        %1353 = vdwg.mxu0
        %v1354 = vadd.f32 %v368, %v1169
        %v1355 = vadd.f32 %v369, %v1195
        %v1356 = vadd.f32 %v370, %v1221
        %v1357 = vadd.f32 %v371, %v1247
        %v1358 = vadd.f32 %v372, %v1273
        %v1359 = vadd.f32 %v373, %v1299
        %v1360 = vadd.f32 %v374, %v1325
        %v1361 = vadd.f32 %v375, %v1351
        %v1362 = vxor.u32 %v1354, 2147483648
        %v1363 = vxor.u32 %v1355, 2147483648
        %v1364 = vmul.f32 %v1362, 1.442695
        %v1365 = vpow.pop %v1364
        %v1366 = vmul.f32 %v1363, 1.442695
        %v1367 = vpow.pop %v1366
        %v1368 = vadd.f32 %v1365, 1.0
        %v1369 = vadd.f32 %v1367, 1.0
        %v1370 = vrcp.pop %v1368
        %v1371 = vmul.f32 %v1368, %v1370
        %v1372 = vsub.f32 1.0, %v1371
        %v1373 = vmul.f32 %v1370, %v1372
        %v1374 = vadd.f32 %v1370, %v1373
        %vm1375 = vweird.f32 %v1368
        %vm1376 = vweird.f32 %v1370
        %vm1377 = vmor %vm1375, %vm1376
        %v1378 = vsel %vm1377, %v1370, %v1374
        %v1379 = vand.u32 2147483647, %v1368
        %vm1380 = vcmp.eq.f32.partialorder %v1379, 8.507059e+37
        %v1381 = vand.u32 %v1368, 2147483648
        %v1382 = vor.u32 1.1754944e-38, %v1381
        %v1383 = vsel %vm1380, %v1382, %v1378
        %v1384 = vmul.f32 1.0, %v1383
        %v1385 = vrcp.pop %v1369
        %v1386 = vmul.f32 %v1369, %v1385
        %v1387 = vsub.f32 1.0, %v1386
        %v1388 = vmul.f32 %v1385, %v1387
        %v1389 = vadd.f32 %v1385, %v1388
        %vm1390 = vweird.f32 %v1369
        %vm1391 = vweird.f32 %v1385
        %vm1392 = vmor %vm1390, %vm1391
        %v1393 = vsel %vm1392, %v1385, %v1389
        %v1394 = vand.u32 2147483647, %v1369
        %vm1395 = vcmp.eq.f32.partialorder %v1394, 8.507059e+37
        %v1396 = vand.u32 %v1369, 2147483648
        %v1397 = vor.u32 1.1754944e-38, %v1396
        %v1398 = vsel %vm1395, %v1397, %v1393
        %v1399 = vmul.f32 1.0, %v1398
        %v1400 = vxor.u32 %v1356, 2147483648
        %v1401 = vxor.u32 %v1357, 2147483648
        %v1402 = vmul.f32 %v1400, 1.442695
        %v1403 = vpow.pop %v1402
        %v1404 = vmul.f32 %v1401, 1.442695
        %v1405 = vpow.pop %v1404
        %v1406 = vadd.f32 %v1403, 1.0
        %v1407 = vadd.f32 %v1405, 1.0
        %v1408 = vrcp.pop %v1406
        %v1409 = vmul.f32 %v1406, %v1408
        %v1410 = vsub.f32 1.0, %v1409
        %v1411 = vmul.f32 %v1408, %v1410
        %v1412 = vadd.f32 %v1408, %v1411
        %vm1413 = vweird.f32 %v1406
        %vm1414 = vweird.f32 %v1408
        %vm1415 = vmor %vm1413, %vm1414
        %v1416 = vsel %vm1415, %v1408, %v1412
        %v1417 = vand.u32 2147483647, %v1406
        %vm1418 = vcmp.eq.f32.partialorder %v1417, 8.507059e+37
        %v1419 = vand.u32 %v1406, 2147483648
        %v1420 = vor.u32 1.1754944e-38, %v1419
        %v1421 = vsel %vm1418, %v1420, %v1416
        %v1422 = vmul.f32 1.0, %v1421
        %v1423 = vrcp.pop %v1407
        %v1424 = vmul.f32 %v1407, %v1423
        %v1425 = vsub.f32 1.0, %v1424
        %v1426 = vmul.f32 %v1423, %v1425
        %v1427 = vadd.f32 %v1423, %v1426
        %vm1428 = vweird.f32 %v1407
        %vm1429 = vweird.f32 %v1423
        %vm1430 = vmor %vm1428, %vm1429
        %v1431 = vsel %vm1430, %v1423, %v1427
        %v1432 = vand.u32 2147483647, %v1407
        %vm1433 = vcmp.eq.f32.partialorder %v1432, 8.507059e+37
        %v1434 = vand.u32 %v1407, 2147483648
        %v1435 = vor.u32 1.1754944e-38, %v1434
        %v1436 = vsel %vm1433, %v1435, %v1431
        %v1437 = vmul.f32 1.0, %v1436
        %v1438 = vtanh.pop %v1358
        %v1439 = vtanh.pop %v1359
        %v1440 = vxor.u32 %v1360, 2147483648
        %v1441 = vxor.u32 %v1361, 2147483648
        %v1442 = vmul.f32 %v1440, 1.442695
        %v1443 = vpow.pop %v1442
        %v1444 = vmul.f32 %v1441, 1.442695
        %v1445 = vpow.pop %v1444
        %v1446 = vadd.f32 %v1443, 1.0
        %v1447 = vadd.f32 %v1445, 1.0
        %v1448 = vrcp.pop %v1446
        %v1449 = vmul.f32 %v1446, %v1448
        %v1450 = vsub.f32 1.0, %v1449
        %v1451 = vmul.f32 %v1448, %v1450
        %v1452 = vadd.f32 %v1448, %v1451
        %vm1453 = vweird.f32 %v1446
        %vm1454 = vweird.f32 %v1448
        %vm1455 = vmor %vm1453, %vm1454
        %v1456 = vsel %vm1455, %v1448, %v1452
        %v1457 = vand.u32 2147483647, %v1446
        %vm1458 = vcmp.eq.f32.partialorder %v1457, 8.507059e+37
        %v1459 = vand.u32 %v1446, 2147483648
        %v1460 = vor.u32 1.1754944e-38, %v1459
        %v1461 = vsel %vm1458, %v1460, %v1456
        %v1462 = vmul.f32 1.0, %v1461
        %v1463 = vrcp.pop %v1447
        %v1464 = vmul.f32 %v1447, %v1463
        %v1465 = vsub.f32 1.0, %v1464
        %v1466 = vmul.f32 %v1463, %v1465
        %v1467 = vadd.f32 %v1463, %v1466
        %vm1468 = vweird.f32 %v1447
        %vm1469 = vweird.f32 %v1463
        %vm1470 = vmor %vm1468, %vm1469
        %v1471 = vsel %vm1470, %v1463, %v1467
        %v1472 = vand.u32 2147483647, %v1447
        %vm1473 = vcmp.eq.f32.partialorder %v1472, 8.507059e+37
        %v1474 = vand.u32 %v1447, 2147483648
        %v1475 = vor.u32 1.1754944e-38, %v1474
        %v1476 = vsel %vm1473, %v1475, %v1471
        %v1477 = vmul.f32 1.0, %v1476
        %v1478 = vmul.f32 %v1422, %v366
        %v1479 = vmul.f32 %v1437, %v367
        %v1480 = vmul.f32 %v1384, %v1438
        %v1481 = vmul.f32 %v1399, %v1439
        %v1482 = vadd.f32 %v1478, %v1480
        %v1483 = vadd.f32 %v1479, %v1481
        %v1484 = vtanh.pop %v1482
        %v1485 = vtanh.pop %v1483
        %v1486 = vmul.f32 %v1462, %v1484
        %v1487 = vmul.f32 %v1477, %v1485
        %1489 = vset.pattern.permute.xlu0 0
        %1490 = vperm.xlu0 %1489, %v363
        %v1491 = vpop.permute.xlu0 %1490
        %v1493 = vmul.f32 %v1491, %v1486
        %v1494 = vmul.f32 %v1491, %v1487
        %v1495 = vsub.f32 1.0, %v363
        %1497 = vset.pattern.permute.xlu0 0
        %1498 = vperm.xlu0 %1497, %v1495
        %v1499 = vpop.permute.xlu0 %1498
        %v1501 = vmul.f32 %v1499, %v364
        %v1502 = vmul.f32 %v1499, %v365
        %v1503 = vadd.f32 %v1493, %v1501
        %v1504 = vadd.f32 %v1494, %v1502
        %1505 = vst [vmem:[#allocation3] sm:$0xff] %v1503
        %1506 = vst [vmem:[#allocation3 + $0x8] sm:$0xff] %v1504
        %v1507 = vmul.f32 %v1491, %v1482
        %v1508 = vmul.f32 %v1491, %v1483
        %v1509 = vmul.f32 %v1499, %v366
        %v1510 = vmul.f32 %v1499, %v367
        %v1511 = vadd.f32 %v1507, %v1509
        %v1512 = vadd.f32 %v1508, %v1510
        %1513 = vst [vmem:[#allocation4] sm:$0xff] %v1511
        %1514 = vst [vmem:[#allocation4 + $0x8] sm:$0xff] %v1512
        %s1515 = smul.u32 %s22, 8
        %s1516 = sshra.s32 %s1515, 3
        %s1517 = sand.u32 %s1515, 7
        %s1518 = smul.u32 %s1516, 4
        %s1519 = smul.addr %s1518, 8
        %s1520 = scalar_lea.vmem [#allocation2], %s1519
        %1521 = vst [vmem:[%s1520] sm:$0xff] %v1493
        %1522 = vst [vmem:[%s1520 + $0x8] sm:$0xff] %v1494
        %s1523 = ssub.s32 7, %s22
        %v1524 = vstv %s1523
        %vm1525 = vcmp.lt.s32.totalorder %v1524, %v359
        %v1526 = vsel %vm1525, 1, 0
        %v1527 = vcvt.s32.f32 %v1526
        %v1528 = vld [vmem:[#allocation5] sm:$0xff]
        %v1529 = vld [vmem:[#allocation5 + $0x8] sm:$0xff]
        %v1530 = vld [vmem:[#allocation6] sm:$0xff]
        %v1531 = vld [vmem:[#allocation6 + $0x8] sm:$0xff]
        %v1532 = vld [vmem:[%s345] sm:$0xff]
        %v1533 = vld [vmem:[%s345 + $0x8] sm:$0xff]
        %v1534 = vld [vmem:[%s345 + $0x10] sm:$0xff]
        %v1535 = vld [vmem:[%s345 + $0x18] sm:$0xff]
        %v1536 = vld [vmem:[%s345 + $0x20] sm:$0xff]
        %v1537 = vld [vmem:[%s345 + $0x28] sm:$0xff]
        %v1538 = vld [vmem:[%s345 + $0x30] sm:$0xff]
        %v1539 = vld [vmem:[%s345 + $0x38] sm:$0xff]
        %v1540 = vpack.c.bf16 %v1528, %v1528
        %v1541 = vpack.c.bf16 %v1529, %v1529
        %v1542 = vld [vmem:[%s3] sm:$0xff]
        %v1543 = vld [vmem:[%s3 + $0x8] sm:$0xff]
        %v1544 = vld [vmem:[%s3 + $0x10] sm:$0xff]
        %v1545 = vld [vmem:[%s3 + $0x18] sm:$0xff]
        %v1546 = vld [vmem:[%s3 + $0x20] sm:$0xff]
        %v1547 = vld [vmem:[%s3 + $0x28] sm:$0xff]
        %v1548 = vld [vmem:[%s3 + $0x30] sm:$0xff]
        %v1549 = vld [vmem:[%s3 + $0x38] sm:$0xff]
        %v1550 = vld [vmem:[%s3 + $0x40] sm:$0xff]
        %v1551 = vld [vmem:[%s3 + $0x48] sm:$0xff]
        %v1552 = vld [vmem:[%s3 + $0x50] sm:$0xff]
        %v1553 = vld [vmem:[%s3 + $0x58] sm:$0xff]
        %v1554 = vld [vmem:[%s3 + $0x60] sm:$0xff]
        %v1555 = vld [vmem:[%s3 + $0x68] sm:$0xff]
        %v1556 = vld [vmem:[%s3 + $0x70] sm:$0xff]
        %v1557 = vld [vmem:[%s3 + $0x78] sm:$0xff]
        %v1558 = vld [vmem:[%s3 + $0x80] sm:$0xff]
        %v1559 = vld [vmem:[%s3 + $0x88] sm:$0xff]
        %v1560 = vld [vmem:[%s3 + $0x90] sm:$0xff]
        %v1561 = vld [vmem:[%s3 + $0x98] sm:$0xff]
        %v1562 = vld [vmem:[%s3 + $0xa0] sm:$0xff]
        %v1563 = vld [vmem:[%s3 + $0xa8] sm:$0xff]
        %v1564 = vld [vmem:[%s3 + $0xb0] sm:$0xff]
        %v1565 = vld [vmem:[%s3 + $0xb8] sm:$0xff]
        %v1566 = vld [vmem:[%s3 + $0xc0] sm:$0xff]
        %v1567 = vld [vmem:[%s3 + $0xc8] sm:$0xff]
        %v1568 = vld [vmem:[%s3 + $0xd0] sm:$0xff]
        %v1569 = vld [vmem:[%s3 + $0xd8] sm:$0xff]
        %v1570 = vld [vmem:[%s3 + $0xe0] sm:$0xff]
        %v1571 = vld [vmem:[%s3 + $0xe8] sm:$0xff]
        %v1572 = vld [vmem:[%s3 + $0xf0] sm:$0xff]
        %v1573 = vld [vmem:[%s3 + $0xf8] sm:$0xff]
        %v1574 = vld [vmem:[%s3 + $0x100] sm:$0xff]
        %v1575 = vld [vmem:[%s3 + $0x108] sm:$0xff]
        %v1576 = vld [vmem:[%s3 + $0x110] sm:$0xff]
        %v1577 = vld [vmem:[%s3 + $0x118] sm:$0xff]
        %v1578 = vld [vmem:[%s3 + $0x120] sm:$0xff]
        %v1579 = vld [vmem:[%s3 + $0x128] sm:$0xff]
        %v1580 = vld [vmem:[%s3 + $0x130] sm:$0xff]
        %v1581 = vld [vmem:[%s3 + $0x138] sm:$0xff]
        %v1582 = vld [vmem:[%s3 + $0x140] sm:$0xff]
        %v1583 = vld [vmem:[%s3 + $0x148] sm:$0xff]
        %v1584 = vld [vmem:[%s3 + $0x150] sm:$0xff]
        %v1585 = vld [vmem:[%s3 + $0x158] sm:$0xff]
        %v1586 = vld [vmem:[%s3 + $0x160] sm:$0xff]
        %v1587 = vld [vmem:[%s3 + $0x168] sm:$0xff]
        %v1588 = vld [vmem:[%s3 + $0x170] sm:$0xff]
        %v1589 = vld [vmem:[%s3 + $0x178] sm:$0xff]
        %v1590 = vld [vmem:[%s3 + $0x180] sm:$0xff]
        %v1591 = vld [vmem:[%s3 + $0x188] sm:$0xff]
        %v1592 = vld [vmem:[%s3 + $0x190] sm:$0xff]
        %v1593 = vld [vmem:[%s3 + $0x198] sm:$0xff]
        %v1594 = vld [vmem:[%s3 + $0x1a0] sm:$0xff]
        %v1595 = vld [vmem:[%s3 + $0x1a8] sm:$0xff]
        %v1596 = vld [vmem:[%s3 + $0x1b0] sm:$0xff]
        %v1597 = vld [vmem:[%s3 + $0x1b8] sm:$0xff]
        %v1598 = vld [vmem:[%s3 + $0x1c0] sm:$0xff]
        %v1599 = vld [vmem:[%s3 + $0x1c8] sm:$0xff]
        %v1600 = vld [vmem:[%s3 + $0x1d0] sm:$0xff]
        %v1601 = vld [vmem:[%s3 + $0x1d8] sm:$0xff]
        %v1602 = vld [vmem:[%s3 + $0x1e0] sm:$0xff]
        %v1603 = vld [vmem:[%s3 + $0x1e8] sm:$0xff]
        %v1604 = vld [vmem:[%s3 + $0x1f0] sm:$0xff]
        %v1605 = vld [vmem:[%s3 + $0x1f8] sm:$0xff]
        %v1606 = vld [vmem:[%s3 + $0x200] sm:$0xff]
        %v1607 = vld [vmem:[%s3 + $0x208] sm:$0xff]
        %v1608 = vld [vmem:[%s3 + $0x210] sm:$0xff]
        %v1609 = vld [vmem:[%s3 + $0x218] sm:$0xff]
        %v1610 = vld [vmem:[%s3 + $0x220] sm:$0xff]
        %v1611 = vld [vmem:[%s3 + $0x228] sm:$0xff]
        %v1612 = vld [vmem:[%s3 + $0x230] sm:$0xff]
        %v1613 = vld [vmem:[%s3 + $0x238] sm:$0xff]
        %v1614 = vld [vmem:[%s3 + $0x240] sm:$0xff]
        %v1615 = vld [vmem:[%s3 + $0x248] sm:$0xff]
        %v1616 = vld [vmem:[%s3 + $0x250] sm:$0xff]
        %v1617 = vld [vmem:[%s3 + $0x258] sm:$0xff]
        %v1618 = vld [vmem:[%s3 + $0x260] sm:$0xff]
        %v1619 = vld [vmem:[%s3 + $0x268] sm:$0xff]
        %v1620 = vld [vmem:[%s3 + $0x270] sm:$0xff]
        %v1621 = vld [vmem:[%s3 + $0x278] sm:$0xff]
        %v1622 = vld [vmem:[%s3 + $0x280] sm:$0xff]
        %v1623 = vld [vmem:[%s3 + $0x288] sm:$0xff]
        %v1624 = vld [vmem:[%s3 + $0x290] sm:$0xff]
        %v1625 = vld [vmem:[%s3 + $0x298] sm:$0xff]
        %v1626 = vld [vmem:[%s3 + $0x2a0] sm:$0xff]
        %v1627 = vld [vmem:[%s3 + $0x2a8] sm:$0xff]
        %v1628 = vld [vmem:[%s3 + $0x2b0] sm:$0xff]
        %v1629 = vld [vmem:[%s3 + $0x2b8] sm:$0xff]
        %v1630 = vld [vmem:[%s3 + $0x2c0] sm:$0xff]
        %v1631 = vld [vmem:[%s3 + $0x2c8] sm:$0xff]
        %v1632 = vld [vmem:[%s3 + $0x2d0] sm:$0xff]
        %v1633 = vld [vmem:[%s3 + $0x2d8] sm:$0xff]
        %v1634 = vld [vmem:[%s3 + $0x2e0] sm:$0xff]
        %v1635 = vld [vmem:[%s3 + $0x2e8] sm:$0xff]
        %v1636 = vld [vmem:[%s3 + $0x2f0] sm:$0xff]
        %v1637 = vld [vmem:[%s3 + $0x2f8] sm:$0xff]
        %v1638 = vld [vmem:[%s3 + $0x300] sm:$0xff]
        %v1639 = vld [vmem:[%s3 + $0x308] sm:$0xff]
        %v1640 = vld [vmem:[%s3 + $0x310] sm:$0xff]
        %v1641 = vld [vmem:[%s3 + $0x318] sm:$0xff]
        %v1642 = vld [vmem:[%s3 + $0x320] sm:$0xff]
        %v1643 = vld [vmem:[%s3 + $0x328] sm:$0xff]
        %v1644 = vld [vmem:[%s3 + $0x330] sm:$0xff]
        %v1645 = vld [vmem:[%s3 + $0x338] sm:$0xff]
        %v1646 = vld [vmem:[%s3 + $0x340] sm:$0xff]
        %v1647 = vld [vmem:[%s3 + $0x348] sm:$0xff]
        %v1648 = vld [vmem:[%s3 + $0x350] sm:$0xff]
        %v1649 = vld [vmem:[%s3 + $0x358] sm:$0xff]
        %v1650 = vld [vmem:[%s3 + $0x360] sm:$0xff]
        %v1651 = vld [vmem:[%s3 + $0x368] sm:$0xff]
        %v1652 = vld [vmem:[%s3 + $0x370] sm:$0xff]
        %v1653 = vld [vmem:[%s3 + $0x378] sm:$0xff]
        %v1654 = vld [vmem:[%s3 + $0x380] sm:$0xff]
        %v1655 = vld [vmem:[%s3 + $0x388] sm:$0xff]
        %v1656 = vld [vmem:[%s3 + $0x390] sm:$0xff]
        %v1657 = vld [vmem:[%s3 + $0x398] sm:$0xff]
        %v1658 = vld [vmem:[%s3 + $0x3a0] sm:$0xff]
        %v1659 = vld [vmem:[%s3 + $0x3a8] sm:$0xff]
        %v1660 = vld [vmem:[%s3 + $0x3b0] sm:$0xff]
        %v1661 = vld [vmem:[%s3 + $0x3b8] sm:$0xff]
        %v1662 = vld [vmem:[%s3 + $0x3c0] sm:$0xff]
        %v1663 = vld [vmem:[%s3 + $0x3c8] sm:$0xff]
        %v1664 = vld [vmem:[%s3 + $0x3d0] sm:$0xff]
        %v1665 = vld [vmem:[%s3 + $0x3d8] sm:$0xff]
        %v1666 = vld [vmem:[%s3 + $0x3e0] sm:$0xff]
        %v1667 = vld [vmem:[%s3 + $0x3e8] sm:$0xff]
        %v1668 = vld [vmem:[%s3 + $0x3f0] sm:$0xff]
        %v1669 = vld [vmem:[%s3 + $0x3f8] sm:$0xff]
        %v1798 = vunpack.c.l.b16 %v1542
        %v1799 = vunpack.c.h.b16 %v1542
        %v1800 = vunpack.c.l.b16 %v1543
        %v1801 = vunpack.c.h.b16 %v1543
        %v1802 = vunpack.c.l.b16 %v1544
        %v1803 = vunpack.c.h.b16 %v1544
        %v1804 = vunpack.c.l.b16 %v1545
        %v1805 = vunpack.c.h.b16 %v1545
        %v1806 = vunpack.c.l.b16 %v1546
        %v1807 = vunpack.c.h.b16 %v1546
        %v1808 = vunpack.c.l.b16 %v1547
        %v1809 = vunpack.c.h.b16 %v1547
        %v1810 = vunpack.c.l.b16 %v1548
        %v1811 = vunpack.c.h.b16 %v1548
        %v1812 = vunpack.c.l.b16 %v1549
        %v1813 = vunpack.c.h.b16 %v1549
        %v1814 = vunpack.c.l.b16 %v1550
        %v1815 = vunpack.c.h.b16 %v1550
        %v1816 = vunpack.c.l.b16 %v1551
        %v1817 = vunpack.c.h.b16 %v1551
        %v1818 = vunpack.c.l.b16 %v1552
        %v1819 = vunpack.c.h.b16 %v1552
        %v1820 = vunpack.c.l.b16 %v1553
        %v1821 = vunpack.c.h.b16 %v1553
        %v1822 = vunpack.c.l.b16 %v1554
        %v1823 = vunpack.c.h.b16 %v1554
        %v1824 = vunpack.c.l.b16 %v1555
        %v1825 = vunpack.c.h.b16 %v1555
        %v1826 = vunpack.c.l.b16 %v1556
        %v1827 = vunpack.c.h.b16 %v1556
        %v1828 = vunpack.c.l.b16 %v1557
        %v1829 = vunpack.c.h.b16 %v1557
        %v1830 = vunpack.c.l.b16 %v1558
        %v1831 = vunpack.c.h.b16 %v1558
        %v1832 = vunpack.c.l.b16 %v1559
        %v1833 = vunpack.c.h.b16 %v1559
        %v1834 = vunpack.c.l.b16 %v1560
        %v1835 = vunpack.c.h.b16 %v1560
        %v1836 = vunpack.c.l.b16 %v1561
        %v1837 = vunpack.c.h.b16 %v1561
        %v1838 = vunpack.c.l.b16 %v1562
        %v1839 = vunpack.c.h.b16 %v1562
        %v1840 = vunpack.c.l.b16 %v1563
        %v1841 = vunpack.c.h.b16 %v1563
        %v1842 = vunpack.c.l.b16 %v1564
        %v1843 = vunpack.c.h.b16 %v1564
        %v1844 = vunpack.c.l.b16 %v1565
        %v1845 = vunpack.c.h.b16 %v1565
        %v1846 = vunpack.c.l.b16 %v1566
        %v1847 = vunpack.c.h.b16 %v1566
        %v1848 = vunpack.c.l.b16 %v1567
        %v1849 = vunpack.c.h.b16 %v1567
        %v1850 = vunpack.c.l.b16 %v1568
        %v1851 = vunpack.c.h.b16 %v1568
        %v1852 = vunpack.c.l.b16 %v1569
        %v1853 = vunpack.c.h.b16 %v1569
        %v1854 = vunpack.c.l.b16 %v1570
        %v1855 = vunpack.c.h.b16 %v1570
        %v1856 = vunpack.c.l.b16 %v1571
        %v1857 = vunpack.c.h.b16 %v1571
        %v1858 = vunpack.c.l.b16 %v1572
        %v1859 = vunpack.c.h.b16 %v1572
        %v1860 = vunpack.c.l.b16 %v1573
        %v1861 = vunpack.c.h.b16 %v1573
        %v1862 = vunpack.c.l.b16 %v1574
        %v1863 = vunpack.c.h.b16 %v1574
        %v1864 = vunpack.c.l.b16 %v1575
        %v1865 = vunpack.c.h.b16 %v1575
        %v1866 = vunpack.c.l.b16 %v1576
        %v1867 = vunpack.c.h.b16 %v1576
        %v1868 = vunpack.c.l.b16 %v1577
        %v1869 = vunpack.c.h.b16 %v1577
        %v1870 = vunpack.c.l.b16 %v1578
        %v1871 = vunpack.c.h.b16 %v1578
        %v1872 = vunpack.c.l.b16 %v1579
        %v1873 = vunpack.c.h.b16 %v1579
        %v1874 = vunpack.c.l.b16 %v1580
        %v1875 = vunpack.c.h.b16 %v1580
        %v1876 = vunpack.c.l.b16 %v1581
        %v1877 = vunpack.c.h.b16 %v1581
        %v1878 = vunpack.c.l.b16 %v1582
        %v1879 = vunpack.c.h.b16 %v1582
        %v1880 = vunpack.c.l.b16 %v1583
        %v1881 = vunpack.c.h.b16 %v1583
        %v1882 = vunpack.c.l.b16 %v1584
        %v1883 = vunpack.c.h.b16 %v1584
        %v1884 = vunpack.c.l.b16 %v1585
        %v1885 = vunpack.c.h.b16 %v1585
        %v1886 = vunpack.c.l.b16 %v1586
        %v1887 = vunpack.c.h.b16 %v1586
        %v1888 = vunpack.c.l.b16 %v1587
        %v1889 = vunpack.c.h.b16 %v1587
        %v1890 = vunpack.c.l.b16 %v1588
        %v1891 = vunpack.c.h.b16 %v1588
        %v1892 = vunpack.c.l.b16 %v1589
        %v1893 = vunpack.c.h.b16 %v1589
        %v1894 = vunpack.c.l.b16 %v1590
        %v1895 = vunpack.c.h.b16 %v1590
        %v1896 = vunpack.c.l.b16 %v1591
        %v1897 = vunpack.c.h.b16 %v1591
        %v1898 = vunpack.c.l.b16 %v1592
        %v1899 = vunpack.c.h.b16 %v1592
        %v1900 = vunpack.c.l.b16 %v1593
        %v1901 = vunpack.c.h.b16 %v1593
        %v1902 = vunpack.c.l.b16 %v1594
        %v1903 = vunpack.c.h.b16 %v1594
        %v1904 = vunpack.c.l.b16 %v1595
        %v1905 = vunpack.c.h.b16 %v1595
        %v1906 = vunpack.c.l.b16 %v1596
        %v1907 = vunpack.c.h.b16 %v1596
        %v1908 = vunpack.c.l.b16 %v1597
        %v1909 = vunpack.c.h.b16 %v1597
        %v1910 = vunpack.c.l.b16 %v1598
        %v1911 = vunpack.c.h.b16 %v1598
        %v1912 = vunpack.c.l.b16 %v1599
        %v1913 = vunpack.c.h.b16 %v1599
        %v1914 = vunpack.c.l.b16 %v1600
        %v1915 = vunpack.c.h.b16 %v1600
        %v1916 = vunpack.c.l.b16 %v1601
        %v1917 = vunpack.c.h.b16 %v1601
        %v1918 = vunpack.c.l.b16 %v1602
        %v1919 = vunpack.c.h.b16 %v1602
        %v1920 = vunpack.c.l.b16 %v1603
        %v1921 = vunpack.c.h.b16 %v1603
        %v1922 = vunpack.c.l.b16 %v1604
        %v1923 = vunpack.c.h.b16 %v1604
        %v1924 = vunpack.c.l.b16 %v1605
        %v1925 = vunpack.c.h.b16 %v1605
        %v1926 = vunpack.c.l.b16 %v1606
        %v1927 = vunpack.c.h.b16 %v1606
        %v1928 = vunpack.c.l.b16 %v1607
        %v1929 = vunpack.c.h.b16 %v1607
        %v1930 = vunpack.c.l.b16 %v1608
        %v1931 = vunpack.c.h.b16 %v1608
        %v1932 = vunpack.c.l.b16 %v1609
        %v1933 = vunpack.c.h.b16 %v1609
        %v1934 = vunpack.c.l.b16 %v1610
        %v1935 = vunpack.c.h.b16 %v1610
        %v1936 = vunpack.c.l.b16 %v1611
        %v1937 = vunpack.c.h.b16 %v1611
        %v1938 = vunpack.c.l.b16 %v1612
        %v1939 = vunpack.c.h.b16 %v1612
        %v1940 = vunpack.c.l.b16 %v1613
        %v1941 = vunpack.c.h.b16 %v1613
        %v1942 = vunpack.c.l.b16 %v1614
        %v1943 = vunpack.c.h.b16 %v1614
        %v1944 = vunpack.c.l.b16 %v1615
        %v1945 = vunpack.c.h.b16 %v1615
        %v1946 = vunpack.c.l.b16 %v1616
        %v1947 = vunpack.c.h.b16 %v1616
        %v1948 = vunpack.c.l.b16 %v1617
        %v1949 = vunpack.c.h.b16 %v1617
        %v1950 = vunpack.c.l.b16 %v1618
        %v1951 = vunpack.c.h.b16 %v1618
        %v1952 = vunpack.c.l.b16 %v1619
        %v1953 = vunpack.c.h.b16 %v1619
        %v1954 = vunpack.c.l.b16 %v1620
        %v1955 = vunpack.c.h.b16 %v1620
        %v1956 = vunpack.c.l.b16 %v1621
        %v1957 = vunpack.c.h.b16 %v1621
        %v1958 = vunpack.c.l.b16 %v1622
        %v1959 = vunpack.c.h.b16 %v1622
        %v1960 = vunpack.c.l.b16 %v1623
        %v1961 = vunpack.c.h.b16 %v1623
        %v1962 = vunpack.c.l.b16 %v1624
        %v1963 = vunpack.c.h.b16 %v1624
        %v1964 = vunpack.c.l.b16 %v1625
        %v1965 = vunpack.c.h.b16 %v1625
        %v1966 = vunpack.c.l.b16 %v1626
        %v1967 = vunpack.c.h.b16 %v1626
        %v1968 = vunpack.c.l.b16 %v1627
        %v1969 = vunpack.c.h.b16 %v1627
        %v1970 = vunpack.c.l.b16 %v1628
        %v1971 = vunpack.c.h.b16 %v1628
        %v1972 = vunpack.c.l.b16 %v1629
        %v1973 = vunpack.c.h.b16 %v1629
        %v1974 = vunpack.c.l.b16 %v1630
        %v1975 = vunpack.c.h.b16 %v1630
        %v1976 = vunpack.c.l.b16 %v1631
        %v1977 = vunpack.c.h.b16 %v1631
        %v1978 = vunpack.c.l.b16 %v1632
        %v1979 = vunpack.c.h.b16 %v1632
        %v1980 = vunpack.c.l.b16 %v1633
        %v1981 = vunpack.c.h.b16 %v1633
        %v1982 = vunpack.c.l.b16 %v1634
        %v1983 = vunpack.c.h.b16 %v1634
        %v1984 = vunpack.c.l.b16 %v1635
        %v1985 = vunpack.c.h.b16 %v1635
        %v1986 = vunpack.c.l.b16 %v1636
        %v1987 = vunpack.c.h.b16 %v1636
        %v1988 = vunpack.c.l.b16 %v1637
        %v1989 = vunpack.c.h.b16 %v1637
        %v1990 = vunpack.c.l.b16 %v1638
        %v1991 = vunpack.c.h.b16 %v1638
        %v1992 = vunpack.c.l.b16 %v1639
        %v1993 = vunpack.c.h.b16 %v1639
        %v1994 = vunpack.c.l.b16 %v1640
        %v1995 = vunpack.c.h.b16 %v1640
        %v1996 = vunpack.c.l.b16 %v1641
        %v1997 = vunpack.c.h.b16 %v1641
        %v1998 = vunpack.c.l.b16 %v1642
        %v1999 = vunpack.c.h.b16 %v1642
        %v2000 = vunpack.c.l.b16 %v1643
        %v2001 = vunpack.c.h.b16 %v1643
        %v2002 = vunpack.c.l.b16 %v1644
        %v2003 = vunpack.c.h.b16 %v1644
        %v2004 = vunpack.c.l.b16 %v1645
        %v2005 = vunpack.c.h.b16 %v1645
        %v2006 = vunpack.c.l.b16 %v1646
        %v2007 = vunpack.c.h.b16 %v1646
        %v2008 = vunpack.c.l.b16 %v1647
        %v2009 = vunpack.c.h.b16 %v1647
        %v2010 = vunpack.c.l.b16 %v1648
        %v2011 = vunpack.c.h.b16 %v1648
        %v2012 = vunpack.c.l.b16 %v1649
        %v2013 = vunpack.c.h.b16 %v1649
        %v2014 = vunpack.c.l.b16 %v1650
        %v2015 = vunpack.c.h.b16 %v1650
        %v2016 = vunpack.c.l.b16 %v1651
        %v2017 = vunpack.c.h.b16 %v1651
        %v2018 = vunpack.c.l.b16 %v1652
        %v2019 = vunpack.c.h.b16 %v1652
        %v2020 = vunpack.c.l.b16 %v1653
        %v2021 = vunpack.c.h.b16 %v1653
        %v2022 = vunpack.c.l.b16 %v1654
        %v2023 = vunpack.c.h.b16 %v1654
        %v2024 = vunpack.c.l.b16 %v1655
        %v2025 = vunpack.c.h.b16 %v1655
        %v2026 = vunpack.c.l.b16 %v1656
        %v2027 = vunpack.c.h.b16 %v1656
        %v2028 = vunpack.c.l.b16 %v1657
        %v2029 = vunpack.c.h.b16 %v1657
        %v2030 = vunpack.c.l.b16 %v1658
        %v2031 = vunpack.c.h.b16 %v1658
        %v2032 = vunpack.c.l.b16 %v1659
        %v2033 = vunpack.c.h.b16 %v1659
        %v2034 = vunpack.c.l.b16 %v1660
        %v2035 = vunpack.c.h.b16 %v1660
        %v2036 = vunpack.c.l.b16 %v1661
        %v2037 = vunpack.c.h.b16 %v1661
        %v2038 = vunpack.c.l.b16 %v1662
        %v2039 = vunpack.c.h.b16 %v1662
        %v2040 = vunpack.c.l.b16 %v1663
        %v2041 = vunpack.c.h.b16 %v1663
        %v2042 = vunpack.c.l.b16 %v1664
        %v2043 = vunpack.c.h.b16 %v1664
        %v2044 = vunpack.c.l.b16 %v1665
        %v2045 = vunpack.c.h.b16 %v1665
        %v2046 = vunpack.c.l.b16 %v1666
        %v2047 = vunpack.c.h.b16 %v1666
        %v2048 = vunpack.c.l.b16 %v1667
        %v2049 = vunpack.c.h.b16 %v1667
        %v2050 = vunpack.c.l.b16 %v1668
        %v2051 = vunpack.c.h.b16 %v1668
        %v2052 = vunpack.c.l.b16 %v1669
        %v2053 = vunpack.c.h.b16 %v1669
        %v2054 = vpack.c.b16 %v1806, %v1798
        %v2055 = vpack.c.b16 %v1807, %v1799
        %v2056 = vpack.c.b16 %v1808, %v1800
        %v2057 = vpack.c.b16 %v1809, %v1801
        %v2058 = vpack.c.b16 %v1810, %v1802
        %v2059 = vpack.c.b16 %v1811, %v1803
        %v2060 = vpack.c.b16 %v1812, %v1804
        %v2061 = vpack.c.b16 %v1813, %v1805
        %v2062 = vpack.c.b16 %v1822, %v1814
        %v2063 = vpack.c.b16 %v1823, %v1815
        %v2064 = vpack.c.b16 %v1824, %v1816
        %v2065 = vpack.c.b16 %v1825, %v1817
        %v2066 = vpack.c.b16 %v1826, %v1818
        %v2067 = vpack.c.b16 %v1827, %v1819
        %v2068 = vpack.c.b16 %v1828, %v1820
        %v2069 = vpack.c.b16 %v1829, %v1821
        %v2070 = vpack.c.b16 %v1838, %v1830
        %v2071 = vpack.c.b16 %v1839, %v1831
        %v2072 = vpack.c.b16 %v1840, %v1832
        %v2073 = vpack.c.b16 %v1841, %v1833
        %v2074 = vpack.c.b16 %v1842, %v1834
        %v2075 = vpack.c.b16 %v1843, %v1835
        %v2076 = vpack.c.b16 %v1844, %v1836
        %v2077 = vpack.c.b16 %v1845, %v1837
        %v2078 = vpack.c.b16 %v1854, %v1846
        %v2079 = vpack.c.b16 %v1855, %v1847
        %v2080 = vpack.c.b16 %v1856, %v1848
        %v2081 = vpack.c.b16 %v1857, %v1849
        %v2082 = vpack.c.b16 %v1858, %v1850
        %v2083 = vpack.c.b16 %v1859, %v1851
        %v2084 = vpack.c.b16 %v1860, %v1852
        %v2085 = vpack.c.b16 %v1861, %v1853
        %v2086 = vpack.c.b16 %v1870, %v1862
        %v2087 = vpack.c.b16 %v1871, %v1863
        %v2088 = vpack.c.b16 %v1872, %v1864
        %v2089 = vpack.c.b16 %v1873, %v1865
        %v2090 = vpack.c.b16 %v1874, %v1866
        %v2091 = vpack.c.b16 %v1875, %v1867
        %v2092 = vpack.c.b16 %v1876, %v1868
        %v2093 = vpack.c.b16 %v1877, %v1869
        %v2094 = vpack.c.b16 %v1886, %v1878
        %v2095 = vpack.c.b16 %v1887, %v1879
        %v2096 = vpack.c.b16 %v1888, %v1880
        %v2097 = vpack.c.b16 %v1889, %v1881
        %v2098 = vpack.c.b16 %v1890, %v1882
        %v2099 = vpack.c.b16 %v1891, %v1883
        %v2100 = vpack.c.b16 %v1892, %v1884
        %v2101 = vpack.c.b16 %v1893, %v1885
        %v2102 = vpack.c.b16 %v1902, %v1894
        %v2103 = vpack.c.b16 %v1903, %v1895
        %v2104 = vpack.c.b16 %v1904, %v1896
        %v2105 = vpack.c.b16 %v1905, %v1897
        %v2106 = vpack.c.b16 %v1906, %v1898
        %v2107 = vpack.c.b16 %v1907, %v1899
        %v2108 = vpack.c.b16 %v1908, %v1900
        %v2109 = vpack.c.b16 %v1909, %v1901
        %v2110 = vpack.c.b16 %v1918, %v1910
        %v2111 = vpack.c.b16 %v1919, %v1911
        %v2112 = vpack.c.b16 %v1920, %v1912
        %v2113 = vpack.c.b16 %v1921, %v1913
        %v2114 = vpack.c.b16 %v1922, %v1914
        %v2115 = vpack.c.b16 %v1923, %v1915
        %v2116 = vpack.c.b16 %v1924, %v1916
        %v2117 = vpack.c.b16 %v1925, %v1917
        %v2118 = vpack.c.b16 %v1934, %v1926
        %v2119 = vpack.c.b16 %v1935, %v1927
        %v2120 = vpack.c.b16 %v1936, %v1928
        %v2121 = vpack.c.b16 %v1937, %v1929
        %v2122 = vpack.c.b16 %v1938, %v1930
        %v2123 = vpack.c.b16 %v1939, %v1931
        %v2124 = vpack.c.b16 %v1940, %v1932
        %v2125 = vpack.c.b16 %v1941, %v1933
        %v2126 = vpack.c.b16 %v1950, %v1942
        %v2127 = vpack.c.b16 %v1951, %v1943
        %v2128 = vpack.c.b16 %v1952, %v1944
        %v2129 = vpack.c.b16 %v1953, %v1945
        %v2130 = vpack.c.b16 %v1954, %v1946
        %v2131 = vpack.c.b16 %v1955, %v1947
        %v2132 = vpack.c.b16 %v1956, %v1948
        %v2133 = vpack.c.b16 %v1957, %v1949
        %v2134 = vpack.c.b16 %v1966, %v1958
        %v2135 = vpack.c.b16 %v1967, %v1959
        %v2136 = vpack.c.b16 %v1968, %v1960
        %v2137 = vpack.c.b16 %v1969, %v1961
        %v2138 = vpack.c.b16 %v1970, %v1962
        %v2139 = vpack.c.b16 %v1971, %v1963
        %v2140 = vpack.c.b16 %v1972, %v1964
        %v2141 = vpack.c.b16 %v1973, %v1965
        %v2142 = vpack.c.b16 %v1982, %v1974
        %v2143 = vpack.c.b16 %v1983, %v1975
        %v2144 = vpack.c.b16 %v1984, %v1976
        %v2145 = vpack.c.b16 %v1985, %v1977
        %v2146 = vpack.c.b16 %v1986, %v1978
        %v2147 = vpack.c.b16 %v1987, %v1979
        %v2148 = vpack.c.b16 %v1988, %v1980
        %v2149 = vpack.c.b16 %v1989, %v1981
        %v2150 = vpack.c.b16 %v1998, %v1990
        %v2151 = vpack.c.b16 %v1999, %v1991
        %v2152 = vpack.c.b16 %v2000, %v1992
        %v2153 = vpack.c.b16 %v2001, %v1993
        %v2154 = vpack.c.b16 %v2002, %v1994
        %v2155 = vpack.c.b16 %v2003, %v1995
        %v2156 = vpack.c.b16 %v2004, %v1996
        %v2157 = vpack.c.b16 %v2005, %v1997
        %v2158 = vpack.c.b16 %v2014, %v2006
        %v2159 = vpack.c.b16 %v2015, %v2007
        %v2160 = vpack.c.b16 %v2016, %v2008
        %v2161 = vpack.c.b16 %v2017, %v2009
        %v2162 = vpack.c.b16 %v2018, %v2010
        %v2163 = vpack.c.b16 %v2019, %v2011
        %v2164 = vpack.c.b16 %v2020, %v2012
        %v2165 = vpack.c.b16 %v2021, %v2013
        %v2166 = vpack.c.b16 %v2030, %v2022
        %v2167 = vpack.c.b16 %v2031, %v2023
        %v2168 = vpack.c.b16 %v2032, %v2024
        %v2169 = vpack.c.b16 %v2033, %v2025
        %v2170 = vpack.c.b16 %v2034, %v2026
        %v2171 = vpack.c.b16 %v2035, %v2027
        %v2172 = vpack.c.b16 %v2036, %v2028
        %v2173 = vpack.c.b16 %v2037, %v2029
        %v2174 = vpack.c.b16 %v2046, %v2038
        %v2175 = vpack.c.b16 %v2047, %v2039
        %v2176 = vpack.c.b16 %v2048, %v2040
        %v2177 = vpack.c.b16 %v2049, %v2041
        %v2178 = vpack.c.b16 %v2050, %v2042
        %v2179 = vpack.c.b16 %v2051, %v2043
        %v2180 = vpack.c.b16 %v2052, %v2044
        %v2181 = vpack.c.b16 %v2053, %v2045
        %2310 = vmatpush.bf16.msra.mxu0 %v2110
        %2311 = vmatpush.bf16.msra.mxu0 %v2102
        %2312 = vmatpush.bf16.msra.mxu0 %v2094
        %2313 = vmatpush.bf16.msra.mxu0 %v2086
        %2314 = vmatpush.bf16.msra.mxu0 %v2078
        %2315 = vmatpush.bf16.msra.mxu0 %v2070
        %2316 = vmatpush.bf16.msra.mxu0 %v2062
        %2317 = vmatpush.bf16.msra.mxu0 %v2054
        %2318 = vmatmul.bf16.gmra.mxu0 %v1540
        %v2319 = vpop.f32.mrf.mxu0
        %v2320 = vadd.f32 0.0, %v2319
        %v2321 = vpop.f32.mrf.mxu0
        %2322 = vdwg.mxu0
        %2323 = vmatpush.bf16.msra.mxu0 %v2174
        %2324 = vmatpush.bf16.msra.mxu0 %v2166
        %2325 = vmatpush.bf16.msra.mxu0 %v2158
        %2326 = vmatpush.bf16.msra.mxu0 %v2150
        %2327 = vmatpush.bf16.msra.mxu0 %v2142
        %2328 = vmatpush.bf16.msra.mxu0 %v2134
        %2329 = vmatpush.bf16.msra.mxu0 %v2126
        %2330 = vmatpush.bf16.msra.mxu0 %v2118
        %2331 = vmatmul.bf16.gmra.mxu0 %v1541
        %v2332 = vpop.f32.mrf.mxu0
        %v2333 = vadd.f32 %v2320, %v2332
        %v2334 = vpop.f32.mrf.mxu0
        %2335 = vdwg.mxu0
        %2336 = vmatpush.bf16.msra.mxu0 %v2111
        %2337 = vmatpush.bf16.msra.mxu0 %v2103
        %2338 = vmatpush.bf16.msra.mxu0 %v2095
        %2339 = vmatpush.bf16.msra.mxu0 %v2087
        %2340 = vmatpush.bf16.msra.mxu0 %v2079
        %2341 = vmatpush.bf16.msra.mxu0 %v2071
        %2342 = vmatpush.bf16.msra.mxu0 %v2063
        %2343 = vmatpush.bf16.msra.mxu0 %v2055
        %2344 = vmatmul.bf16.gmra.mxu0 %v1540
        %v2345 = vpop.f32.mrf.mxu0
        %v2346 = vadd.f32 0.0, %v2345
        %v2347 = vpop.f32.mrf.mxu0
        %2348 = vdwg.mxu0
        %2349 = vmatpush.bf16.msra.mxu0 %v2175
        %2350 = vmatpush.bf16.msra.mxu0 %v2167
        %2351 = vmatpush.bf16.msra.mxu0 %v2159
        %2352 = vmatpush.bf16.msra.mxu0 %v2151
        %2353 = vmatpush.bf16.msra.mxu0 %v2143
        %2354 = vmatpush.bf16.msra.mxu0 %v2135
        %2355 = vmatpush.bf16.msra.mxu0 %v2127
        %2356 = vmatpush.bf16.msra.mxu0 %v2119
        %2357 = vmatmul.bf16.gmra.mxu0 %v1541
        %v2358 = vpop.f32.mrf.mxu0
        %v2359 = vadd.f32 %v2346, %v2358
        %v2360 = vpop.f32.mrf.mxu0
        %2361 = vdwg.mxu0
        %2362 = vmatpush.bf16.msra.mxu0 %v2112
        %2363 = vmatpush.bf16.msra.mxu0 %v2104
        %2364 = vmatpush.bf16.msra.mxu0 %v2096
        %2365 = vmatpush.bf16.msra.mxu0 %v2088
        %2366 = vmatpush.bf16.msra.mxu0 %v2080
        %2367 = vmatpush.bf16.msra.mxu0 %v2072
        %2368 = vmatpush.bf16.msra.mxu0 %v2064
        %2369 = vmatpush.bf16.msra.mxu0 %v2056
        %2370 = vmatmul.bf16.gmra.mxu0 %v1540
        %v2371 = vpop.f32.mrf.mxu0
        %v2372 = vadd.f32 0.0, %v2371
        %v2373 = vpop.f32.mrf.mxu0
        %2374 = vdwg.mxu0
        %2375 = vmatpush.bf16.msra.mxu0 %v2176
        %2376 = vmatpush.bf16.msra.mxu0 %v2168
        %2377 = vmatpush.bf16.msra.mxu0 %v2160
        %2378 = vmatpush.bf16.msra.mxu0 %v2152
        %2379 = vmatpush.bf16.msra.mxu0 %v2144
        %2380 = vmatpush.bf16.msra.mxu0 %v2136
        %2381 = vmatpush.bf16.msra.mxu0 %v2128
        %2382 = vmatpush.bf16.msra.mxu0 %v2120
        %2383 = vmatmul.bf16.gmra.mxu0 %v1541
        %v2384 = vpop.f32.mrf.mxu0
        %v2385 = vadd.f32 %v2372, %v2384
        %v2386 = vpop.f32.mrf.mxu0
        %2387 = vdwg.mxu0
        %2388 = vmatpush.bf16.msra.mxu0 %v2113
        %2389 = vmatpush.bf16.msra.mxu0 %v2105
        %2390 = vmatpush.bf16.msra.mxu0 %v2097
        %2391 = vmatpush.bf16.msra.mxu0 %v2089
        %2392 = vmatpush.bf16.msra.mxu0 %v2081
        %2393 = vmatpush.bf16.msra.mxu0 %v2073
        %2394 = vmatpush.bf16.msra.mxu0 %v2065
        %2395 = vmatpush.bf16.msra.mxu0 %v2057
        %2396 = vmatmul.bf16.gmra.mxu0 %v1540
        %v2397 = vpop.f32.mrf.mxu0
        %v2398 = vadd.f32 0.0, %v2397
        %v2399 = vpop.f32.mrf.mxu0
        %2400 = vdwg.mxu0
        %2401 = vmatpush.bf16.msra.mxu0 %v2177
        %2402 = vmatpush.bf16.msra.mxu0 %v2169
        %2403 = vmatpush.bf16.msra.mxu0 %v2161
        %2404 = vmatpush.bf16.msra.mxu0 %v2153
        %2405 = vmatpush.bf16.msra.mxu0 %v2145
        %2406 = vmatpush.bf16.msra.mxu0 %v2137
        %2407 = vmatpush.bf16.msra.mxu0 %v2129
        %2408 = vmatpush.bf16.msra.mxu0 %v2121
        %2409 = vmatmul.bf16.gmra.mxu0 %v1541
        %v2410 = vpop.f32.mrf.mxu0
        %v2411 = vadd.f32 %v2398, %v2410
        %v2412 = vpop.f32.mrf.mxu0
        %2413 = vdwg.mxu0
        %2414 = vmatpush.bf16.msra.mxu0 %v2114
        %2415 = vmatpush.bf16.msra.mxu0 %v2106
        %2416 = vmatpush.bf16.msra.mxu0 %v2098
        %2417 = vmatpush.bf16.msra.mxu0 %v2090
        %2418 = vmatpush.bf16.msra.mxu0 %v2082
        %2419 = vmatpush.bf16.msra.mxu0 %v2074
        %2420 = vmatpush.bf16.msra.mxu0 %v2066
        %2421 = vmatpush.bf16.msra.mxu0 %v2058
        %2422 = vmatmul.bf16.gmra.mxu0 %v1540
        %v2423 = vpop.f32.mrf.mxu0
        %v2424 = vadd.f32 0.0, %v2423
        %v2425 = vpop.f32.mrf.mxu0
        %2426 = vdwg.mxu0
        %2427 = vmatpush.bf16.msra.mxu0 %v2178
        %2428 = vmatpush.bf16.msra.mxu0 %v2170
        %2429 = vmatpush.bf16.msra.mxu0 %v2162
        %2430 = vmatpush.bf16.msra.mxu0 %v2154
        %2431 = vmatpush.bf16.msra.mxu0 %v2146
        %2432 = vmatpush.bf16.msra.mxu0 %v2138
        %2433 = vmatpush.bf16.msra.mxu0 %v2130
        %2434 = vmatpush.bf16.msra.mxu0 %v2122
        %2435 = vmatmul.bf16.gmra.mxu0 %v1541
        %v2436 = vpop.f32.mrf.mxu0
        %v2437 = vadd.f32 %v2424, %v2436
        %v2438 = vpop.f32.mrf.mxu0
        %2439 = vdwg.mxu0
        %2440 = vmatpush.bf16.msra.mxu0 %v2115
        %2441 = vmatpush.bf16.msra.mxu0 %v2107
        %2442 = vmatpush.bf16.msra.mxu0 %v2099
        %2443 = vmatpush.bf16.msra.mxu0 %v2091
        %2444 = vmatpush.bf16.msra.mxu0 %v2083
        %2445 = vmatpush.bf16.msra.mxu0 %v2075
        %2446 = vmatpush.bf16.msra.mxu0 %v2067
        %2447 = vmatpush.bf16.msra.mxu0 %v2059
        %2448 = vmatmul.bf16.gmra.mxu0 %v1540
        %v2449 = vpop.f32.mrf.mxu0
        %v2450 = vadd.f32 0.0, %v2449
        %v2451 = vpop.f32.mrf.mxu0
        %2452 = vdwg.mxu0
        %2453 = vmatpush.bf16.msra.mxu0 %v2179
        %2454 = vmatpush.bf16.msra.mxu0 %v2171
        %2455 = vmatpush.bf16.msra.mxu0 %v2163
        %2456 = vmatpush.bf16.msra.mxu0 %v2155
        %2457 = vmatpush.bf16.msra.mxu0 %v2147
        %2458 = vmatpush.bf16.msra.mxu0 %v2139
        %2459 = vmatpush.bf16.msra.mxu0 %v2131
        %2460 = vmatpush.bf16.msra.mxu0 %v2123
        %2461 = vmatmul.bf16.gmra.mxu0 %v1541
        %v2462 = vpop.f32.mrf.mxu0
        %v2463 = vadd.f32 %v2450, %v2462
        %v2464 = vpop.f32.mrf.mxu0
        %2465 = vdwg.mxu0
        %2466 = vmatpush.bf16.msra.mxu0 %v2116
        %2467 = vmatpush.bf16.msra.mxu0 %v2108
        %2468 = vmatpush.bf16.msra.mxu0 %v2100
        %2469 = vmatpush.bf16.msra.mxu0 %v2092
        %2470 = vmatpush.bf16.msra.mxu0 %v2084
        %2471 = vmatpush.bf16.msra.mxu0 %v2076
        %2472 = vmatpush.bf16.msra.mxu0 %v2068
        %2473 = vmatpush.bf16.msra.mxu0 %v2060
        %2474 = vmatmul.bf16.gmra.mxu0 %v1540
        %v2475 = vpop.f32.mrf.mxu0
        %v2476 = vadd.f32 0.0, %v2475
        %v2477 = vpop.f32.mrf.mxu0
        %2478 = vdwg.mxu0
        %2479 = vmatpush.bf16.msra.mxu0 %v2180
        %2480 = vmatpush.bf16.msra.mxu0 %v2172
        %2481 = vmatpush.bf16.msra.mxu0 %v2164
        %2482 = vmatpush.bf16.msra.mxu0 %v2156
        %2483 = vmatpush.bf16.msra.mxu0 %v2148
        %2484 = vmatpush.bf16.msra.mxu0 %v2140
        %2485 = vmatpush.bf16.msra.mxu0 %v2132
        %2486 = vmatpush.bf16.msra.mxu0 %v2124
        %2487 = vmatmul.bf16.gmra.mxu0 %v1541
        %v2488 = vpop.f32.mrf.mxu0
        %v2489 = vadd.f32 %v2476, %v2488
        %v2490 = vpop.f32.mrf.mxu0
        %2491 = vdwg.mxu0
        %2492 = vmatpush.bf16.msra.mxu0 %v2117
        %2493 = vmatpush.bf16.msra.mxu0 %v2109
        %2494 = vmatpush.bf16.msra.mxu0 %v2101
        %2495 = vmatpush.bf16.msra.mxu0 %v2093
        %2496 = vmatpush.bf16.msra.mxu0 %v2085
        %2497 = vmatpush.bf16.msra.mxu0 %v2077
        %2498 = vmatpush.bf16.msra.mxu0 %v2069
        %2499 = vmatpush.bf16.msra.mxu0 %v2061
        %2500 = vmatmul.bf16.gmra.mxu0 %v1540
        %v2501 = vpop.f32.mrf.mxu0
        %v2502 = vadd.f32 0.0, %v2501
        %v2503 = vpop.f32.mrf.mxu0
        %2504 = vdwg.mxu0
        %2505 = vmatpush.bf16.msra.mxu0 %v2181
        %2506 = vmatpush.bf16.msra.mxu0 %v2173
        %2507 = vmatpush.bf16.msra.mxu0 %v2165
        %2508 = vmatpush.bf16.msra.mxu0 %v2157
        %2509 = vmatpush.bf16.msra.mxu0 %v2149
        %2510 = vmatpush.bf16.msra.mxu0 %v2141
        %2511 = vmatpush.bf16.msra.mxu0 %v2133
        %2512 = vmatpush.bf16.msra.mxu0 %v2125
        %2513 = vmatmul.bf16.gmra.mxu0 %v1541
        %v2514 = vpop.f32.mrf.mxu0
        %v2515 = vadd.f32 %v2502, %v2514
        %v2516 = vpop.f32.mrf.mxu0
        %2517 = vdwg.mxu0
        %v2518 = vadd.f32 %v1532, %v2333
        %v2519 = vadd.f32 %v1533, %v2359
        %v2520 = vadd.f32 %v1534, %v2385
        %v2521 = vadd.f32 %v1535, %v2411
        %v2522 = vadd.f32 %v1536, %v2437
        %v2523 = vadd.f32 %v1537, %v2463
        %v2524 = vadd.f32 %v1538, %v2489
        %v2525 = vadd.f32 %v1539, %v2515
        %v2526 = vxor.u32 %v2518, 2147483648
        %v2527 = vxor.u32 %v2519, 2147483648
        %v2528 = vmul.f32 %v2526, 1.442695
        %v2529 = vpow.pop %v2528
        %v2530 = vmul.f32 %v2527, 1.442695
        %v2531 = vpow.pop %v2530
        %v2532 = vadd.f32 %v2529, 1.0
        %v2533 = vadd.f32 %v2531, 1.0
        %v2534 = vrcp.pop %v2532
        %v2535 = vmul.f32 %v2532, %v2534
        %v2536 = vsub.f32 1.0, %v2535
        %v2537 = vmul.f32 %v2534, %v2536
        %v2538 = vadd.f32 %v2534, %v2537
        %vm2539 = vweird.f32 %v2532
        %vm2540 = vweird.f32 %v2534
        %vm2541 = vmor %vm2539, %vm2540
        %v2542 = vsel %vm2541, %v2534, %v2538
        %v2543 = vand.u32 2147483647, %v2532
        %vm2544 = vcmp.eq.f32.partialorder %v2543, 8.507059e+37
        %v2545 = vand.u32 %v2532, 2147483648
        %v2546 = vor.u32 1.1754944e-38, %v2545
        %v2547 = vsel %vm2544, %v2546, %v2542
        %v2548 = vmul.f32 1.0, %v2547
        %v2549 = vrcp.pop %v2533
        %v2550 = vmul.f32 %v2533, %v2549
        %v2551 = vsub.f32 1.0, %v2550
        %v2552 = vmul.f32 %v2549, %v2551
        %v2553 = vadd.f32 %v2549, %v2552
        %vm2554 = vweird.f32 %v2533
        %vm2555 = vweird.f32 %v2549
        %vm2556 = vmor %vm2554, %vm2555
        %v2557 = vsel %vm2556, %v2549, %v2553
        %v2558 = vand.u32 2147483647, %v2533
        %vm2559 = vcmp.eq.f32.partialorder %v2558, 8.507059e+37
        %v2560 = vand.u32 %v2533, 2147483648
        %v2561 = vor.u32 1.1754944e-38, %v2560
        %v2562 = vsel %vm2559, %v2561, %v2557
        %v2563 = vmul.f32 1.0, %v2562
        %v2564 = vxor.u32 %v2520, 2147483648
        %v2565 = vxor.u32 %v2521, 2147483648
        %v2566 = vmul.f32 %v2564, 1.442695
        %v2567 = vpow.pop %v2566
        %v2568 = vmul.f32 %v2565, 1.442695
        %v2569 = vpow.pop %v2568
        %v2570 = vadd.f32 %v2567, 1.0
        %v2571 = vadd.f32 %v2569, 1.0
        %v2572 = vrcp.pop %v2570
        %v2573 = vmul.f32 %v2570, %v2572
        %v2574 = vsub.f32 1.0, %v2573
        %v2575 = vmul.f32 %v2572, %v2574
        %v2576 = vadd.f32 %v2572, %v2575
        %vm2577 = vweird.f32 %v2570
        %vm2578 = vweird.f32 %v2572
        %vm2579 = vmor %vm2577, %vm2578
        %v2580 = vsel %vm2579, %v2572, %v2576
        %v2581 = vand.u32 2147483647, %v2570
        %vm2582 = vcmp.eq.f32.partialorder %v2581, 8.507059e+37
        %v2583 = vand.u32 %v2570, 2147483648
        %v2584 = vor.u32 1.1754944e-38, %v2583
        %v2585 = vsel %vm2582, %v2584, %v2580
        %v2586 = vmul.f32 1.0, %v2585
        %v2587 = vrcp.pop %v2571
        %v2588 = vmul.f32 %v2571, %v2587
        %v2589 = vsub.f32 1.0, %v2588
        %v2590 = vmul.f32 %v2587, %v2589
        %v2591 = vadd.f32 %v2587, %v2590
        %vm2592 = vweird.f32 %v2571
        %vm2593 = vweird.f32 %v2587
        %vm2594 = vmor %vm2592, %vm2593
        %v2595 = vsel %vm2594, %v2587, %v2591
        %v2596 = vand.u32 2147483647, %v2571
        %vm2597 = vcmp.eq.f32.partialorder %v2596, 8.507059e+37
        %v2598 = vand.u32 %v2571, 2147483648
        %v2599 = vor.u32 1.1754944e-38, %v2598
        %v2600 = vsel %vm2597, %v2599, %v2595
        %v2601 = vmul.f32 1.0, %v2600
        %v2602 = vtanh.pop %v2522
        %v2603 = vtanh.pop %v2523
        %v2604 = vxor.u32 %v2524, 2147483648
        %v2605 = vxor.u32 %v2525, 2147483648
        %v2606 = vmul.f32 %v2604, 1.442695
        %v2607 = vpow.pop %v2606
        %v2608 = vmul.f32 %v2605, 1.442695
        %v2609 = vpow.pop %v2608
        %v2610 = vadd.f32 %v2607, 1.0
        %v2611 = vadd.f32 %v2609, 1.0
        %v2612 = vrcp.pop %v2610
        %v2613 = vmul.f32 %v2610, %v2612
        %v2614 = vsub.f32 1.0, %v2613
        %v2615 = vmul.f32 %v2612, %v2614
        %v2616 = vadd.f32 %v2612, %v2615
        %vm2617 = vweird.f32 %v2610
        %vm2618 = vweird.f32 %v2612
        %vm2619 = vmor %vm2617, %vm2618
        %v2620 = vsel %vm2619, %v2612, %v2616
        %v2621 = vand.u32 2147483647, %v2610
        %vm2622 = vcmp.eq.f32.partialorder %v2621, 8.507059e+37
        %v2623 = vand.u32 %v2610, 2147483648
        %v2624 = vor.u32 1.1754944e-38, %v2623
        %v2625 = vsel %vm2622, %v2624, %v2620
        %v2626 = vmul.f32 1.0, %v2625
        %v2627 = vrcp.pop %v2611
        %v2628 = vmul.f32 %v2611, %v2627
        %v2629 = vsub.f32 1.0, %v2628
        %v2630 = vmul.f32 %v2627, %v2629
        %v2631 = vadd.f32 %v2627, %v2630
        %vm2632 = vweird.f32 %v2611
        %vm2633 = vweird.f32 %v2627
        %vm2634 = vmor %vm2632, %vm2633
        %v2635 = vsel %vm2634, %v2627, %v2631
        %v2636 = vand.u32 2147483647, %v2611
        %vm2637 = vcmp.eq.f32.partialorder %v2636, 8.507059e+37
        %v2638 = vand.u32 %v2611, 2147483648
        %v2639 = vor.u32 1.1754944e-38, %v2638
        %v2640 = vsel %vm2637, %v2639, %v2635
        %v2641 = vmul.f32 1.0, %v2640
        %v2642 = vmul.f32 %v2586, %v1530
        %v2643 = vmul.f32 %v2601, %v1531
        %v2644 = vmul.f32 %v2548, %v2602
        %v2645 = vmul.f32 %v2563, %v2603
        %v2646 = vadd.f32 %v2642, %v2644
        %v2647 = vadd.f32 %v2643, %v2645
        %v2648 = vtanh.pop %v2646
        %v2649 = vtanh.pop %v2647
        %v2650 = vmul.f32 %v2626, %v2648
        %v2651 = vmul.f32 %v2641, %v2649
        %2653 = vset.pattern.permute.xlu0 0
        %2654 = vperm.xlu0 %2653, %v1527
        %v2655 = vpop.permute.xlu0 %2654
        %v2657 = vmul.f32 %v2655, %v2650
        %v2658 = vmul.f32 %v2655, %v2651
        %v2659 = vsub.f32 1.0, %v1527
        %2661 = vset.pattern.permute.xlu0 0
        %2662 = vperm.xlu0 %2661, %v2659
        %v2663 = vpop.permute.xlu0 %2662
        %v2665 = vmul.f32 %v2663, %v1528
        %v2666 = vmul.f32 %v2663, %v1529
        %v2667 = vadd.f32 %v2657, %v2665
        %v2668 = vadd.f32 %v2658, %v2666
        %2669 = vst [vmem:[#allocation5] sm:$0xff] %v2667
        %2670 = vst [vmem:[#allocation5 + $0x8] sm:$0xff] %v2668
        %v2671 = vmul.f32 %v2655, %v2646
        %v2672 = vmul.f32 %v2655, %v2647
        %v2673 = vmul.f32 %v2663, %v1530
        %v2674 = vmul.f32 %v2663, %v1531
        %v2675 = vadd.f32 %v2671, %v2673
        %v2676 = vadd.f32 %v2672, %v2674
        %2677 = vst [vmem:[#allocation6] sm:$0xff] %v2675
        %2678 = vst [vmem:[#allocation6 + $0x8] sm:$0xff] %v2676
        %s2679 = smul.u32 %s1523, 8
        %s2680 = sshra.s32 %s2679, 3
        %s2681 = sand.u32 %s2679, 7
        %s2682 = smul.u32 %s2680, 4
        %s2683 = smul.addr %s2682, 8
        %s2684 = scalar_lea.vmem [#allocation2], %s2683
        %2685 = vst [vmem:[%s2684 + $0x10] sm:$0xff] %v2657
        %2686 = vst [vmem:[%s2684 + $0x18] sm:$0xff] %v2658
        %p2687 = scmp.eq.s32.totalorder %s22, 7
        // Predicated region
        $region57: #{tagger_forward.3} parent=51 // pred_check
          %p2688 = pneg %p2687
        $region58: #{tagger_forward.3} parent=51 // pred_check_branch
          %2690 = sbr.rel (%p2688) target = $region60
        $region59: #{tagger_forward.3} parent=51 // pred_region
          %s2691 = smul.u32 0, 4
          %s2692 = smul.addr %s2691, 8
          %s2693 = scalar_lea.vmem [#allocation2], %s2692
          %v2694 = vld [vmem:[%s2693] sm:$0xff]
          %v2695 = vld [vmem:[%s2693 + $0x8] sm:$0xff]
          %v2696 = vld [vmem:[%s2693 + $0x10] sm:$0xff]
          %v2697 = vld [vmem:[%s2693 + $0x18] sm:$0xff]
          %v2698 = vld [vmem:[%s2693 + $0x20] sm:$0xff]
          %v2699 = vld [vmem:[%s2693 + $0x28] sm:$0xff]
          %v2700 = vld [vmem:[%s2693 + $0x30] sm:$0xff]
          %v2701 = vld [vmem:[%s2693 + $0x38] sm:$0xff]
          %v2702 = vld [vmem:[%s2693 + $0x40] sm:$0xff]
          %v2703 = vld [vmem:[%s2693 + $0x48] sm:$0xff]
          %v2704 = vld [vmem:[%s2693 + $0x50] sm:$0xff]
          %v2705 = vld [vmem:[%s2693 + $0x58] sm:$0xff]
          %v2706 = vld [vmem:[%s2693 + $0x60] sm:$0xff]
          %v2707 = vld [vmem:[%s2693 + $0x68] sm:$0xff]
          %v2708 = vld [vmem:[%s2693 + $0x70] sm:$0xff]
          %v2709 = vld [vmem:[%s2693 + $0x78] sm:$0xff]
          %v2710 = vld [vmem:[%s2693 + $0x80] sm:$0xff]
          %v2711 = vld [vmem:[%s2693 + $0x88] sm:$0xff]
          %v2712 = vld [vmem:[%s2693 + $0x90] sm:$0xff]
          %v2713 = vld [vmem:[%s2693 + $0x98] sm:$0xff]
          %v2714 = vld [vmem:[%s2693 + $0xa0] sm:$0xff]
          %v2715 = vld [vmem:[%s2693 + $0xa8] sm:$0xff]
          %v2716 = vld [vmem:[%s2693 + $0xb0] sm:$0xff]
          %v2717 = vld [vmem:[%s2693 + $0xb8] sm:$0xff]
          %v2718 = vld [vmem:[%s2693 + $0xc0] sm:$0xff]
          %v2719 = vld [vmem:[%s2693 + $0xc8] sm:$0xff]
          %v2720 = vld [vmem:[%s2693 + $0xd0] sm:$0xff]
          %v2721 = vld [vmem:[%s2693 + $0xd8] sm:$0xff]
          %v2722 = vld [vmem:[%s2693 + $0xe0] sm:$0xff]
          %v2723 = vld [vmem:[%s2693 + $0xe8] sm:$0xff]
          %v2724 = vld [vmem:[%s2693 + $0xf0] sm:$0xff]
          %v2725 = vld [vmem:[%s2693 + $0xf8] sm:$0xff]
          %v2726 = vld [vmem:[%s5] sm:$0xff]
          %v2727 = vld [vmem:[%s5 + $0x8] sm:$0xff]
          %v2728 = vld [vmem:[%s5 + $0x10] sm:$0xff]
          %v2729 = vld [vmem:[%s5 + $0x18] sm:$0xff]
          %v2730 = vld [vmem:[%s5 + $0x20] sm:$0xff]
          %v2731 = vld [vmem:[%s5 + $0x28] sm:$0xff]
          %v2732 = vld [vmem:[%s5 + $0x30] sm:$0xff]
          %v2733 = vld [vmem:[%s5 + $0x38] sm:$0xff]
          %v2734 = vld [vmem:[%s5 + $0x40] sm:$0xff]
          %v2735 = vld [vmem:[%s5 + $0x48] sm:$0xff]
          %v2736 = vld [vmem:[%s5 + $0x50] sm:$0xff]
          %v2737 = vld [vmem:[%s5 + $0x58] sm:$0xff]
          %v2738 = vld [vmem:[%s5 + $0x60] sm:$0xff]
          %v2739 = vld [vmem:[%s5 + $0x68] sm:$0xff]
          %v2740 = vld [vmem:[%s5 + $0x70] sm:$0xff]
          %v2741 = vld [vmem:[%s5 + $0x78] sm:$0xff]
          %v2742 = vld [vmem:[%s5 + $0x80] sm:$0xff]
          %v2743 = vld [vmem:[%s5 + $0x88] sm:$0xff]
          %v2744 = vld [vmem:[%s5 + $0x90] sm:$0xff]
          %v2745 = vld [vmem:[%s5 + $0x98] sm:$0xff]
          %v2746 = vld [vmem:[%s5 + $0xa0] sm:$0xff]
          %v2747 = vld [vmem:[%s5 + $0xa8] sm:$0xff]
          %v2748 = vld [vmem:[%s5 + $0xb0] sm:$0xff]
          %v2749 = vld [vmem:[%s5 + $0xb8] sm:$0xff]
          %v2750 = vld [vmem:[%s5 + $0xc0] sm:$0xff]
          %v2751 = vld [vmem:[%s5 + $0xc8] sm:$0xff]
          %v2752 = vld [vmem:[%s5 + $0xd0] sm:$0xff]
          %v2753 = vld [vmem:[%s5 + $0xd8] sm:$0xff]
          %v2754 = vld [vmem:[%s5 + $0xe0] sm:$0xff]
          %v2755 = vld [vmem:[%s5 + $0xe8] sm:$0xff]
          %v2756 = vld [vmem:[%s5 + $0xf0] sm:$0xff]
          %v2757 = vld [vmem:[%s5 + $0xf8] sm:$0xff]
          %v2758 = vld [vmem:[%s5 + $0x100] sm:$0xff]
          %v2759 = vld [vmem:[%s5 + $0x108] sm:$0xff]
          %v2760 = vld [vmem:[%s5 + $0x110] sm:$0xff]
          %v2761 = vld [vmem:[%s5 + $0x118] sm:$0xff]
          %v2762 = vld [vmem:[%s5 + $0x120] sm:$0xff]
          %v2763 = vld [vmem:[%s5 + $0x128] sm:$0xff]
          %v2764 = vld [vmem:[%s5 + $0x130] sm:$0xff]
          %v2765 = vld [vmem:[%s5 + $0x138] sm:$0xff]
          %v2766 = vld [vmem:[%s5 + $0x140] sm:$0xff]
          %v2767 = vld [vmem:[%s5 + $0x148] sm:$0xff]
          %v2768 = vld [vmem:[%s5 + $0x150] sm:$0xff]
          %v2769 = vld [vmem:[%s5 + $0x158] sm:$0xff]
          %v2770 = vld [vmem:[%s5 + $0x160] sm:$0xff]
          %v2771 = vld [vmem:[%s5 + $0x168] sm:$0xff]
          %v2772 = vld [vmem:[%s5 + $0x170] sm:$0xff]
          %v2773 = vld [vmem:[%s5 + $0x178] sm:$0xff]
          %v2774 = vld [vmem:[%s5 + $0x180] sm:$0xff]
          %v2775 = vld [vmem:[%s5 + $0x188] sm:$0xff]
          %v2776 = vld [vmem:[%s5 + $0x190] sm:$0xff]
          %v2777 = vld [vmem:[%s5 + $0x198] sm:$0xff]
          %v2778 = vld [vmem:[%s5 + $0x1a0] sm:$0xff]
          %v2779 = vld [vmem:[%s5 + $0x1a8] sm:$0xff]
          %v2780 = vld [vmem:[%s5 + $0x1b0] sm:$0xff]
          %v2781 = vld [vmem:[%s5 + $0x1b8] sm:$0xff]
          %v2782 = vld [vmem:[%s5 + $0x1c0] sm:$0xff]
          %v2783 = vld [vmem:[%s5 + $0x1c8] sm:$0xff]
          %v2784 = vld [vmem:[%s5 + $0x1d0] sm:$0xff]
          %v2785 = vld [vmem:[%s5 + $0x1d8] sm:$0xff]
          %v2786 = vld [vmem:[%s5 + $0x1e0] sm:$0xff]
          %v2787 = vld [vmem:[%s5 + $0x1e8] sm:$0xff]
          %v2788 = vld [vmem:[%s5 + $0x1f0] sm:$0xff]
          %v2789 = vld [vmem:[%s5 + $0x1f8] sm:$0xff]
          %v2790 = vld [vmem:[%s6] sm:$0x1]
          %v2792 = vperm.slane %v2790, 0
          %2794 = vmatpush.msra.mxu0 %v2741
          %2795 = vmatpush.msra.mxu0 %v2740
          %2796 = vmatpush.msra.mxu0 %v2739
          %2797 = vmatpush.msra.mxu0 %v2738
          %2798 = vmatpush.msra.mxu0 %v2737
          %2799 = vmatpush.msra.mxu0 %v2736
          %2800 = vmatpush.msra.mxu0 %v2735
          %2801 = vmatpush.msra.mxu0 %v2734
          %2802 = vmatpush.msra.mxu0 %v2733
          %2803 = vmatpush.msra.mxu0 %v2732
          %2804 = vmatpush.msra.mxu0 %v2731
          %2805 = vmatpush.msra.mxu0 %v2730
          %2806 = vmatpush.msra.mxu0 %v2729
          %2807 = vmatpush.msra.mxu0 %v2728
          %2808 = vmatpush.msra.mxu0 %v2727
          %2809 = vmatpush.msra.mxu0 %v2726
          %2810 = vmatmul.f32.gmra.mxu0 %v2694
          %v2811 = vpop.f32.mrf.mxu0
          %v2812 = vadd.f32 %v2792, %v2811
          %2813 = vmatmul.f32.gmra.mxu0 %v2698
          %v2814 = vpop.f32.mrf.mxu0
          %v2815 = vadd.f32 %v2792, %v2814
          %2816 = vmatmul.f32.gmra.mxu0 %v2702
          %v2817 = vpop.f32.mrf.mxu0
          %v2818 = vadd.f32 %v2792, %v2817
          %2819 = vmatmul.f32.gmra.mxu0 %v2706
          %v2820 = vpop.f32.mrf.mxu0
          %v2821 = vadd.f32 %v2792, %v2820
          %2822 = vmatmul.f32.gmra.mxu0 %v2710
          %v2823 = vpop.f32.mrf.mxu0
          %v2824 = vadd.f32 %v2792, %v2823
          %2825 = vmatmul.f32.gmra.mxu0 %v2714
          %v2826 = vpop.f32.mrf.mxu0
          %v2827 = vadd.f32 %v2792, %v2826
          %2828 = vmatmul.f32.gmra.mxu0 %v2718
          %v2829 = vpop.f32.mrf.mxu0
          %v2830 = vadd.f32 %v2792, %v2829
          %2831 = vmatmul.f32.gmra.mxu0 %v2722
          %v2832 = vpop.f32.mrf.mxu0
          %v2833 = vadd.f32 %v2792, %v2832
          %2834 = vdwg.mxu0
          %2835 = vmatpush.msra.mxu0 %v2757
          %2836 = vmatpush.msra.mxu0 %v2756
          %2837 = vmatpush.msra.mxu0 %v2755
          %2838 = vmatpush.msra.mxu0 %v2754
          %2839 = vmatpush.msra.mxu0 %v2753
          %2840 = vmatpush.msra.mxu0 %v2752
          %2841 = vmatpush.msra.mxu0 %v2751
          %2842 = vmatpush.msra.mxu0 %v2750
          %2843 = vmatpush.msra.mxu0 %v2749
          %2844 = vmatpush.msra.mxu0 %v2748
          %2845 = vmatpush.msra.mxu0 %v2747
          %2846 = vmatpush.msra.mxu0 %v2746
          %2847 = vmatpush.msra.mxu0 %v2745
          %2848 = vmatpush.msra.mxu0 %v2744
          %2849 = vmatpush.msra.mxu0 %v2743
          %2850 = vmatpush.msra.mxu0 %v2742
          %2851 = vmatmul.f32.gmra.mxu0 %v2695
          %v2852 = vpop.f32.mrf.mxu0
          %v2853 = vadd.f32 %v2812, %v2852
          %2854 = vmatmul.f32.gmra.mxu0 %v2699
          %v2855 = vpop.f32.mrf.mxu0
          %v2856 = vadd.f32 %v2815, %v2855
          %2857 = vmatmul.f32.gmra.mxu0 %v2703
          %v2858 = vpop.f32.mrf.mxu0
          %v2859 = vadd.f32 %v2818, %v2858
          %2860 = vmatmul.f32.gmra.mxu0 %v2707
          %v2861 = vpop.f32.mrf.mxu0
          %v2862 = vadd.f32 %v2821, %v2861
          %2863 = vmatmul.f32.gmra.mxu0 %v2711
          %v2864 = vpop.f32.mrf.mxu0
          %v2865 = vadd.f32 %v2824, %v2864
          %2866 = vmatmul.f32.gmra.mxu0 %v2715
          %v2867 = vpop.f32.mrf.mxu0
          %v2868 = vadd.f32 %v2827, %v2867
          %2869 = vmatmul.f32.gmra.mxu0 %v2719
          %v2870 = vpop.f32.mrf.mxu0
          %v2871 = vadd.f32 %v2830, %v2870
          %2872 = vmatmul.f32.gmra.mxu0 %v2723
          %v2873 = vpop.f32.mrf.mxu0
          %v2874 = vadd.f32 %v2833, %v2873
          %2875 = vdwg.mxu0
          %2876 = vmatpush.msra.mxu0 %v2773
          %2877 = vmatpush.msra.mxu0 %v2772
          %2878 = vmatpush.msra.mxu0 %v2771
          %2879 = vmatpush.msra.mxu0 %v2770
          %2880 = vmatpush.msra.mxu0 %v2769
          %2881 = vmatpush.msra.mxu0 %v2768
          %2882 = vmatpush.msra.mxu0 %v2767
          %2883 = vmatpush.msra.mxu0 %v2766
          %2884 = vmatpush.msra.mxu0 %v2765
          %2885 = vmatpush.msra.mxu0 %v2764
          %2886 = vmatpush.msra.mxu0 %v2763
          %2887 = vmatpush.msra.mxu0 %v2762
          %2888 = vmatpush.msra.mxu0 %v2761
          %2889 = vmatpush.msra.mxu0 %v2760
          %2890 = vmatpush.msra.mxu0 %v2759
          %2891 = vmatpush.msra.mxu0 %v2758
          %2892 = vmatmul.f32.gmra.mxu0 %v2696
          %v2893 = vpop.f32.mrf.mxu0
          %v2894 = vadd.f32 %v2853, %v2893
          %2895 = vmatmul.f32.gmra.mxu0 %v2700
          %v2896 = vpop.f32.mrf.mxu0
          %v2897 = vadd.f32 %v2856, %v2896
          %2898 = vmatmul.f32.gmra.mxu0 %v2704
          %v2899 = vpop.f32.mrf.mxu0
          %v2900 = vadd.f32 %v2859, %v2899
          %2901 = vmatmul.f32.gmra.mxu0 %v2708
          %v2902 = vpop.f32.mrf.mxu0
          %v2903 = vadd.f32 %v2862, %v2902
          %2904 = vmatmul.f32.gmra.mxu0 %v2712
          %v2905 = vpop.f32.mrf.mxu0
          %v2906 = vadd.f32 %v2865, %v2905
          %2907 = vmatmul.f32.gmra.mxu0 %v2716
          %v2908 = vpop.f32.mrf.mxu0
          %v2909 = vadd.f32 %v2868, %v2908
          %2910 = vmatmul.f32.gmra.mxu0 %v2720
          %v2911 = vpop.f32.mrf.mxu0
          %v2912 = vadd.f32 %v2871, %v2911
          %2913 = vmatmul.f32.gmra.mxu0 %v2724
          %v2914 = vpop.f32.mrf.mxu0
          %v2915 = vadd.f32 %v2874, %v2914
          %2916 = vdwg.mxu0
          %2917 = vmatpush.msra.mxu0 %v2789
          %2918 = vmatpush.msra.mxu0 %v2788
          %2919 = vmatpush.msra.mxu0 %v2787
          %2920 = vmatpush.msra.mxu0 %v2786
          %2921 = vmatpush.msra.mxu0 %v2785
          %2922 = vmatpush.msra.mxu0 %v2784
          %2923 = vmatpush.msra.mxu0 %v2783
          %2924 = vmatpush.msra.mxu0 %v2782
          %2925 = vmatpush.msra.mxu0 %v2781
          %2926 = vmatpush.msra.mxu0 %v2780
          %2927 = vmatpush.msra.mxu0 %v2779
          %2928 = vmatpush.msra.mxu0 %v2778
          %2929 = vmatpush.msra.mxu0 %v2777
          %2930 = vmatpush.msra.mxu0 %v2776
          %2931 = vmatpush.msra.mxu0 %v2775
          %2932 = vmatpush.msra.mxu0 %v2774
          %2933 = vmatmul.f32.gmra.mxu0 %v2697
          %v2934 = vpop.f32.mrf.mxu0
          %v2935 = vadd.f32 %v2894, %v2934
          %2936 = vmatmul.f32.gmra.mxu0 %v2701
          %v2937 = vpop.f32.mrf.mxu0
          %v2938 = vadd.f32 %v2897, %v2937
          %2939 = vmatmul.f32.gmra.mxu0 %v2705
          %v2940 = vpop.f32.mrf.mxu0
          %v2941 = vadd.f32 %v2900, %v2940
          %2942 = vmatmul.f32.gmra.mxu0 %v2709
          %v2943 = vpop.f32.mrf.mxu0
          %v2944 = vadd.f32 %v2903, %v2943
          %2945 = vmatmul.f32.gmra.mxu0 %v2713
          %v2946 = vpop.f32.mrf.mxu0
          %v2947 = vadd.f32 %v2906, %v2946
          %2948 = vmatmul.f32.gmra.mxu0 %v2717
          %v2949 = vpop.f32.mrf.mxu0
          %v2950 = vadd.f32 %v2909, %v2949
          %2951 = vmatmul.f32.gmra.mxu0 %v2721
          %v2952 = vpop.f32.mrf.mxu0
          %v2953 = vadd.f32 %v2912, %v2952
          %2954 = vmatmul.f32.gmra.mxu0 %v2725
          %v2955 = vpop.f32.mrf.mxu0
          %v2956 = vadd.f32 %v2915, %v2955
          %2957 = vdwg.mxu0
          %2958 = vmax.xlane.f32.xlu0 %v2935
          %v2959 = vpop.xlane.xlu0 %2958
          %2960 = vmax.xlane.f32.xlu0 %v2938
          %v2961 = vpop.xlane.xlu0 %2960
          %2962 = vmax.xlane.f32.xlu0 %v2941
          %v2963 = vpop.xlane.xlu0 %2962
          %2964 = vmax.xlane.f32.xlu0 %v2944
          %v2965 = vpop.xlane.xlu0 %2964
          %2966 = vmax.xlane.f32.xlu0 %v2947
          %v2967 = vpop.xlane.xlu0 %2966
          %2968 = vmax.xlane.f32.xlu0 %v2950
          %v2969 = vpop.xlane.xlu0 %2968
          %2970 = vmax.xlane.f32.xlu0 %v2953
          %v2971 = vpop.xlane.xlu0 %2970
          %2972 = vmax.xlane.f32.xlu0 %v2956
          %v2973 = vpop.xlane.xlu0 %2972
          %v2974 = vsub.f32 %v2935, %v2959
          %v2975 = vsub.f32 %v2938, %v2961
          %v2976 = vsub.f32 %v2941, %v2963
          %v2977 = vsub.f32 %v2944, %v2965
          %v2978 = vsub.f32 %v2947, %v2967
          %v2979 = vsub.f32 %v2950, %v2969
          %v2980 = vsub.f32 %v2953, %v2971
          %v2981 = vsub.f32 %v2956, %v2973
          %v2982 = vmul.f32 %v2974, 1.442695
          %v2983 = vpow.pop %v2982
          %v2984 = vmul.f32 %v2975, 1.442695
          %v2985 = vpow.pop %v2984
          %v2986 = vmul.f32 %v2976, 1.442695
          %v2987 = vpow.pop %v2986
          %v2988 = vmul.f32 %v2977, 1.442695
          %v2989 = vpow.pop %v2988
          %v2990 = vmul.f32 %v2978, 1.442695
          %v2991 = vpow.pop %v2990
          %v2992 = vmul.f32 %v2979, 1.442695
          %v2993 = vpow.pop %v2992
          %v2994 = vmul.f32 %v2980, 1.442695
          %v2995 = vpow.pop %v2994
          %v2996 = vmul.f32 %v2981, 1.442695
          %v2997 = vpow.pop %v2996
          %2998 = vadd.xlane.f32.xlu0 %v2983
          %v2999 = vpop.xlane.xlu0 %2998
          %3000 = vadd.xlane.f32.xlu0 %v2985
          %v3001 = vpop.xlane.xlu0 %3000
          %3002 = vadd.xlane.f32.xlu0 %v2987
          %v3003 = vpop.xlane.xlu0 %3002
          %3004 = vadd.xlane.f32.xlu0 %v2989
          %v3005 = vpop.xlane.xlu0 %3004
          %3006 = vadd.xlane.f32.xlu0 %v2991
          %v3007 = vpop.xlane.xlu0 %3006
          %3008 = vadd.xlane.f32.xlu0 %v2993
          %v3009 = vpop.xlane.xlu0 %3008
          %3010 = vadd.xlane.f32.xlu0 %v2995
          %v3011 = vpop.xlane.xlu0 %3010
          %3012 = vadd.xlane.f32.xlu0 %v2997
          %v3013 = vpop.xlane.xlu0 %3012
          %v3014 = vlog2.pop %v2999
          %v3015 = vmul.f32 %v3014, 0.6931472
          %v3016 = vlog2.pop %v3001
          %v3017 = vmul.f32 %v3016, 0.6931472
          %v3018 = vlog2.pop %v3003
          %v3019 = vmul.f32 %v3018, 0.6931472
          %v3020 = vlog2.pop %v3005
          %v3021 = vmul.f32 %v3020, 0.6931472
          %v3022 = vlog2.pop %v3007
          %v3023 = vmul.f32 %v3022, 0.6931472
          %v3024 = vlog2.pop %v3009
          %v3025 = vmul.f32 %v3024, 0.6931472
          %v3026 = vlog2.pop %v3011
          %v3027 = vmul.f32 %v3026, 0.6931472
          %v3028 = vlog2.pop %v3013
          %v3029 = vmul.f32 %v3028, 0.6931472
          %v3030 = vadd.f32 %v2959, %v3015
          %v3031 = vadd.f32 %v2961, %v3017
          %v3032 = vadd.f32 %v2963, %v3019
          %v3033 = vadd.f32 %v2965, %v3021
          %v3034 = vadd.f32 %v2967, %v3023
          %v3035 = vadd.f32 %v2969, %v3025
          %v3036 = vadd.f32 %v2971, %v3027
          %v3037 = vadd.f32 %v2973, %v3029
          %v3038 = vld [vmem:[%s7] sm:$0xff]
          %v3039 = vld [vmem:[%s7 + $0x8] sm:$0xff]
          %v3040 = vld [vmem:[%s7 + $0x10] sm:$0xff]
          %v3041 = vld [vmem:[%s7 + $0x18] sm:$0xff]
          %v3042 = vld [vmem:[%s7 + $0x20] sm:$0xff]
          %v3043 = vld [vmem:[%s7 + $0x28] sm:$0xff]
          %v3044 = vld [vmem:[%s7 + $0x30] sm:$0xff]
          %v3045 = vld [vmem:[%s7 + $0x38] sm:$0xff]
          %v3046 = vlaneseq
          %v3047 = vand.u32 %v3046, 127
          %3048 = vset.pattern.permute.xlu0 0
          %3049 = vperm.xlu0 %3048, %v3038
          %v3050 = vpop.permute.xlu0 %3049
          %3051 = vset.pattern.permute.xlu0 0
          %3052 = vperm.xlu0 %3051, %v3039
          %v3053 = vpop.permute.xlu0 %3052
          %3054 = vset.pattern.permute.xlu0 0
          %3055 = vperm.xlu0 %3054, %v3040
          %v3056 = vpop.permute.xlu0 %3055
          %3057 = vset.pattern.permute.xlu0 0
          %3058 = vperm.xlu0 %3057, %v3041
          %v3059 = vpop.permute.xlu0 %3058
          %3060 = vset.pattern.permute.xlu0 0
          %3061 = vperm.xlu0 %3060, %v3042
          %v3062 = vpop.permute.xlu0 %3061
          %3063 = vset.pattern.permute.xlu0 0
          %3064 = vperm.xlu0 %3063, %v3043
          %v3065 = vpop.permute.xlu0 %3064
          %3066 = vset.pattern.permute.xlu0 0
          %3067 = vperm.xlu0 %3066, %v3044
          %v3068 = vpop.permute.xlu0 %3067
          %3069 = vset.pattern.permute.xlu0 0
          %3070 = vperm.xlu0 %3069, %v3045
          %v3071 = vpop.permute.xlu0 %3070
          %vm3072 = vcmp.eq.s32.totalorder %v3047, %v3050
          %vm3073 = vcmp.eq.s32.totalorder %v3047, %v3053
          %vm3074 = vcmp.eq.s32.totalorder %v3047, %v3056
          %vm3075 = vcmp.eq.s32.totalorder %v3047, %v3059
          %vm3076 = vcmp.eq.s32.totalorder %v3047, %v3062
          %vm3077 = vcmp.eq.s32.totalorder %v3047, %v3065
          %vm3078 = vcmp.eq.s32.totalorder %v3047, %v3068
          %vm3079 = vcmp.eq.s32.totalorder %v3047, %v3071
          %v3080 = vsel %vm3072, %v2935, 0.0
          %v3081 = vsel %vm3073, %v2938, 0.0
          %v3082 = vsel %vm3074, %v2941, 0.0
          %v3083 = vsel %vm3075, %v2944, 0.0
          %v3084 = vsel %vm3076, %v2947, 0.0
          %v3085 = vsel %vm3077, %v2950, 0.0
          %v3086 = vsel %vm3078, %v2953, 0.0
          %v3087 = vsel %vm3079, %v2956, 0.0
          %3088 = vadd.xlane.f32.xlu0 %v3080
          %v3089 = vpop.xlane.xlu0 %3088
          %3090 = vadd.xlane.f32.xlu0 %v3081
          %v3091 = vpop.xlane.xlu0 %3090
          %3092 = vadd.xlane.f32.xlu0 %v3082
          %v3093 = vpop.xlane.xlu0 %3092
          %3094 = vadd.xlane.f32.xlu0 %v3083
          %v3095 = vpop.xlane.xlu0 %3094
          %3096 = vadd.xlane.f32.xlu0 %v3084
          %v3097 = vpop.xlane.xlu0 %3096
          %3098 = vadd.xlane.f32.xlu0 %v3085
          %v3099 = vpop.xlane.xlu0 %3098
          %3100 = vadd.xlane.f32.xlu0 %v3086
          %v3101 = vpop.xlane.xlu0 %3100
          %3102 = vadd.xlane.f32.xlu0 %v3087
          %v3103 = vpop.xlane.xlu0 %3102
          %vm3104 = vcmp.ne.s32.totalorder %v3038, 0
          %vm3105 = vcmp.ne.s32.totalorder %v3039, 0
          %vm3106 = vcmp.ne.s32.totalorder %v3040, 0
          %vm3107 = vcmp.ne.s32.totalorder %v3041, 0
          %vm3108 = vcmp.ne.s32.totalorder %v3042, 0
          %vm3109 = vcmp.ne.s32.totalorder %v3043, 0
          %vm3110 = vcmp.ne.s32.totalorder %v3044, 0
          %vm3111 = vcmp.ne.s32.totalorder %v3045, 0
          %v3112 = vsel %vm3104, 1, 0
          %v3113 = vsel %vm3105, 1, 0
          %v3114 = vsel %vm3106, 1, 0
          %v3115 = vsel %vm3107, 1, 0
          %v3116 = vsel %vm3108, 1, 0
          %v3117 = vsel %vm3109, 1, 0
          %v3118 = vsel %vm3110, 1, 0
          %v3119 = vsel %vm3111, 1, 0
          %v3120 = vcvt.s32.f32 %v3112
          %v3121 = vcvt.s32.f32 %v3113
          %v3122 = vcvt.s32.f32 %v3114
          %v3123 = vcvt.s32.f32 %v3115
          %v3124 = vcvt.s32.f32 %v3116
          %v3125 = vcvt.s32.f32 %v3117
          %v3126 = vcvt.s32.f32 %v3118
          %v3127 = vcvt.s32.f32 %v3119
          %vm3128 = vcmp.ge.f32.partialorder %v2935, %v2959
          %vm3129 = vcmp.ge.f32.partialorder %v2938, %v2961
          %vm3130 = vcmp.ge.f32.partialorder %v2941, %v2963
          %vm3131 = vcmp.ge.f32.partialorder %v2944, %v2965
          %vm3132 = vcmp.ge.f32.partialorder %v2947, %v2967
          %vm3133 = vcmp.ge.f32.partialorder %v2950, %v2969
          %vm3134 = vcmp.ge.f32.partialorder %v2953, %v2971
          %vm3135 = vcmp.ge.f32.partialorder %v2956, %v2973
          %v3136 = vsel %vm3128, %v3047, 128
          %v3137 = vsel %vm3129, %v3047, 128
          %v3138 = vsel %vm3130, %v3047, 128
          %v3139 = vsel %vm3131, %v3047, 128
          %v3140 = vsel %vm3132, %v3047, 128
          %v3141 = vsel %vm3133, %v3047, 128
          %v3142 = vsel %vm3134, %v3047, 128
          %v3143 = vsel %vm3135, %v3047, 128
          %v3144 = vand.u32 %v3136, 65535
          %v3145 = vshra.s32 %v3136, 16
          %v3146 = vcvt.s32.f32 %v3144
          %v3147 = vcvt.s32.f32 %v3145
          %3148 = vmin.xlane.f32.xlu0 %v3147
          %v3149 = vpop.xlane.xlu0 %3148
          %vm3150 = vcmp.eq.f32.partialorder %v3147, %v3149
          %v3151 = vsel %vm3150, %v3146, inf
          %3152 = vmin.xlane.f32.xlu0 %v3151
          %v3153 = vpop.xlane.xlu0 %3152
          %v3154 = vcvt.f32.s32 %v3153
          %v3155 = vcvt.f32.s32 %v3149
          %v3156 = vshll.u32 %v3155, 16
          %v3157 = vadd.s32 %v3156, %v3154
          %v3158 = vand.u32 %v3137, 65535
          %v3159 = vshra.s32 %v3137, 16
          %v3160 = vcvt.s32.f32 %v3158
          %v3161 = vcvt.s32.f32 %v3159
          %3162 = vmin.xlane.f32.xlu0 %v3161
          %v3163 = vpop.xlane.xlu0 %3162
          %vm3164 = vcmp.eq.f32.partialorder %v3161, %v3163
          %v3165 = vsel %vm3164, %v3160, inf
          %3166 = vmin.xlane.f32.xlu0 %v3165
          %v3167 = vpop.xlane.xlu0 %3166
          %v3168 = vcvt.f32.s32 %v3167
          %v3169 = vcvt.f32.s32 %v3163
          %v3170 = vshll.u32 %v3169, 16
          %v3171 = vadd.s32 %v3170, %v3168
          %v3172 = vand.u32 %v3138, 65535
          %v3173 = vshra.s32 %v3138, 16
          %v3174 = vcvt.s32.f32 %v3172
          %v3175 = vcvt.s32.f32 %v3173
          %3176 = vmin.xlane.f32.xlu0 %v3175
          %v3177 = vpop.xlane.xlu0 %3176
          %vm3178 = vcmp.eq.f32.partialorder %v3175, %v3177
          %v3179 = vsel %vm3178, %v3174, inf
          %3180 = vmin.xlane.f32.xlu0 %v3179
          %v3181 = vpop.xlane.xlu0 %3180
          %v3182 = vcvt.f32.s32 %v3181
          %v3183 = vcvt.f32.s32 %v3177
          %v3184 = vshll.u32 %v3183, 16
          %v3185 = vadd.s32 %v3184, %v3182
          %v3186 = vand.u32 %v3139, 65535
          %v3187 = vshra.s32 %v3139, 16
          %v3188 = vcvt.s32.f32 %v3186
          %v3189 = vcvt.s32.f32 %v3187
          %3190 = vmin.xlane.f32.xlu0 %v3189
          %v3191 = vpop.xlane.xlu0 %3190
          %vm3192 = vcmp.eq.f32.partialorder %v3189, %v3191
          %v3193 = vsel %vm3192, %v3188, inf
          %3194 = vmin.xlane.f32.xlu0 %v3193
          %v3195 = vpop.xlane.xlu0 %3194
          %v3196 = vcvt.f32.s32 %v3195
          %v3197 = vcvt.f32.s32 %v3191
          %v3198 = vshll.u32 %v3197, 16
          %v3199 = vadd.s32 %v3198, %v3196
          %v3200 = vand.u32 %v3140, 65535
          %v3201 = vshra.s32 %v3140, 16
          %v3202 = vcvt.s32.f32 %v3200
          %v3203 = vcvt.s32.f32 %v3201
          %3204 = vmin.xlane.f32.xlu0 %v3203
          %v3205 = vpop.xlane.xlu0 %3204
          %vm3206 = vcmp.eq.f32.partialorder %v3203, %v3205
          %v3207 = vsel %vm3206, %v3202, inf
          %3208 = vmin.xlane.f32.xlu0 %v3207
          %v3209 = vpop.xlane.xlu0 %3208
          %v3210 = vcvt.f32.s32 %v3209
          %v3211 = vcvt.f32.s32 %v3205
          %v3212 = vshll.u32 %v3211, 16
          %v3213 = vadd.s32 %v3212, %v3210
          %v3214 = vand.u32 %v3141, 65535
          %v3215 = vshra.s32 %v3141, 16
          %v3216 = vcvt.s32.f32 %v3214
          %v3217 = vcvt.s32.f32 %v3215
          %3218 = vmin.xlane.f32.xlu0 %v3217
          %v3219 = vpop.xlane.xlu0 %3218
          %vm3220 = vcmp.eq.f32.partialorder %v3217, %v3219
          %v3221 = vsel %vm3220, %v3216, inf
          %3222 = vmin.xlane.f32.xlu0 %v3221
          %v3223 = vpop.xlane.xlu0 %3222
          %v3224 = vcvt.f32.s32 %v3223
          %v3225 = vcvt.f32.s32 %v3219
          %v3226 = vshll.u32 %v3225, 16
          %v3227 = vadd.s32 %v3226, %v3224
          %v3228 = vand.u32 %v3142, 65535
          %v3229 = vshra.s32 %v3142, 16
          %v3230 = vcvt.s32.f32 %v3228
          %v3231 = vcvt.s32.f32 %v3229
          %3232 = vmin.xlane.f32.xlu0 %v3231
          %v3233 = vpop.xlane.xlu0 %3232
          %vm3234 = vcmp.eq.f32.partialorder %v3231, %v3233
          %v3235 = vsel %vm3234, %v3230, inf
          %3236 = vmin.xlane.f32.xlu0 %v3235
          %v3237 = vpop.xlane.xlu0 %3236
          %v3238 = vcvt.f32.s32 %v3237
          %v3239 = vcvt.f32.s32 %v3233
          %v3240 = vshll.u32 %v3239, 16
          %v3241 = vadd.s32 %v3240, %v3238
          %v3242 = vand.u32 %v3143, 65535
          %v3243 = vshra.s32 %v3143, 16
          %v3244 = vcvt.s32.f32 %v3242
          %v3245 = vcvt.s32.f32 %v3243
          %3246 = vmin.xlane.f32.xlu0 %v3245
          %v3247 = vpop.xlane.xlu0 %3246
          %vm3248 = vcmp.eq.f32.partialorder %v3245, %v3247
          %v3249 = vsel %vm3248, %v3244, inf
          %3250 = vmin.xlane.f32.xlu0 %v3249
          %v3251 = vpop.xlane.xlu0 %3250
          %v3252 = vcvt.f32.s32 %v3251
          %v3253 = vcvt.f32.s32 %v3247
          %v3254 = vshll.u32 %v3253, 16
          %v3255 = vadd.s32 %v3254, %v3252
          %vm3256 = vcmask 7168
          %3257 = vst.msk [vmem:[%s9] sm:$0xff] %vm3256, %v3157
          %3258 = vst.msk [vmem:[%s9 + $0x8] sm:$0xff] %vm3256, %v3171
          %3259 = vst.msk [vmem:[%s9 + $0x10] sm:$0xff] %vm3256, %v3185
          %3260 = vst.msk [vmem:[%s9 + $0x18] sm:$0xff] %vm3256, %v3199
          %3261 = vst.msk [vmem:[%s9 + $0x20] sm:$0xff] %vm3256, %v3213
          %3262 = vst.msk [vmem:[%s9 + $0x28] sm:$0xff] %vm3256, %v3227
          %3263 = vst.msk [vmem:[%s9 + $0x30] sm:$0xff] %vm3256, %v3241
          %3264 = vst.msk [vmem:[%s9 + $0x38] sm:$0xff] %vm3256, %v3255
          %v3265 = vsub.f32 %v3030, %v3089
          %v3266 = vsub.f32 %v3031, %v3091
          %v3267 = vsub.f32 %v3032, %v3093
          %v3268 = vsub.f32 %v3033, %v3095
          %v3269 = vsub.f32 %v3034, %v3097
          %v3270 = vsub.f32 %v3035, %v3099
          %v3271 = vsub.f32 %v3036, %v3101
          %v3272 = vsub.f32 %v3037, %v3103
          %v3273 = vmul.f32 %v3120, %v3265
          %v3274 = vmul.f32 %v3121, %v3266
          %v3275 = vmul.f32 %v3122, %v3267
          %v3276 = vmul.f32 %v3123, %v3268
          %v3277 = vmul.f32 %v3124, %v3269
          %v3278 = vmul.f32 %v3125, %v3270
          %v3279 = vmul.f32 %v3126, %v3271
          %v3280 = vmul.f32 %v3127, %v3272
          %v3281 = vsel %vm3256, %v3273, 0.0
          %v3282 = vsel %vm3256, %v3274, 0.0
          %v3283 = vadd.f32 %v3281, %v3282
          %v3284 = vsel %vm3256, %v3275, 0.0
          %v3285 = vadd.f32 %v3283, %v3284
          %v3286 = vsel %vm3256, %v3276, 0.0
          %v3287 = vadd.f32 %v3285, %v3286
          %v3288 = vsel %vm3256, %v3277, 0.0
          %v3289 = vadd.f32 %v3287, %v3288
          %v3290 = vsel %vm3256, %v3278, 0.0
          %v3291 = vadd.f32 %v3289, %v3290
          %v3292 = vsel %vm3256, %v3279, 0.0
          %v3293 = vadd.f32 %v3291, %v3292
          %v3294 = vsel %vm3256, %v3280, 0.0
          %v3295 = vadd.f32 %v3293, %v3294
          %3296 = vadd.xlane.f32.xlu0 %v3295
          %v3297 = vpop.xlane.xlu0 %3296
          %v3298 = vrot.slane %v3297, 4
          %v3299 = vadd.f32 %v3297, %v3298
          %v3300 = vrot.slane %v3299, 2
          %v3301 = vadd.f32 %v3299, %v3300
          %v3302 = vrot.slane %v3301, 1
          %v3303 = vadd.f32 %v3301, %v3302
          %s3304 = vtos %v3303
          %s3305 = sadd.f32 %s3304, 0.0
          %v3306 = vstv %s3305
          %vm3307 = vcmask 0
          %3308 = vst.msk [vmem:[#allocation7] sm:$0x1] %vm3307, %v3306
        $region60: #{tagger_forward.3} parent=51 // pred_fallthru
          _
        // Predicated region
        $region61: #{tagger_forward.3} parent=51 // pred_check
          %p3309 = pneg %p215
        $region62: #{tagger_forward.3} parent=51 // pred_check_branch
          %3311 = sbr.rel (%p3309) target = $region64
        $region63: #{tagger_forward.3} parent=51 // pred_region
          %3313 = vsyncadd [#allocation8], 0
          %s3315 = sshll.u32 [#allocation7], 4
          %s3316 = int_to_ptr.vmem [resolvable:$true] %s3315
          %s3317 = sshll.u32 %s8, 4
          %s3318 = int_to_ptr.hbm [resolvable:$true] %s3317
          %3320 = dma.vmem_to_hbm [thread:$0]  %s3316, 16, %s3318, [#allocation8]
        $region64: #{tagger_forward.3} parent=51 // pred_fallthru
          _
        // Predicated region
        $region65: #{tagger_forward.3} parent=51 // pred_check
          %p3321 = pneg %p236
        $region66: #{tagger_forward.3} parent=51 // pred_check_branch
          %3323 = sbr.rel (%p3321) target = $region68
        $region67: #{tagger_forward.3} parent=51 // pred_region
          _
        $region68: #{tagger_forward.3} parent=51 // pred_fallthru
          _
        // Predicated region
        $region69: #{tagger_forward.3} parent=51 // pred_check
          %p3324 = pneg %p215
        $region70: #{tagger_forward.3} parent=51 // pred_check_branch
          %3326 = sbr.rel (%p3324) target = $region72
        $region71: #{tagger_forward.3} parent=51 // pred_region
          %3328 = dma.done [#allocation8], 16
        $region72: #{tagger_forward.3} parent=51 // pred_fallthru
          _
        // Predicated region
        $region73: #{tagger_forward.3} parent=51 // pred_check
          %p3329 = pneg %p236
        $region74: #{tagger_forward.3} parent=51 // pred_check_branch
          %3331 = sbr.rel (%p3329) target = $region76
        $region75: #{tagger_forward.3} parent=51 // pred_region
          _
        $region76: #{tagger_forward.3} parent=51 // pred_fallthru
          _
      $region52: #{tagger_forward.3} parent=5 // pred_fallthru
        _
      %p3332 = scmp.le.s32.totalorder 2, %s17
      // Predicated region
      $region77: #{tagger_forward.3} parent=5 // pred_check
        %p3333 = pneg %p3332
      $region78: #{tagger_forward.3} parent=5 // pred_check_branch
        %3335 = sbr.rel (%p3333) target = $region80
      $region79: #{tagger_forward.3} parent=5 // pred_region
        %s3336 = ssub.s32 %s17, 2
      $region80: #{tagger_forward.3} parent=5 // pred_fallthru
        _
    $region6: #{tagger_forward.3} parent=1 // loop_footer
      %s21 = sadd.s32 1, %s17
    $region7: #{tagger_forward.3} parent=1 // loop_footer_branch
      %16 = sbr.rel target = $region3
    $region8: #{tagger_forward.3} parent=1 // loop_exit
      _
    %3337 = vsyncpa [#allocation8], 1
    %s3338 = scalar_lea.sflag [#allocation8], 1
    %3339 = vsyncpa %s3338, 1

</llo_original>
